<compile_context>
chip_gen: v5e
topology: v5e:2x2
jax: 0.10.0
libtpu: 0.0.40
codegen_flags: <defaults>
</compile_context>

<pallas_src>
import math

import jax
import jax.numpy as jnp
from jax import lax
from jax.experimental import pallas as pl
from jax.experimental.pallas import tpu as pltpu

_LANE = 128


def _round_up(x, m):
    return ((x + m - 1) // m) * m


# ---------------------------------------------------------------------------
# Projection kernel (ONE call handles BOTH linear layers):
#   u_t = (s0 @ W_t + b_t) * out_deg^-beta      (feeds the target conv)
#   u_s = (t0 @ W_s + b_s) * in_deg^-beta       (feeds the source conv)
# Outputs are bf16, lane-padded to a 128 multiple -> unmasked stores.
# ---------------------------------------------------------------------------
def _proj_kernel(s0_ref, t0_ref, wt_ref, bt_ref, ws_ref, bs_ref,
                 pt_ref, ps_ref, ut_ref, us_ref):
    xw_t = jnp.dot(s0_ref[...], wt_ref[...], preferred_element_type=jnp.float32)
    ut_ref[...] = ((xw_t + bt_ref[...]) * pt_ref[...]).astype(ut_ref.dtype)
    xw_s = jnp.dot(t0_ref[...], ws_ref[...], preferred_element_type=jnp.float32)
    us_ref[...] = ((xw_s + bs_ref[...]) * ps_ref[...]).astype(us_ref.dtype)


def _project_both(s0p, t0p, w_t, b_t, w_s, b_s, pre_t, pre_s, tile_m):
    n_pad, c_in = s0p.shape
    c_pad = w_t.shape[1]
    row_spec = pl.BlockSpec((tile_m, c_in), lambda i: (i, 0))
    w_spec = pl.BlockSpec((c_in, c_pad), lambda i: (0, 0))
    b_spec = pl.BlockSpec((1, c_pad), lambda i: (0, 0))
    s_spec = pl.BlockSpec((tile_m, 1), lambda i: (i, 0))
    out_spec = pl.BlockSpec((tile_m, c_pad), lambda i: (i, 0))
    return pl.pallas_call(
        _proj_kernel,
        out_shape=(jax.ShapeDtypeStruct((n_pad, c_pad), jnp.bfloat16),
                   jax.ShapeDtypeStruct((n_pad, c_pad), jnp.bfloat16)),
        grid=(n_pad // tile_m,),
        in_specs=[row_spec, row_spec, w_spec, b_spec, w_spec, b_spec,
                  s_spec, s_spec],
        out_specs=(out_spec, out_spec),
        compiler_params=pltpu.CompilerParams(
            dimension_semantics=("parallel",)),
    )(s0p, t0p, w_t, b_t, w_s, b_s, pre_t, pre_s)


# ---------------------------------------------------------------------------
# Fused aggregation kernel: one pass over B serves both directions and the
# final deg^-alpha row scaling is applied on the last reduction step.
#   raw_t[i-block] += B[i,k]   @ u_t[k-block]   (reduction over k = inner axis)
#   raw_s[k-block] += B[i,k]^T @ u_s[i-block]   (reduction over i = outer axis)
# ---------------------------------------------------------------------------
def _agg_kernel(b_ref, ut_ref, us_ref, tsc_ref, ssc_ref, ot_ref, os_ref):
    i = pl.program_id(0)
    k = pl.program_id(1)
    b_tile = b_ref[...]

    # target direction: dst rows (block i) gather from src cols (block k).
    contrib_t = jnp.dot(b_tile, ut_ref[...], preferred_element_type=jnp.float32)

    @pl.when(k == 0)
    def _():
        ot_ref[...] = contrib_t

    @pl.when(k > 0)
    def _():
        ot_ref[...] += contrib_t

    @pl.when(k == pl.num_programs(1) - 1)
    def _():
        # fused in_deg^-alpha row scaling on the final accumulation step
        ot_ref[...] = ot_ref[...] * tsc_ref[...]

    # source direction: transposed product reuses the very same B tile.
    contrib_s = lax.dot_general(
        b_tile, us_ref[...], (((0,), (0,)), ((), ())),
        preferred_element_type=jnp.float32)

    @pl.when(i == 0)
    def _():
        os_ref[k] = contrib_s

    @pl.when(i > 0)
    def _():
        os_ref[k] += contrib_s

    @pl.when(i == pl.num_programs(0) - 1)
    def _():
        # fused out_deg^-alpha row scaling on the final accumulation step
        os_ref[k] = os_ref[k] * ssc_ref[...]


def _agg_vmem_limit(tile_m, tile_k, c_pad, n_pad):
    est = (2 * tile_m * tile_k * 2        # B tile, double-buffered, bf16
           + 2 * tile_k * c_pad * 2       # u_t tile
           + 2 * tile_m * c_pad * 2       # u_s tile
           + 2 * (tile_m + tile_k) * 4    # alpha-scale column tiles (f32)
           + 2 * tile_m * c_pad * 4       # t1 output tile (f32)
           + n_pad * c_pad * 4)           # VMEM-resident s1 slab (f32)
    # Explicit limit with headroom, kept under v7x's 64 MiB physical VMEM.
    return int(min(max(2 * est + (4 << 20), 32 << 20), 48 << 20))


def _aggregate(b_mat, u_t, u_s, sc_t, sc_s, tile_m, tile_k):
    n_pad = b_mat.shape[0]
    c_pad = u_t.shape[1]
    nb_i = n_pad // tile_m
    nb_k = n_pad // tile_k
    vmem_limit = _agg_vmem_limit(tile_m, tile_k, c_pad, n_pad)
    flops = 4 * n_pad * n_pad * c_pad                # two MXU products / tile
    bytes_accessed = (b_mat.size * 2 + u_t.size * 2 + u_s.size * 2
                      + 2 * n_pad * c_pad * 4)
    raw_t, raw_s = pl.pallas_call(
        _agg_kernel,
        out_shape=(
            jax.ShapeDtypeStruct((n_pad, c_pad), jnp.float32),
            jax.ShapeDtypeStruct((nb_k, tile_k, c_pad), jnp.float32),
        ),
        grid=(nb_i, nb_k),
        in_specs=[
            pl.BlockSpec((tile_m, tile_k), lambda i, k: (i, k)),   # B (bf16)
            pl.BlockSpec((tile_k, c_pad), lambda i, k: (k, 0)),    # u_t
            pl.BlockSpec((tile_m, c_pad), lambda i, k: (i, 0)),    # u_s
            pl.BlockSpec((tile_m, 1), lambda i, k: (i, 0)),        # in^-a
            pl.BlockSpec((tile_k, 1), lambda i, k: (k, 0)),        # out^-a
        ],
        out_specs=(
            # t1: VMEM-resident across the inner (k) reduction axis.
            pl.BlockSpec((tile_m, c_pad), lambda i, k: (i, 0)),
            # s1: reduces over the outer (i) axis -> keep the whole slab
            # resident and index its row-blocks dynamically in-kernel.
            pl.BlockSpec((nb_k, tile_k, c_pad), lambda i, k: (0, 0, 0)),
        ),
        compiler_params=pltpu.CompilerParams(
            # Both outputs reduce over a grid axis (k for t1, i for s1), so
            # neither axis may be megacore-parallel; the kernel is HBM-bound
            # and the shared single read of B beats megacore anyway.
            dimension_semantics=("arbitrary", "arbitrary"),
            vmem_limit_bytes=vmem_limit,
        ),
        cost_estimate=pl.CostEstimate(
            flops=flops, transcendentals=0, bytes_accessed=bytes_accessed),
    )(b_mat, u_t, u_s, sc_t, sc_s)
    return raw_t, raw_s.reshape(n_pad, c_pad)


# ---------------------------------------------------------------------------
# Encoder wrapper (matches the PyTorch module's forward: returns (s1, t1)).
# ---------------------------------------------------------------------------
def single_layer_directed_gcn_encoder(s0, t0, edge_index, params,
                                      alpha=1.0, beta=0.0,
                                      *, tile_m=256, tile_k=256):
    n, c_in = s0.shape
    c_out = params["w_t"].shape[1]
    c_pad = _round_up(c_out, _LANE)
    n_pad = _round_up(n, math.lcm(tile_m, tile_k))

    row = edge_index[0].astype(jnp.int32)
    col = edge_index[1].astype(jnp.int32)
    loops = jnp.arange(n, dtype=jnp.int32)
    row_sl = jnp.concatenate([row, loops])
    col_sl = jnp.concatenate([col, loops])

    # Degrees over the self-loop-augmented edge list (real nodes: deg >= 1).
    in_deg = jnp.zeros((n,), jnp.float32).at[col_sl].add(1.0)
    out_deg = jnp.zeros((n,), jnp.float32).at[row_sl].add(1.0)

    # Shared dense multiplicity matrix B[dst, src]; small integer counts are
    # exact in bf16.  Padded rows/cols are zero and contribute nothing.
    # TODO(synk): for genuinely sparse graphs at large N, replace this dense
    # O(N^2) matrix with a blocked-sparse PrefetchScalarGridSpec formulation.
    b_mat = (jnp.zeros((n_pad, n_pad), jnp.float32)
             .at[col_sl, row_sl].add(1.0)).astype(jnp.bfloat16)

    def pad_rows(a):
        return jnp.zeros((n_pad,) + a.shape[1:], a.dtype).at[:a.shape[0]].set(a)

    def pad_weight(w, b):
        w_p = jnp.zeros((c_in, c_pad), jnp.float32).at[:, :c_out].set(
            w.astype(jnp.float32))
        b_p = jnp.zeros((1, c_pad), jnp.float32).at[:, :c_out].set(
            b.reshape(1, c_out).astype(jnp.float32))
        return w_p, b_p

    w_t, b_t = pad_weight(params["w_t"], params["b_t"])
    w_s, b_s = pad_weight(params["w_s"], params["b_s"])

    # deg^-beta row pre-scales and deg^-alpha output scales (padded rows get 0
    # so padded slots stay exactly zero / never produce inf*0).
    pre_t = pad_rows(jnp.power(out_deg, -beta).reshape(n, 1))
    pre_s = pad_rows(jnp.power(in_deg, -beta).reshape(n, 1))
    sc_t = pad_rows(jnp.power(in_deg, -alpha).reshape(n, 1))
    sc_s = pad_rows(jnp.power(out_deg, -alpha).reshape(n, 1))

    # Hoisted, lane-dense bf16 projections: u_t = D_out^-b (s0 W_t + b_t), ...
    u_t, u_s = _project_both(
        pad_rows(s0.astype(jnp.float32)), pad_rows(t0.astype(jnp.float32)),
        w_t, b_t, w_s, b_s, pre_t, pre_s, tile_m)

    t1_pad, s1_pad = _aggregate(b_mat, u_t, u_s, sc_t, sc_s, tile_m, tile_k)

    t1 = t1_pad[:n, :c_out]
    s1 = s1_pad[:n, :c_out]
    return s1, t1


def init_params(key, in_channels, out_channels):
    # deterministic init mimicking nn.Linear default uniform bounds
    ks = jax.random.split(key, 4)
    bound = 1.0 / jnp.sqrt(in_channels)
    w_s = jax.random.uniform(ks[0], (in_channels, out_channels),
                             jnp.float32, -bound, bound)
    b_s = jax.random.uniform(ks[1], (out_channels,), jnp.float32, -bound, bound)
    w_t = jax.random.uniform(ks[2], (in_channels, out_channels),
                             jnp.float32, -bound, bound)
    b_t = jax.random.uniform(ks[3], (out_channels,), jnp.float32, -bound, bound)
    return {"w_s": w_s, "b_s": b_s, "w_t": w_t, "b_t": b_t}


if __name__ == "__main__":
    key = jax.random.PRNGKey(0)
    k_s0, k_t0, k_e, k_p = jax.random.split(key, 4)

    num_nodes = 300          # pads to 512 -> 2x2 aggregation grid
    in_channels = 16
    out_channels = 8
    num_edges = 900

    s0 = jax.random.normal(k_s0, (num_nodes, in_channels), jnp.float32)
    t0 = jax.random.normal(k_t0, (num_nodes, in_channels), jnp.float32)
    edge_index = jax.random.randint(k_e, (2, num_edges), 0, num_nodes,
                                    dtype=jnp.int32)
    params = init_params(k_p, in_channels, out_channels)

    fwd = jax.jit(single_layer_directed_gcn_encoder)
    s1, t1 = fwd(s0, t0, edge_index, params)
    jax.block_until_ready((s1, t1))

    # Pure-JAX f32 reference with exact PyG message-passing semantics.
    def ref_conv(x, row, col, w, b, alpha, beta, n):
        loops = jnp.arange(n, dtype=row.dtype)
        row = jnp.concatenate([row, loops])
        col = jnp.concatenate([col, loops])
        xw = x @ w + b
        in_deg = jnp.zeros((n,), jnp.float32).at[col].add(1.0)
        out_deg = jnp.zeros((n,), jnp.float32).at[row].add(1.0)
        norm = jnp.power(in_deg[col], -alpha) * jnp.power(out_deg[row], -beta)
        msg = norm[:, None] * xw[row]
        return jnp.zeros((n, w.shape[1]), jnp.float32).at[col].add(msg)

    row, col = edge_index[0], edge_index[1]
    t1_ref = ref_conv(s0, row, col, params["w_t"], params["b_t"], 1.0, 0.0,
                      num_nodes)
    s1_ref = ref_conv(t0, col, row, params["w_s"], params["b_s"], 1.0, 0.0,
                      num_nodes)

    # bf16-streamed operands + f32 accumulation -> slightly loosened tolerance.
    assert jnp.allclose(t1, t1_ref, rtol=3e-2, atol=3e-2), "t1 mismatch"
    assert jnp.allclose(s1, s1_ref, rtol=3e-2, atol=3e-2), "s1 mismatch"

    print("KERNEL_OK")
</pallas_src>

<mosaic_0001>
module attributes {stable_mosaic.version = 11 : i64} {
  func.func @_proj_kernel(%arg0: i32, %arg1: memref<256x16xf32, #tpu.memory_space<vmem>>, %arg2: memref<256x16xf32, #tpu.memory_space<vmem>>, %arg3: memref<16x128xf32, #tpu.memory_space<vmem>>, %arg4: memref<1x128xf32, #tpu.memory_space<vmem>>, %arg5: memref<16x128xf32, #tpu.memory_space<vmem>>, %arg6: memref<1x128xf32, #tpu.memory_space<vmem>>, %arg7: memref<256x1xf32, #tpu.memory_space<vmem>>, %arg8: memref<256x1xf32, #tpu.memory_space<vmem>>, %arg9: memref<256x128xbf16, #tpu.memory_space<vmem>>, %arg10: memref<256x128xbf16, #tpu.memory_space<vmem>>) attributes {dimension_semantics = [#tpu.dimension_semantics<parallel>], iteration_bounds = array<i64: 2>, scalar_prefetch = 0 : i64, scratch_operands = 0 : i64, tpu.core_type = #tpu.core_type<tc>, window_params = [{transform_indices = @transform_0, window_bounds = array<i64: 256, 16>}, {transform_indices = @transform_1, window_bounds = array<i64: 256, 16>}, {pipeline_mode = #tpu.pipeline_mode<synchronous>, transform_indices = @transform_2, window_bounds = array<i64: 16, 128>}, {pipeline_mode = #tpu.pipeline_mode<synchronous>, transform_indices = @transform_3, window_bounds = array<i64: 1, 128>}, {pipeline_mode = #tpu.pipeline_mode<synchronous>, transform_indices = @transform_4, window_bounds = array<i64: 16, 128>}, {pipeline_mode = #tpu.pipeline_mode<synchronous>, transform_indices = @transform_5, window_bounds = array<i64: 1, 128>}, {transform_indices = @transform_6, window_bounds = array<i64: 256, 1>}, {transform_indices = @transform_7, window_bounds = array<i64: 256, 1>}, {transform_indices = @transform_8, window_bounds = array<i64: 256, 128>}, {transform_indices = @transform_9, window_bounds = array<i64: 256, 128>}]} {
    %c0 = arith.constant 0 : index
    %c0_0 = arith.constant 0 : index
    %0 = vector.load %arg1[%c0, %c0_0] : memref<256x16xf32, #tpu.memory_space<vmem>>, vector<256x16xf32>
    %c0_1 = arith.constant 0 : index
    %c0_2 = arith.constant 0 : index
    %1 = vector.load %arg3[%c0_1, %c0_2] : memref<16x128xf32, #tpu.memory_space<vmem>>, vector<16x128xf32>
    %cst = arith.constant dense<0.000000e+00> : vector<256x128xf32>
    %2 = tpu.matmul %0, %1, %cst {dimension_numbers = #tpu.dot_dimension_numbers<[1], [0], [0], [1], [0, 0, 1, 1], [], []>} : vector<256x16xf32>, vector<16x128xf32>, vector<256x128xf32> -> vector<256x128xf32>
    %c0_3 = arith.constant 0 : index
    %c0_4 = arith.constant 0 : index
    %3 = vector.load %arg4[%c0_3, %c0_4] : memref<1x128xf32, #tpu.memory_space<vmem>>, vector<1x128xf32>
    %4 = vector.broadcast %3 : vector<1x128xf32> to vector<256x128xf32>
    %5 = arith.addf %2, %4 : vector<256x128xf32>
    %c0_5 = arith.constant 0 : index
    %c0_6 = arith.constant 0 : index
    %6 = vector.load %arg7[%c0_5, %c0_6] : memref<256x1xf32, #tpu.memory_space<vmem>>, vector<256x1xf32>
    %7 = vector.broadcast %6 : vector<256x1xf32> to vector<256x128xf32>
    %8 = arith.mulf %5, %7 : vector<256x128xf32>
    %9 = arith.truncf %8 : vector<256x128xf32> to vector<256x128xbf16>
    %c0_7 = arith.constant 0 : index
    %c0_8 = arith.constant 0 : index
    %10 = vector.load %arg9[%c0_7, %c0_8] : memref<256x128xbf16, #tpu.memory_space<vmem>>, vector<256x128xbf16>
    tpu.vector_store %arg9[%c0_7, %c0_8], %9 {strides = array<i32>} : memref<256x128xbf16, #tpu.memory_space<vmem>>, vector<256x128xbf16>,
    %c0_9 = arith.constant 0 : index
    %c0_10 = arith.constant 0 : index
    %11 = vector.load %arg2[%c0_9, %c0_10] : memref<256x16xf32, #tpu.memory_space<vmem>>, vector<256x16xf32>
    %c0_11 = arith.constant 0 : index
    %c0_12 = arith.constant 0 : index
    %12 = vector.load %arg5[%c0_11, %c0_12] : memref<16x128xf32, #tpu.memory_space<vmem>>, vector<16x128xf32>
    %cst_13 = arith.constant dense<0.000000e+00> : vector<256x128xf32>
    %13 = tpu.matmul %11, %12, %cst_13 {dimension_numbers = #tpu.dot_dimension_numbers<[1], [0], [0], [1], [0, 0, 1, 1], [], []>} : vector<256x16xf32>, vector<16x128xf32>, vector<256x128xf32> -> vector<256x128xf32>
    %c0_14 = arith.constant 0 : index
    %c0_15 = arith.constant 0 : index
    %14 = vector.load %arg6[%c0_14, %c0_15] : memref<1x128xf32, #tpu.memory_space<vmem>>, vector<1x128xf32>
    %15 = vector.broadcast %14 : vector<1x128xf32> to vector<256x128xf32>
    %16 = arith.addf %13, %15 : vector<256x128xf32>
    %c0_16 = arith.constant 0 : index
    %c0_17 = arith.constant 0 : index
    %17 = vector.load %arg8[%c0_16, %c0_17] : memref<256x1xf32, #tpu.memory_space<vmem>>, vector<256x1xf32>
    %18 = vector.broadcast %17 : vector<256x1xf32> to vector<256x128xf32>
    %19 = arith.mulf %16, %18 : vector<256x128xf32>
    %20 = arith.truncf %19 : vector<256x128xf32> to vector<256x128xbf16>
    %c0_18 = arith.constant 0 : index
    %c0_19 = arith.constant 0 : index
    %21 = vector.load %arg10[%c0_18, %c0_19] : memref<256x128xbf16, #tpu.memory_space<vmem>>, vector<256x128xbf16>
    tpu.vector_store %arg10[%c0_18, %c0_19], %20 {strides = array<i32>} : memref<256x128xbf16, #tpu.memory_space<vmem>>, vector<256x128xbf16>,
    return
  }
  func.func @transform_0(%arg0: i32) -> (i32, i32) {
    %c0_i32 = arith.constant 0 : i32
    %c0_i32_0 = arith.constant 0 : i32
    return %arg0, %c0_i32 : i32, i32
  }
  func.func @transform_1(%arg0: i32) -> (i32, i32) {
    %c0_i32 = arith.constant 0 : i32
    %c0_i32_0 = arith.constant 0 : i32
    return %arg0, %c0_i32 : i32, i32
  }
  func.func @transform_2(%arg0: i32) -> (i32, i32) {
    %c0_i32 = arith.constant 0 : i32
    %c0_i32_0 = arith.constant 0 : i32
    %c0_i32_1 = arith.constant 0 : i32
    return %c0_i32, %c0_i32_0 : i32, i32
  }
  func.func @transform_3(%arg0: i32) -> (i32, i32) {
    %c0_i32 = arith.constant 0 : i32
    %c0_i32_0 = arith.constant 0 : i32
    %c0_i32_1 = arith.constant 0 : i32
    return %c0_i32, %c0_i32_0 : i32, i32
  }
  func.func @transform_4(%arg0: i32) -> (i32, i32) {
    %c0_i32 = arith.constant 0 : i32
    %c0_i32_0 = arith.constant 0 : i32
    %c0_i32_1 = arith.constant 0 : i32
    return %c0_i32, %c0_i32_0 : i32, i32
  }
  func.func @transform_5(%arg0: i32) -> (i32, i32) {
    %c0_i32 = arith.constant 0 : i32
    %c0_i32_0 = arith.constant 0 : i32
    %c0_i32_1 = arith.constant 0 : i32
    return %c0_i32, %c0_i32_0 : i32, i32
  }
  func.func @transform_6(%arg0: i32) -> (i32, i32) {
    %c0_i32 = arith.constant 0 : i32
    %c0_i32_0 = arith.constant 0 : i32
    return %arg0, %c0_i32 : i32, i32
  }
  func.func @transform_7(%arg0: i32) -> (i32, i32) {
    %c0_i32 = arith.constant 0 : i32
    %c0_i32_0 = arith.constant 0 : i32
    return %arg0, %c0_i32 : i32, i32
  }
  func.func @transform_8(%arg0: i32) -> (i32, i32) {
    %c0_i32 = arith.constant 0 : i32
    %c0_i32_0 = arith.constant 0 : i32
    return %arg0, %c0_i32 : i32, i32
  }
  func.func @transform_9(%arg0: i32) -> (i32, i32) {
    %c0_i32 = arith.constant 0 : i32
    %c0_i32_0 = arith.constant 0 : i32
    return %arg0, %c0_i32 : i32, i32
  }
}

module attributes {stable_mosaic.version = 11 : i64} {
  func.func @_agg_kernel(%arg0: i32, %arg1: i32, %arg2: memref<256x256xbf16, #tpu.memory_space<vmem>>, %arg3: memref<256x128xbf16, #tpu.memory_space<vmem>>, %arg4: memref<256x128xbf16, #tpu.memory_space<vmem>>, %arg5: memref<256x1xf32, #tpu.memory_space<vmem>>, %arg6: memref<256x1xf32, #tpu.memory_space<vmem>>, %arg7: memref<256x128xf32, #tpu.memory_space<vmem>>, %arg8: memref<2x256x128xf32, #tpu.memory_space<vmem>>) attributes {dimension_semantics = [#tpu.dimension_semantics<arbitrary>, #tpu.dimension_semantics<arbitrary>], iteration_bounds = array<i64: 2, 2>, scalar_prefetch = 0 : i64, scratch_operands = 0 : i64, tpu.core_type = #tpu.core_type<tc>, window_params = [{transform_indices = @transform_0, window_bounds = array<i64: 256, 256>}, {transform_indices = @transform_1, window_bounds = array<i64: 256, 128>}, {transform_indices = @transform_2, window_bounds = array<i64: 256, 128>}, {transform_indices = @transform_3, window_bounds = array<i64: 256, 1>}, {transform_indices = @transform_4, window_bounds = array<i64: 256, 1>}, {transform_indices = @transform_5, window_bounds = array<i64: 256, 128>}, {pipeline_mode = #tpu.pipeline_mode<synchronous>, transform_indices = @transform_6, window_bounds = array<i64: 2, 256, 128>}]} {
    %c0 = arith.constant 0 : index
    %c0_0 = arith.constant 0 : index
    %0 = vector.load %arg2[%c0, %c0_0] : memref<256x256xbf16, #tpu.memory_space<vmem>>, vector<256x256xbf16>
    %c0_1 = arith.constant 0 : index
    %c0_2 = arith.constant 0 : index
    %1 = vector.load %arg3[%c0_1, %c0_2] : memref<256x128xbf16, #tpu.memory_space<vmem>>, vector<256x128xbf16>
    %cst = arith.constant dense<0.000000e+00> : vector<256x128xf32>
    %2 = tpu.matmul %0, %1, %cst {dimension_numbers = #tpu.dot_dimension_numbers<[1], [0], [0], [1], [0, 0, 1, 1], [], []>} : vector<256x256xbf16>, vector<256x128xbf16>, vector<256x128xf32> -> vector<256x128xf32>
    %c0_i32 = arith.constant 0 : i32
    %3 = arith.cmpi eq, %arg1, %c0_i32 : i32
    %4 = arith.extui %3 : i1 to i32
    %c0_i32_3 = arith.constant 0 : i32
    %5 = arith.cmpi ne, %4, %c0_i32_3 : i32
    scf.if %5 {
      %c0_16 = arith.constant 0 : index
      %c0_17 = arith.constant 0 : index
      %23 = vector.load %arg7[%c0_16, %c0_17] : memref<256x128xf32, #tpu.memory_space<vmem>>, vector<256x128xf32>
      tpu.vector_store %arg7[%c0_16, %c0_17], %2 {strides = array<i32>} : memref<256x128xf32, #tpu.memory_space<vmem>>, vector<256x128xf32>,
    } else {
    }
    %c0_i32_4 = arith.constant 0 : i32
    %6 = arith.cmpi sgt, %arg1, %c0_i32_4 : i32
    %7 = arith.extui %6 : i1 to i32
    %c0_i32_5 = arith.constant 0 : i32
    %8 = arith.cmpi ne, %7, %c0_i32_5 : i32
    scf.if %8 {
      %c0_16 = arith.constant 0 : index
      %c0_17 = arith.constant 0 : index
      %23 = vector.load %arg7[%c0_16, %c0_17] : memref<256x128xf32, #tpu.memory_space<vmem>>, vector<256x128xf32>
      %24 = arith.addf %23, %2 : vector<256x128xf32>
      %c0_18 = arith.constant 0 : index
      %c0_19 = arith.constant 0 : index
      %25 = vector.load %arg7[%c0_18, %c0_19] : memref<256x128xf32, #tpu.memory_space<vmem>>, vector<256x128xf32>
      tpu.vector_store %arg7[%c0_18, %c0_19], %24 {strides = array<i32>} : memref<256x128xf32, #tpu.memory_space<vmem>>, vector<256x128xf32>,
    } else {
    }
    %c1_i32 = arith.constant 1 : i32
    %9 = arith.cmpi eq, %arg1, %c1_i32 : i32
    %10 = arith.extui %9 : i1 to i32
    %c0_i32_6 = arith.constant 0 : i32
    %11 = arith.cmpi ne, %10, %c0_i32_6 : i32
    scf.if %11 {
      %c0_16 = arith.constant 0 : index
      %c0_17 = arith.constant 0 : index
      %23 = vector.load %arg7[%c0_16, %c0_17] : memref<256x128xf32, #tpu.memory_space<vmem>>, vector<256x128xf32>
      %c0_18 = arith.constant 0 : index
      %c0_19 = arith.constant 0 : index
      %24 = vector.load %arg5[%c0_18, %c0_19] : memref<256x1xf32, #tpu.memory_space<vmem>>, vector<256x1xf32>
      %25 = vector.broadcast %24 : vector<256x1xf32> to vector<256x128xf32>
      %26 = arith.mulf %23, %25 : vector<256x128xf32>
      %c0_20 = arith.constant 0 : index
      %c0_21 = arith.constant 0 : index
      %27 = vector.load %arg7[%c0_20, %c0_21] : memref<256x128xf32, #tpu.memory_space<vmem>>, vector<256x128xf32>
      tpu.vector_store %arg7[%c0_20, %c0_21], %26 {strides = array<i32>} : memref<256x128xf32, #tpu.memory_space<vmem>>, vector<256x128xf32>,
    } else {
    }
    %c0_7 = arith.constant 0 : index
    %c0_8 = arith.constant 0 : index
    %12 = vector.load %arg4[%c0_7, %c0_8] : memref<256x128xbf16, #tpu.memory_space<vmem>>, vector<256x128xbf16>
    %cst_9 = arith.constant dense<0.000000e+00> : vector<256x128xf32>
    %13 = tpu.matmul %0, %12, %cst_9 {dimension_numbers = #tpu.dot_dimension_numbers<[0], [0], [1], [1], [0, 1, 1, 1], [], []>} : vector<256x256xbf16>, vector<256x128xbf16>, vector<256x128xf32> -> vector<256x128xf32>
    %c0_i32_10 = arith.constant 0 : i32
    %14 = arith.cmpi eq, %arg0, %c0_i32_10 : i32
    %15 = arith.extui %14 : i1 to i32
    %c0_i32_11 = arith.constant 0 : i32
    %16 = arith.cmpi ne, %15, %c0_i32_11 : i32
    scf.if %16 {
      %23 = arith.index_cast %arg1 : i32 to index
      %c0_16 = arith.constant 0 : index
      %c0_17 = arith.constant 0 : index
      %24 = vector.load %arg8[%23, %c0_16, %c0_17] : memref<2x256x128xf32, #tpu.memory_space<vmem>>, vector<1x256x128xf32>
      %25 = vector.shape_cast %24 : vector<1x256x128xf32> to vector<256x128xf32>
      %26 = vector.shape_cast %13 : vector<256x128xf32> to vector<1x256x128xf32>
      tpu.vector_store %arg8[%23, %c0_16, %c0_17], %26 {strides = array<i32>} : memref<2x256x128xf32, #tpu.memory_space<vmem>>, vector<1x256x128xf32>,
    } else {
    }
    %c0_i32_12 = arith.constant 0 : i32
    %17 = arith.cmpi sgt, %arg0, %c0_i32_12 : i32
    %18 = arith.extui %17 : i1 to i32
    %c0_i32_13 = arith.constant 0 : i32
    %19 = arith.cmpi ne, %18, %c0_i32_13 : i32
    scf.if %19 {
      %23 = arith.index_cast %arg1 : i32 to index
      %c0_16 = arith.constant 0 : index
      %c0_17 = arith.constant 0 : index
      %24 = vector.load %arg8[%23, %c0_16, %c0_17] : memref<2x256x128xf32, #tpu.memory_space<vmem>>, vector<1x256x128xf32>
      %25 = vector.shape_cast %24 : vector<1x256x128xf32> to vector<256x128xf32>
      %26 = arith.addf %25, %13 : vector<256x128xf32>
      %27 = arith.index_cast %arg1 : i32 to index
      %c0_18 = arith.constant 0 : index
      %c0_19 = arith.constant 0 : index
      %28 = vector.load %arg8[%27, %c0_18, %c0_19] : memref<2x256x128xf32, #tpu.memory_space<vmem>>, vector<1x256x128xf32>
      %29 = vector.shape_cast %28 : vector<1x256x128xf32> to vector<256x128xf32>
      %30 = vector.shape_cast %26 : vector<256x128xf32> to vector<1x256x128xf32>
      tpu.vector_store %arg8[%27, %c0_18, %c0_19], %30 {strides = array<i32>} : memref<2x256x128xf32, #tpu.memory_space<vmem>>, vector<1x256x128xf32>,
    } else {
    }
    %c1_i32_14 = arith.constant 1 : i32
    %20 = arith.cmpi eq, %arg0, %c1_i32_14 : i32
    %21 = arith.extui %20 : i1 to i32
    %c0_i32_15 = arith.constant 0 : i32
    %22 = arith.cmpi ne, %21, %c0_i32_15 : i32
    scf.if %22 {
      %23 = arith.index_cast %arg1 : i32 to index
      %c0_16 = arith.constant 0 : index
      %c0_17 = arith.constant 0 : index
      %24 = vector.load %arg8[%23, %c0_16, %c0_17] : memref<2x256x128xf32, #tpu.memory_space<vmem>>, vector<1x256x128xf32>
      %25 = vector.shape_cast %24 : vector<1x256x128xf32> to vector<256x128xf32>
      %c0_18 = arith.constant 0 : index
      %c0_19 = arith.constant 0 : index
      %26 = vector.load %arg6[%c0_18, %c0_19] : memref<256x1xf32, #tpu.memory_space<vmem>>, vector<256x1xf32>
      %27 = vector.broadcast %26 : vector<256x1xf32> to vector<256x128xf32>
      %28 = arith.mulf %25, %27 : vector<256x128xf32>
      %29 = arith.index_cast %arg1 : i32 to index
      %c0_20 = arith.constant 0 : index
      %c0_21 = arith.constant 0 : index
      %30 = vector.load %arg8[%29, %c0_20, %c0_21] : memref<2x256x128xf32, #tpu.memory_space<vmem>>, vector<1x256x128xf32>
      %31 = vector.shape_cast %30 : vector<1x256x128xf32> to vector<256x128xf32>
      %32 = vector.shape_cast %28 : vector<256x128xf32> to vector<1x256x128xf32>
      tpu.vector_store %arg8[%29, %c0_20, %c0_21], %32 {strides = array<i32>} : memref<2x256x128xf32, #tpu.memory_space<vmem>>, vector<1x256x128xf32>,
    } else {
    }
    return
  }
  func.func @transform_0(%arg0: i32, %arg1: i32) -> (i32, i32) {
    %c0_i32 = arith.constant 0 : i32
    return %arg0, %arg1 : i32, i32
  }
  func.func @transform_1(%arg0: i32, %arg1: i32) -> (i32, i32) {
    %c0_i32 = arith.constant 0 : i32
    %c0_i32_0 = arith.constant 0 : i32
    return %arg1, %c0_i32 : i32, i32
  }
  func.func @transform_2(%arg0: i32, %arg1: i32) -> (i32, i32) {
    %c0_i32 = arith.constant 0 : i32
    %c0_i32_0 = arith.constant 0 : i32
    return %arg0, %c0_i32 : i32, i32
  }
  func.func @transform_3(%arg0: i32, %arg1: i32) -> (i32, i32) {
    %c0_i32 = arith.constant 0 : i32
    %c0_i32_0 = arith.constant 0 : i32
    return %arg0, %c0_i32 : i32, i32
  }
  func.func @transform_4(%arg0: i32, %arg1: i32) -> (i32, i32) {
    %c0_i32 = arith.constant 0 : i32
    %c0_i32_0 = arith.constant 0 : i32
    return %arg1, %c0_i32 : i32, i32
  }
  func.func @transform_5(%arg0: i32, %arg1: i32) -> (i32, i32) {
    %c0_i32 = arith.constant 0 : i32
    %c0_i32_0 = arith.constant 0 : i32
    return %arg0, %c0_i32 : i32, i32
  }
  func.func @transform_6(%arg0: i32, %arg1: i32) -> (i32, i32, i32) {
    %c0_i32 = arith.constant 0 : i32
    %c0_i32_0 = arith.constant 0 : i32
    %c0_i32_1 = arith.constant 0 : i32
    %c0_i32_2 = arith.constant 0 : i32
    return %c0_i32, %c0_i32_0, %c0_i32_1 : i32, i32, i32
  }
}

</mosaic_0001>

<llo_original>
// kernel: single_layer_directed_gcn_encoder.2
$region0: #{single_layer_directed_gcn_encoder.2}
  #allocation0 [shape = 'u32[]', space=smem, size = 0x4, offset = 0x4, fixed_abs, tag = 'smem constant byte address 0x4 - core index']
  #allocation1 [shape = 'u32[72,128]{1,0:T(1,128)}', space=vmem, size = 0x9000, scoped, tag = 'internal scratch']
  %s0 = inlined_call_operand.vmem [shape: f32[512,16], index: 0, kind: input, shape index: {}]
  %s1 = inlined_call_operand.vmem [shape: f32[512,16], index: 1, kind: input, shape index: {}]
  %s2 = inlined_call_operand.vmem [shape: f32[16,128], index: 2, kind: input, shape index: {}]
  %s3 = inlined_call_operand.vmem [shape: f32[1,128], index: 3, kind: input, shape index: {}]
  %s4 = inlined_call_operand.vmem [shape: f32[16,128], index: 4, kind: input, shape index: {}]
  %s5 = inlined_call_operand.vmem [shape: f32[1,128], index: 5, kind: input, shape index: {}]
  %s6 = inlined_call_operand.vmem [shape: f32[512,1], index: 6, kind: input, shape index: {}]
  %s7 = inlined_call_operand.vmem [shape: f32[512,1], index: 7, kind: input, shape index: {}]
  %s8 = inlined_call_operand.vmem [shape: bf16[512,128], index: 8, kind: output, shape index: {0}]
  %s9 = inlined_call_operand.vmem [shape: bf16[512,128], index: 9, kind: output, shape index: {1}]
  %10 = xla_tuple %s8, %s9
  %s11 = sld [smem:[#allocation0]]
  $region73: #{single_layer_directed_gcn_encoder.2} parent=0
    _
  %s13 = ssub.s32 1, %s11
  %s14 = scalar_select 0, %s13, %s11
  loop: start=0, step=1, limit=4
  $region2: #{single_layer_directed_gcn_encoder.2} parent=0 // loop_pre_header
    _
  $region3: #{single_layer_directed_gcn_encoder.2} parent=0 // loop_header
    %s16 = sphi 0, %s20
    %p17 = scmp.ge.s32.totalorder %s16, 4
    %s26 = sphi 0, %s28
    %s29 = sphi 0, %s26
    %s30 = sphi 0, %s29
    %s46 = sphi 0, %s30
    %s52 = sphi 0, %s54
    %s55 = sphi 0, %s52
    %s56 = sphi 0, %s55
    %s72 = sphi 0, %s56
    %s76 = sphi 0, %s76
    %s78 = sphi 0, %s76
    %s79 = sphi 0, %s78
    %s93 = sphi 0, %s79
    %s97 = sphi 0, %s97
    %s99 = sphi 0, %s97
    %s100 = sphi 0, %s99
    %s114 = sphi 0, %s100
    %s118 = sphi 0, %s118
    %s120 = sphi 0, %s118
    %s121 = sphi 0, %s120
    %s135 = sphi 0, %s121
    %s139 = sphi 0, %s139
    %s141 = sphi 0, %s139
    %s142 = sphi 0, %s141
    %s156 = sphi 0, %s142
    %s162 = sphi 0, %s164
    %s165 = sphi 0, %s162
    %s166 = sphi 0, %s165
    %s182 = sphi 0, %s166
    %s188 = sphi 0, %s190
    %s191 = sphi 0, %s188
    %s192 = sphi 0, %s191
    %s208 = sphi 0, %s192
    %s214 = sphi 0, %s216
    %s217 = sphi 0, %s214
    %s218 = sphi 0, %s217
    %s234 = sphi 0, %s218
    %s240 = sphi 0, %s242
    %s243 = sphi 0, %s240
    %s244 = sphi 0, %s243
    %s260 = sphi 0, %s244
  $region4: #{single_layer_directed_gcn_encoder.2} parent=0 // loop_header_branch
    %19 = sbr.rel (%p17) target = $region8
  $region5: #{single_layer_directed_gcn_encoder.2} parent=0 // loop_body
    %s21 = ssub.s32 %s16, 1
    %s22 = ssub.s32 %s16, 2
    %s23 = sadd.s32 %s16, 1
    %s24 = ssub.s32 %s16, %s23
    %p25 = scmp.eq.s32.totalorder %s24, 0
    %s27 = sadd.s32 %s26, 1
    %s28 = scalar_select %p25, %s26, %s27
    %p31 = pneg %p25
    %p32 = scmp.eq.s32.totalorder %s16, 1
    %p33 = por %p31, %p32
    %p34 = scmp.ne.s32.totalorder %s26, %s29
    %p35 = scmp.eq.s32.totalorder %s16, 0
    %p36 = por %p34, %p35
    %p37 = scmp.ne.s32.totalorder %s26, %s29
    %p38 = scmp.eq.s32.totalorder %s21, 1
    %p39 = por %p37, %p38
    %p40 = scmp.ne.s32.totalorder %s29, %s30
    %p41 = scmp.eq.s32.totalorder %s21, 0
    %p42 = por %p40, %p41
    %p43 = scmp.ne.s32.totalorder %s29, %s30
    %p44 = scmp.eq.s32.totalorder %s22, 1
    %p45 = por %p43, %p44
    %p47 = scmp.ne.s32.totalorder %s30, %s46
    %p48 = scmp.eq.s32.totalorder %s22, 0
    %p49 = por %p47, %p48
    %s50 = ssub.s32 %s16, %s23
    %p51 = scmp.eq.s32.totalorder %s50, 0
    %s53 = sadd.s32 %s52, 1
    %s54 = scalar_select %p51, %s52, %s53
    %p57 = pneg %p51
    %p58 = scmp.eq.s32.totalorder %s16, 1
    %p59 = por %p57, %p58
    %p60 = scmp.ne.s32.totalorder %s52, %s55
    %p61 = scmp.eq.s32.totalorder %s16, 0
    %p62 = por %p60, %p61
    %p63 = scmp.ne.s32.totalorder %s52, %s55
    %p64 = scmp.eq.s32.totalorder %s21, 1
    %p65 = por %p63, %p64
    %p66 = scmp.ne.s32.totalorder %s55, %s56
    %p67 = scmp.eq.s32.totalorder %s21, 0
    %p68 = por %p66, %p67
    %p69 = scmp.ne.s32.totalorder %s55, %s56
    %p70 = scmp.eq.s32.totalorder %s22, 1
    %p71 = por %p69, %p70
    %p73 = scmp.ne.s32.totalorder %s56, %s72
    %p74 = scmp.eq.s32.totalorder %s22, 0
    %p75 = por %p73, %p74
    %s77 = sadd.s32 %s76, 1
    %p80 = scmp.eq.s32.totalorder %s16, 1
    %p81 = scmp.ne.s32.totalorder %s76, %s78
    %p82 = scmp.eq.s32.totalorder %s16, 0
    %p83 = por %p81, %p82
    %p84 = scmp.ne.s32.totalorder %s76, %s78
    %p85 = scmp.eq.s32.totalorder %s21, 1
    %p86 = por %p84, %p85
    %p87 = scmp.ne.s32.totalorder %s78, %s79
    %p88 = scmp.eq.s32.totalorder %s21, 0
    %p89 = por %p87, %p88
    %p90 = scmp.ne.s32.totalorder %s78, %s79
    %p91 = scmp.eq.s32.totalorder %s22, 1
    %p92 = por %p90, %p91
    %p94 = scmp.ne.s32.totalorder %s79, %s93
    %p95 = scmp.eq.s32.totalorder %s22, 0
    %p96 = por %p94, %p95
    %s98 = sadd.s32 %s97, 1
    %p101 = scmp.eq.s32.totalorder %s16, 1
    %p102 = scmp.ne.s32.totalorder %s97, %s99
    %p103 = scmp.eq.s32.totalorder %s16, 0
    %p104 = por %p102, %p103
    %p105 = scmp.ne.s32.totalorder %s97, %s99
    %p106 = scmp.eq.s32.totalorder %s21, 1
    %p107 = por %p105, %p106
    %p108 = scmp.ne.s32.totalorder %s99, %s100
    %p109 = scmp.eq.s32.totalorder %s21, 0
    %p110 = por %p108, %p109
    %p111 = scmp.ne.s32.totalorder %s99, %s100
    %p112 = scmp.eq.s32.totalorder %s22, 1
    %p113 = por %p111, %p112
    %p115 = scmp.ne.s32.totalorder %s100, %s114
    %p116 = scmp.eq.s32.totalorder %s22, 0
    %p117 = por %p115, %p116
    %s119 = sadd.s32 %s118, 1
    %p122 = scmp.eq.s32.totalorder %s16, 1
    %p123 = scmp.ne.s32.totalorder %s118, %s120
    %p124 = scmp.eq.s32.totalorder %s16, 0
    %p125 = por %p123, %p124
    %p126 = scmp.ne.s32.totalorder %s118, %s120
    %p127 = scmp.eq.s32.totalorder %s21, 1
    %p128 = por %p126, %p127
    %p129 = scmp.ne.s32.totalorder %s120, %s121
    %p130 = scmp.eq.s32.totalorder %s21, 0
    %p131 = por %p129, %p130
    %p132 = scmp.ne.s32.totalorder %s120, %s121
    %p133 = scmp.eq.s32.totalorder %s22, 1
    %p134 = por %p132, %p133
    %p136 = scmp.ne.s32.totalorder %s121, %s135
    %p137 = scmp.eq.s32.totalorder %s22, 0
    %p138 = por %p136, %p137
    %s140 = sadd.s32 %s139, 1
    %p143 = scmp.eq.s32.totalorder %s16, 1
    %p144 = scmp.ne.s32.totalorder %s139, %s141
    %p145 = scmp.eq.s32.totalorder %s16, 0
    %p146 = por %p144, %p145
    %p147 = scmp.ne.s32.totalorder %s139, %s141
    %p148 = scmp.eq.s32.totalorder %s21, 1
    %p149 = por %p147, %p148
    %p150 = scmp.ne.s32.totalorder %s141, %s142
    %p151 = scmp.eq.s32.totalorder %s21, 0
    %p152 = por %p150, %p151
    %p153 = scmp.ne.s32.totalorder %s141, %s142
    %p154 = scmp.eq.s32.totalorder %s22, 1
    %p155 = por %p153, %p154
    %p157 = scmp.ne.s32.totalorder %s142, %s156
    %p158 = scmp.eq.s32.totalorder %s22, 0
    %p159 = por %p157, %p158
    %s160 = ssub.s32 %s16, %s23
    %p161 = scmp.eq.s32.totalorder %s160, 0
    %s163 = sadd.s32 %s162, 1
    %s164 = scalar_select %p161, %s162, %s163
    %p167 = pneg %p161
    %p168 = scmp.eq.s32.totalorder %s16, 1
    %p169 = por %p167, %p168
    %p170 = scmp.ne.s32.totalorder %s162, %s165
    %p171 = scmp.eq.s32.totalorder %s16, 0
    %p172 = por %p170, %p171
    %p173 = scmp.ne.s32.totalorder %s162, %s165
    %p174 = scmp.eq.s32.totalorder %s21, 1
    %p175 = por %p173, %p174
    %p176 = scmp.ne.s32.totalorder %s165, %s166
    %p177 = scmp.eq.s32.totalorder %s21, 0
    %p178 = por %p176, %p177
    %p179 = scmp.ne.s32.totalorder %s165, %s166
    %p180 = scmp.eq.s32.totalorder %s22, 1
    %p181 = por %p179, %p180
    %p183 = scmp.ne.s32.totalorder %s166, %s182
    %p184 = scmp.eq.s32.totalorder %s22, 0
    %p185 = por %p183, %p184
    %s186 = ssub.s32 %s16, %s23
    %p187 = scmp.eq.s32.totalorder %s186, 0
    %s189 = sadd.s32 %s188, 1
    %s190 = scalar_select %p187, %s188, %s189
    %p193 = pneg %p187
    %p194 = scmp.eq.s32.totalorder %s16, 1
    %p195 = por %p193, %p194
    %p196 = scmp.ne.s32.totalorder %s188, %s191
    %p197 = scmp.eq.s32.totalorder %s16, 0
    %p198 = por %p196, %p197
    %p199 = scmp.ne.s32.totalorder %s188, %s191
    %p200 = scmp.eq.s32.totalorder %s21, 1
    %p201 = por %p199, %p200
    %p202 = scmp.ne.s32.totalorder %s191, %s192
    %p203 = scmp.eq.s32.totalorder %s21, 0
    %p204 = por %p202, %p203
    %p205 = scmp.ne.s32.totalorder %s191, %s192
    %p206 = scmp.eq.s32.totalorder %s22, 1
    %p207 = por %p205, %p206
    %p209 = scmp.ne.s32.totalorder %s192, %s208
    %p210 = scmp.eq.s32.totalorder %s22, 0
    %p211 = por %p209, %p210
    %s212 = ssub.s32 %s16, %s23
    %p213 = scmp.eq.s32.totalorder %s212, 0
    %s215 = sadd.s32 %s214, 1
    %s216 = scalar_select %p213, %s214, %s215
    %p219 = pneg %p213
    %p220 = scmp.eq.s32.totalorder %s16, 1
    %p221 = por %p219, %p220
    %p222 = scmp.ne.s32.totalorder %s214, %s217
    %p223 = scmp.eq.s32.totalorder %s16, 0
    %p224 = por %p222, %p223
    %p225 = scmp.ne.s32.totalorder %s214, %s217
    %p226 = scmp.eq.s32.totalorder %s21, 1
    %p227 = por %p225, %p226
    %p228 = scmp.ne.s32.totalorder %s217, %s218
    %p229 = scmp.eq.s32.totalorder %s21, 0
    %p230 = por %p228, %p229
    %p231 = scmp.ne.s32.totalorder %s217, %s218
    %p232 = scmp.eq.s32.totalorder %s22, 1
    %p233 = por %p231, %p232
    %p235 = scmp.ne.s32.totalorder %s218, %s234
    %p236 = scmp.eq.s32.totalorder %s22, 0
    %p237 = por %p235, %p236
    %s238 = ssub.s32 %s16, %s23
    %p239 = scmp.eq.s32.totalorder %s238, 0
    %s241 = sadd.s32 %s240, 1
    %s242 = scalar_select %p239, %s240, %s241
    %p245 = pneg %p239
    %p246 = scmp.eq.s32.totalorder %s16, 1
    %p247 = por %p245, %p246
    %p248 = scmp.ne.s32.totalorder %s240, %s243
    %p249 = scmp.eq.s32.totalorder %s16, 0
    %p250 = por %p248, %p249
    %p251 = scmp.ne.s32.totalorder %s240, %s243
    %p252 = scmp.eq.s32.totalorder %s21, 1
    %p253 = por %p251, %p252
    %p254 = scmp.ne.s32.totalorder %s243, %s244
    %p255 = scmp.eq.s32.totalorder %s21, 0
    %p256 = por %p254, %p255
    %p257 = scmp.ne.s32.totalorder %s243, %s244
    %p258 = scmp.eq.s32.totalorder %s22, 1
    %p259 = por %p257, %p258
    %p261 = scmp.ne.s32.totalorder %s244, %s260
    %p262 = scmp.eq.s32.totalorder %s22, 0
    %p263 = por %p261, %p262
    %p264 = scmp.le.s32.totalorder 1, %s16
    %p265 = scmp.lt.s32.totalorder %s16, 3
    %p266 = pnand %p264, %p265
    %p267 = pneg %p266
    // Predicated region
    $region9: #{single_layer_directed_gcn_encoder.2} parent=5 // pred_check
      _
    $region10: #{single_layer_directed_gcn_encoder.2} parent=5 // pred_check_branch
      %269 = sbr.rel (%p266) target = $region12
    $region11: #{single_layer_directed_gcn_encoder.2} parent=5 // pred_region
      %s270 = ssub.s32 %s16, 1
      // Predicated region
      $region13: #{single_layer_directed_gcn_encoder.2} parent=11 // pred_check
        %p271 = pneg %p89
      $region14: #{single_layer_directed_gcn_encoder.2} parent=11 // pred_check_branch
        %273 = sbr.rel (%p271) target = $region16
      $region15: #{single_layer_directed_gcn_encoder.2} parent=11 // pred_region
        _
      $region16: #{single_layer_directed_gcn_encoder.2} parent=11 // pred_fallthru
        _
      // Predicated region
      $region17: #{single_layer_directed_gcn_encoder.2} parent=11 // pred_check
        %p274 = pneg %p110
      $region18: #{single_layer_directed_gcn_encoder.2} parent=11 // pred_check_branch
        %276 = sbr.rel (%p274) target = $region20
      $region19: #{single_layer_directed_gcn_encoder.2} parent=11 // pred_region
        _
      $region20: #{single_layer_directed_gcn_encoder.2} parent=11 // pred_fallthru
        _
      // Predicated region
      $region21: #{single_layer_directed_gcn_encoder.2} parent=11 // pred_check
        %p277 = pneg %p131
      $region22: #{single_layer_directed_gcn_encoder.2} parent=11 // pred_check_branch
        %279 = sbr.rel (%p277) target = $region24
      $region23: #{single_layer_directed_gcn_encoder.2} parent=11 // pred_region
        _
      $region24: #{single_layer_directed_gcn_encoder.2} parent=11 // pred_fallthru
        _
      // Predicated region
      $region25: #{single_layer_directed_gcn_encoder.2} parent=11 // pred_check
        %p280 = pneg %p152
      $region26: #{single_layer_directed_gcn_encoder.2} parent=11 // pred_check_branch
        %282 = sbr.rel (%p280) target = $region28
      $region27: #{single_layer_directed_gcn_encoder.2} parent=11 // pred_region
        _
      $region28: #{single_layer_directed_gcn_encoder.2} parent=11 // pred_fallthru
        _
    $region12: #{single_layer_directed_gcn_encoder.2} parent=5 // pred_fallthru
      _
    %p283 = scmp.lt.s32.totalorder %s16, 2
    // Predicated region
    $region29: #{single_layer_directed_gcn_encoder.2} parent=5 // pred_check
      %p284 = pneg %p283
    $region30: #{single_layer_directed_gcn_encoder.2} parent=5 // pred_check_branch
      %286 = sbr.rel (%p284) target = $region32
    $region31: #{single_layer_directed_gcn_encoder.2} parent=5 // pred_region
      // Predicated region
      $region33: #{single_layer_directed_gcn_encoder.2} parent=31 // pred_check
        %p287 = pneg %p36
      $region34: #{single_layer_directed_gcn_encoder.2} parent=31 // pred_check_branch
        %289 = sbr.rel (%p287) target = $region36
      $region35: #{single_layer_directed_gcn_encoder.2} parent=31 // pred_region
        %s290 = smul.u32 32, %s16
        %p291 = scmp.lt.s32.totalorder %s290, 63
        %s292 = scalar_select %p291, %s290, 63
        %s293 = smul.addr %s292, 8
        %s294 = scalar_lea.vmem %s0, %s293
        %s295 = smul.u32 32, %s16
      $region36: #{single_layer_directed_gcn_encoder.2} parent=31 // pred_fallthru
        _
      // Predicated region
      $region37: #{single_layer_directed_gcn_encoder.2} parent=31 // pred_check
        %p296 = pneg %p62
      $region38: #{single_layer_directed_gcn_encoder.2} parent=31 // pred_check_branch
        %298 = sbr.rel (%p296) target = $region40
      $region39: #{single_layer_directed_gcn_encoder.2} parent=31 // pred_region
        %s299 = smul.u32 32, %s16
        %p300 = scmp.lt.s32.totalorder %s299, 63
        %s301 = scalar_select %p300, %s299, 63
        %s302 = smul.addr %s301, 8
        %s303 = scalar_lea.vmem %s1, %s302
        %s304 = smul.u32 32, %s16
      $region40: #{single_layer_directed_gcn_encoder.2} parent=31 // pred_fallthru
        _
      // Predicated region
      $region41: #{single_layer_directed_gcn_encoder.2} parent=31 // pred_check
        %p305 = pneg %p172
      $region42: #{single_layer_directed_gcn_encoder.2} parent=31 // pred_check_branch
        %307 = sbr.rel (%p305) target = $region44
      $region43: #{single_layer_directed_gcn_encoder.2} parent=31 // pred_region
        %s308 = smul.u32 32, %s16
        %p309 = scmp.lt.s32.totalorder %s308, 63
        %s310 = scalar_select %p309, %s308, 63
        %s311 = smul.addr %s310, 8
        %s312 = scalar_lea.vmem %s6, %s311
        %s313 = smul.u32 32, %s16
      $region44: #{single_layer_directed_gcn_encoder.2} parent=31 // pred_fallthru
        _
      // Predicated region
      $region45: #{single_layer_directed_gcn_encoder.2} parent=31 // pred_check
        %p314 = pneg %p198
      $region46: #{single_layer_directed_gcn_encoder.2} parent=31 // pred_check_branch
        %316 = sbr.rel (%p314) target = $region48
      $region47: #{single_layer_directed_gcn_encoder.2} parent=31 // pred_region
        %s317 = smul.u32 32, %s16
        %p318 = scmp.lt.s32.totalorder %s317, 63
        %s319 = scalar_select %p318, %s317, 63
        %s320 = smul.addr %s319, 8
        %s321 = scalar_lea.vmem %s7, %s320
        %s322 = smul.u32 32, %s16
      $region48: #{single_layer_directed_gcn_encoder.2} parent=31 // pred_fallthru
        _
    $region32: #{single_layer_directed_gcn_encoder.2} parent=5 // pred_fallthru
      _
    %p323 = scmp.le.s32.totalorder 1, %s16
    %p324 = scmp.lt.s32.totalorder %s16, 3
    %p325 = pnand %p323, %p324
    %p326 = pneg %p325
    // Predicated region
    $region49: #{single_layer_directed_gcn_encoder.2} parent=5 // pred_check
      _
    $region50: #{single_layer_directed_gcn_encoder.2} parent=5 // pred_check_branch
      %328 = sbr.rel (%p325) target = $region52
    $region51: #{single_layer_directed_gcn_encoder.2} parent=5 // pred_region
      %s329 = ssub.s32 %s16, 1
      %s330 = smul.u32 32, %s21
      %p331 = scmp.lt.s32.totalorder %s330, 63
      %s332 = scalar_select %p331, %s330, 63
      %s333 = smul.addr %s332, 8
      %s334 = scalar_lea.vmem %s0, %s333
      %p335 = pneg %p42
      %p336 = pneg %p39
      %s337 = smul.u32 32, %s21
      %p338 = scmp.lt.s32.totalorder %s337, 63
      %s339 = scalar_select %p338, %s337, 63
      %s340 = smul.addr %s339, 8
      %s341 = scalar_lea.vmem %s1, %s340
      %p342 = pneg %p68
      %p343 = pneg %p65
      %p344 = pneg %p89
      %p345 = pneg %p86
      %p346 = pneg %p110
      %p347 = pneg %p107
      %p348 = pneg %p131
      %p349 = pneg %p128
      %p350 = pneg %p152
      %p351 = pneg %p149
      %s352 = smul.u32 32, %s21
      %p353 = scmp.lt.s32.totalorder %s352, 63
      %s354 = scalar_select %p353, %s352, 63
      %s355 = smul.addr %s354, 8
      %s356 = scalar_lea.vmem %s6, %s355
      %p357 = pneg %p178
      %p358 = pneg %p175
      %s359 = smul.u32 32, %s21
      %p360 = scmp.lt.s32.totalorder %s359, 63
      %s361 = scalar_select %p360, %s359, 63
      %s362 = smul.addr %s361, 8
      %s363 = scalar_lea.vmem %s7, %s362
      %p364 = pneg %p204
      %p365 = pneg %p201
      %p366 = pneg %p230
      %p367 = pneg %p227
      %s368 = smul.u32 32, %s21
      %p369 = scmp.lt.s32.totalorder %s368, 63
      %s370 = scalar_select %p369, %s368, 63
      %s371 = smul.addr %s370, 4
      %s372 = scalar_lea.vmem %s8, %s371
      %p373 = pneg %p256
      %p374 = pneg %p253
      %s375 = smul.u32 32, %s21
      %p376 = scmp.lt.s32.totalorder %s375, 63
      %s377 = scalar_select %p376, %s375, 63
      %s378 = smul.addr %s377, 4
      %s379 = scalar_lea.vmem %s9, %s378
      %s380 = smul.u32 32, %s21
      %p381 = scmp.lt.s32.totalorder %s380, 63
      %s382 = scalar_select %p381, %s380, 63
      %s383 = smul.addr %s382, 8
      %s384 = scalar_lea.vmem %s0, %s383
      %s385 = smul.u32 32, %s21
      %s386 = smul.u32 32, %s21
      %p387 = scmp.lt.s32.totalorder %s386, 63
      %s388 = scalar_select %p387, %s386, 63
      %s389 = smul.addr %s388, 8
      %s390 = scalar_lea.vmem %s1, %s389
      %s391 = smul.u32 32, %s21
      %s392 = smul.u32 32, %s21
      %p393 = scmp.lt.s32.totalorder %s392, 63
      %s394 = scalar_select %p393, %s392, 63
      %s395 = smul.addr %s394, 8
      %s396 = scalar_lea.vmem %s6, %s395
      %s397 = smul.u32 32, %s21
      %s398 = smul.u32 32, %s21
      %p399 = scmp.lt.s32.totalorder %s398, 63
      %s400 = scalar_select %p399, %s398, 63
      %s401 = smul.addr %s400, 8
      %s402 = scalar_lea.vmem %s7, %s401
      %s403 = smul.u32 32, %s21
      %s404 = smul.u32 32, %s21
      %p405 = scmp.lt.s32.totalorder %s404, 63
      %s406 = scalar_select %p405, %s404, 63
      %s407 = smul.addr %s406, 4
      %s408 = scalar_lea.vmem %s8, %s407
      %s409 = smul.u32 32, %s21
      %s410 = smul.u32 32, %s21
      %p411 = scmp.lt.s32.totalorder %s410, 63
      %s412 = scalar_select %p411, %s410, 63
      %s413 = smul.addr %s412, 4
      %s414 = scalar_lea.vmem %s9, %s413
      %s415 = smul.u32 32, %s21
      %v416 = vld [vmem:[%s384] sm:$0xff]
      %v417 = vld [vmem:[%s384 + $0x8] sm:$0xff]
      %v418 = vld [vmem:[%s384 + $0x10] sm:$0xff]
      %v419 = vld [vmem:[%s384 + $0x18] sm:$0xff]
      %v420 = vld [vmem:[%s384 + $0x20] sm:$0xff]
      %v421 = vld [vmem:[%s384 + $0x28] sm:$0xff]
      %v422 = vld [vmem:[%s384 + $0x30] sm:$0xff]
      %v423 = vld [vmem:[%s384 + $0x38] sm:$0xff]
      %v424 = vld [vmem:[%s384 + $0x40] sm:$0xff]
      %v425 = vld [vmem:[%s384 + $0x48] sm:$0xff]
      %v426 = vld [vmem:[%s384 + $0x50] sm:$0xff]
      %v427 = vld [vmem:[%s384 + $0x58] sm:$0xff]
      %v428 = vld [vmem:[%s384 + $0x60] sm:$0xff]
      %v429 = vld [vmem:[%s384 + $0x68] sm:$0xff]
      %v430 = vld [vmem:[%s384 + $0x70] sm:$0xff]
      %v431 = vld [vmem:[%s384 + $0x78] sm:$0xff]
      %v432 = vld [vmem:[%s384 + $0x80] sm:$0xff]
      %v433 = vld [vmem:[%s384 + $0x88] sm:$0xff]
      %v434 = vld [vmem:[%s384 + $0x90] sm:$0xff]
      %v435 = vld [vmem:[%s384 + $0x98] sm:$0xff]
      %v436 = vld [vmem:[%s384 + $0xa0] sm:$0xff]
      %v437 = vld [vmem:[%s384 + $0xa8] sm:$0xff]
      %v438 = vld [vmem:[%s384 + $0xb0] sm:$0xff]
      %v439 = vld [vmem:[%s384 + $0xb8] sm:$0xff]
      %v440 = vld [vmem:[%s384 + $0xc0] sm:$0xff]
      %v441 = vld [vmem:[%s384 + $0xc8] sm:$0xff]
      %v442 = vld [vmem:[%s384 + $0xd0] sm:$0xff]
      %v443 = vld [vmem:[%s384 + $0xd8] sm:$0xff]
      %v444 = vld [vmem:[%s384 + $0xe0] sm:$0xff]
      %v445 = vld [vmem:[%s384 + $0xe8] sm:$0xff]
      %v446 = vld [vmem:[%s384 + $0xf0] sm:$0xff]
      %v447 = vld [vmem:[%s384 + $0xf8] sm:$0xff]
      %v448 = vld [vmem:[%s2] sm:$0xff]
      %v449 = vld [vmem:[%s2 + $0x8] sm:$0xff]
      %v450 = vld [vmem:[%s3] sm:$0x1]
      %v452 = vperm.slane %v450, 0
      %vm454 = vcmask 130048
      %v456 = vsel %vm454, %v416, 0
      %v459 = vsel %vm454, %v417, 0
      %v462 = vsel %vm454, %v418, 0
      %v465 = vsel %vm454, %v419, 0
      %v468 = vsel %vm454, %v420, 0
      %v471 = vsel %vm454, %v421, 0
      %v474 = vsel %vm454, %v422, 0
      %v477 = vsel %vm454, %v423, 0
      %v480 = vsel %vm454, %v424, 0
      %v483 = vsel %vm454, %v425, 0
      %v486 = vsel %vm454, %v426, 0
      %v489 = vsel %vm454, %v427, 0
      %v492 = vsel %vm454, %v428, 0
      %v495 = vsel %vm454, %v429, 0
      %v498 = vsel %vm454, %v430, 0
      %v501 = vsel %vm454, %v431, 0
      %v504 = vsel %vm454, %v432, 0
      %v507 = vsel %vm454, %v433, 0
      %v510 = vsel %vm454, %v434, 0
      %v513 = vsel %vm454, %v435, 0
      %v516 = vsel %vm454, %v436, 0
      %v519 = vsel %vm454, %v437, 0
      %v522 = vsel %vm454, %v438, 0
      %v525 = vsel %vm454, %v439, 0
      %v528 = vsel %vm454, %v440, 0
      %v531 = vsel %vm454, %v441, 0
      %v534 = vsel %vm454, %v442, 0
      %v537 = vsel %vm454, %v443, 0
      %v540 = vsel %vm454, %v444, 0
      %v543 = vsel %vm454, %v445, 0
      %v546 = vsel %vm454, %v446, 0
      %v549 = vsel %vm454, %v447, 0
      %551 = vmatpush.msra.mxu0 0.0
      %552 = vmatpush.msra.mxu0 0.0
      %553 = vmatpush.msra.mxu0 0.0
      %554 = vmatpush.msra.mxu0 0.0
      %555 = vmatpush.msra.mxu0 0.0
      %556 = vmatpush.msra.mxu0 0.0
      %557 = vmatpush.msra.mxu0 0.0
      %558 = vmatpush.msra.mxu0 0.0
      %559 = vmatpush.msra.mxu0 0.0
      %560 = vmatpush.msra.mxu0 0.0
      %561 = vmatpush.msra.mxu0 0.0
      %562 = vmatpush.msra.mxu0 0.0
      %563 = vmatpush.msra.mxu0 0.0
      %564 = vmatpush.msra.mxu0 0.0
      %565 = vmatpush.msra.mxu0 %v449
      %566 = vmatpush.msra.mxu0 %v448
      %567 = vmatmul.f32.gmra.mxu0 %v456
      %v568 = vpop.f32.mrf.mxu0
      %v569 = vadd.f32 %v452, %v568
      %570 = vmatmul.f32.gmra.mxu0 %v459
      %v571 = vpop.f32.mrf.mxu0
      %v572 = vadd.f32 %v452, %v571
      %573 = vmatmul.f32.gmra.mxu0 %v462
      %v574 = vpop.f32.mrf.mxu0
      %v575 = vadd.f32 %v452, %v574
      %576 = vmatmul.f32.gmra.mxu0 %v465
      %v577 = vpop.f32.mrf.mxu0
      %v578 = vadd.f32 %v452, %v577
      %579 = vmatmul.f32.gmra.mxu0 %v468
      %v580 = vpop.f32.mrf.mxu0
      %v581 = vadd.f32 %v452, %v580
      %582 = vmatmul.f32.gmra.mxu0 %v471
      %v583 = vpop.f32.mrf.mxu0
      %v584 = vadd.f32 %v452, %v583
      %585 = vmatmul.f32.gmra.mxu0 %v474
      %v586 = vpop.f32.mrf.mxu0
      %v587 = vadd.f32 %v452, %v586
      %588 = vmatmul.f32.gmra.mxu0 %v477
      %v589 = vpop.f32.mrf.mxu0
      %v590 = vadd.f32 %v452, %v589
      %591 = vmatmul.f32.gmra.mxu0 %v480
      %v592 = vpop.f32.mrf.mxu0
      %v593 = vadd.f32 %v452, %v592
      %594 = vmatmul.f32.gmra.mxu0 %v483
      %v595 = vpop.f32.mrf.mxu0
      %v596 = vadd.f32 %v452, %v595
      %597 = vmatmul.f32.gmra.mxu0 %v486
      %v598 = vpop.f32.mrf.mxu0
      %v599 = vadd.f32 %v452, %v598
      %600 = vmatmul.f32.gmra.mxu0 %v489
      %v601 = vpop.f32.mrf.mxu0
      %v602 = vadd.f32 %v452, %v601
      %603 = vmatmul.f32.gmra.mxu0 %v492
      %v604 = vpop.f32.mrf.mxu0
      %v605 = vadd.f32 %v452, %v604
      %606 = vmatmul.f32.gmra.mxu0 %v495
      %v607 = vpop.f32.mrf.mxu0
      %v608 = vadd.f32 %v452, %v607
      %609 = vmatmul.f32.gmra.mxu0 %v498
      %v610 = vpop.f32.mrf.mxu0
      %v611 = vadd.f32 %v452, %v610
      %612 = vmatmul.f32.gmra.mxu0 %v501
      %v613 = vpop.f32.mrf.mxu0
      %v614 = vadd.f32 %v452, %v613
      %615 = vmatmul.f32.gmra.mxu0 %v504
      %v616 = vpop.f32.mrf.mxu0
      %v617 = vadd.f32 %v452, %v616
      %618 = vmatmul.f32.gmra.mxu0 %v507
      %v619 = vpop.f32.mrf.mxu0
      %v620 = vadd.f32 %v452, %v619
      %621 = vmatmul.f32.gmra.mxu0 %v510
      %v622 = vpop.f32.mrf.mxu0
      %v623 = vadd.f32 %v452, %v622
      %624 = vmatmul.f32.gmra.mxu0 %v513
      %v625 = vpop.f32.mrf.mxu0
      %v626 = vadd.f32 %v452, %v625
      %627 = vmatmul.f32.gmra.mxu0 %v516
      %v628 = vpop.f32.mrf.mxu0
      %v629 = vadd.f32 %v452, %v628
      %630 = vmatmul.f32.gmra.mxu0 %v519
      %v631 = vpop.f32.mrf.mxu0
      %v632 = vadd.f32 %v452, %v631
      %633 = vmatmul.f32.gmra.mxu0 %v522
      %v634 = vpop.f32.mrf.mxu0
      %v635 = vadd.f32 %v452, %v634
      %636 = vmatmul.f32.gmra.mxu0 %v525
      %v637 = vpop.f32.mrf.mxu0
      %v638 = vadd.f32 %v452, %v637
      %639 = vmatmul.f32.gmra.mxu0 %v528
      %v640 = vpop.f32.mrf.mxu0
      %v641 = vadd.f32 %v452, %v640
      %642 = vmatmul.f32.gmra.mxu0 %v531
      %v643 = vpop.f32.mrf.mxu0
      %v644 = vadd.f32 %v452, %v643
      %645 = vmatmul.f32.gmra.mxu0 %v534
      %v646 = vpop.f32.mrf.mxu0
      %v647 = vadd.f32 %v452, %v646
      %648 = vmatmul.f32.gmra.mxu0 %v537
      %v649 = vpop.f32.mrf.mxu0
      %v650 = vadd.f32 %v452, %v649
      %651 = vmatmul.f32.gmra.mxu0 %v540
      %v652 = vpop.f32.mrf.mxu0
      %v653 = vadd.f32 %v452, %v652
      %654 = vmatmul.f32.gmra.mxu0 %v543
      %v655 = vpop.f32.mrf.mxu0
      %v656 = vadd.f32 %v452, %v655
      %657 = vmatmul.f32.gmra.mxu0 %v546
      %v658 = vpop.f32.mrf.mxu0
      %v659 = vadd.f32 %v452, %v658
      %660 = vmatmul.f32.gmra.mxu0 %v549
      %v661 = vpop.f32.mrf.mxu0
      %v662 = vadd.f32 %v452, %v661
      %663 = vdwg.mxu0
      %v664 = vld [vmem:[%s396] sm:$0xff]
      %v665 = vld [vmem:[%s396 + $0x8] sm:$0xff]
      %v666 = vld [vmem:[%s396 + $0x10] sm:$0xff]
      %v667 = vld [vmem:[%s396 + $0x18] sm:$0xff]
      %v668 = vld [vmem:[%s396 + $0x20] sm:$0xff]
      %v669 = vld [vmem:[%s396 + $0x28] sm:$0xff]
      %v670 = vld [vmem:[%s396 + $0x30] sm:$0xff]
      %v671 = vld [vmem:[%s396 + $0x38] sm:$0xff]
      %v672 = vld [vmem:[%s396 + $0x40] sm:$0xff]
      %v673 = vld [vmem:[%s396 + $0x48] sm:$0xff]
      %v674 = vld [vmem:[%s396 + $0x50] sm:$0xff]
      %v675 = vld [vmem:[%s396 + $0x58] sm:$0xff]
      %v676 = vld [vmem:[%s396 + $0x60] sm:$0xff]
      %v677 = vld [vmem:[%s396 + $0x68] sm:$0xff]
      %v678 = vld [vmem:[%s396 + $0x70] sm:$0xff]
      %v679 = vld [vmem:[%s396 + $0x78] sm:$0xff]
      %v680 = vld [vmem:[%s396 + $0x80] sm:$0xff]
      %v681 = vld [vmem:[%s396 + $0x88] sm:$0xff]
      %v682 = vld [vmem:[%s396 + $0x90] sm:$0xff]
      %v683 = vld [vmem:[%s396 + $0x98] sm:$0xff]
      %v684 = vld [vmem:[%s396 + $0xa0] sm:$0xff]
      %v685 = vld [vmem:[%s396 + $0xa8] sm:$0xff]
      %v686 = vld [vmem:[%s396 + $0xb0] sm:$0xff]
      %v687 = vld [vmem:[%s396 + $0xb8] sm:$0xff]
      %v688 = vld [vmem:[%s396 + $0xc0] sm:$0xff]
      %v689 = vld [vmem:[%s396 + $0xc8] sm:$0xff]
      %v690 = vld [vmem:[%s396 + $0xd0] sm:$0xff]
      %v691 = vld [vmem:[%s396 + $0xd8] sm:$0xff]
      %v692 = vld [vmem:[%s396 + $0xe0] sm:$0xff]
      %v693 = vld [vmem:[%s396 + $0xe8] sm:$0xff]
      %v694 = vld [vmem:[%s396 + $0xf0] sm:$0xff]
      %v695 = vld [vmem:[%s396 + $0xf8] sm:$0xff]
      %697 = vset.pattern.permute.xlu0 0
      %698 = vperm.xlu0 %697, %v664
      %v699 = vpop.permute.xlu0 %698
      %702 = vset.pattern.permute.xlu0 0
      %703 = vperm.xlu0 %702, %v665
      %v704 = vpop.permute.xlu0 %703
      %707 = vset.pattern.permute.xlu0 0
      %708 = vperm.xlu0 %707, %v666
      %v709 = vpop.permute.xlu0 %708
      %712 = vset.pattern.permute.xlu0 0
      %713 = vperm.xlu0 %712, %v667
      %v714 = vpop.permute.xlu0 %713
      %717 = vset.pattern.permute.xlu0 0
      %718 = vperm.xlu0 %717, %v668
      %v719 = vpop.permute.xlu0 %718
      %722 = vset.pattern.permute.xlu0 0
      %723 = vperm.xlu0 %722, %v669
      %v724 = vpop.permute.xlu0 %723
      %727 = vset.pattern.permute.xlu0 0
      %728 = vperm.xlu0 %727, %v670
      %v729 = vpop.permute.xlu0 %728
      %732 = vset.pattern.permute.xlu0 0
      %733 = vperm.xlu0 %732, %v671
      %v734 = vpop.permute.xlu0 %733
      %737 = vset.pattern.permute.xlu0 0
      %738 = vperm.xlu0 %737, %v672
      %v739 = vpop.permute.xlu0 %738
      %742 = vset.pattern.permute.xlu0 0
      %743 = vperm.xlu0 %742, %v673
      %v744 = vpop.permute.xlu0 %743
      %747 = vset.pattern.permute.xlu0 0
      %748 = vperm.xlu0 %747, %v674
      %v749 = vpop.permute.xlu0 %748
      %752 = vset.pattern.permute.xlu0 0
      %753 = vperm.xlu0 %752, %v675
      %v754 = vpop.permute.xlu0 %753
      %757 = vset.pattern.permute.xlu0 0
      %758 = vperm.xlu0 %757, %v676
      %v759 = vpop.permute.xlu0 %758
      %762 = vset.pattern.permute.xlu0 0
      %763 = vperm.xlu0 %762, %v677
      %v764 = vpop.permute.xlu0 %763
      %767 = vset.pattern.permute.xlu0 0
      %768 = vperm.xlu0 %767, %v678
      %v769 = vpop.permute.xlu0 %768
      %772 = vset.pattern.permute.xlu0 0
      %773 = vperm.xlu0 %772, %v679
      %v774 = vpop.permute.xlu0 %773
      %777 = vset.pattern.permute.xlu0 0
      %778 = vperm.xlu0 %777, %v680
      %v779 = vpop.permute.xlu0 %778
      %782 = vset.pattern.permute.xlu0 0
      %783 = vperm.xlu0 %782, %v681
      %v784 = vpop.permute.xlu0 %783
      %787 = vset.pattern.permute.xlu0 0
      %788 = vperm.xlu0 %787, %v682
      %v789 = vpop.permute.xlu0 %788
      %792 = vset.pattern.permute.xlu0 0
      %793 = vperm.xlu0 %792, %v683
      %v794 = vpop.permute.xlu0 %793
      %797 = vset.pattern.permute.xlu0 0
      %798 = vperm.xlu0 %797, %v684
      %v799 = vpop.permute.xlu0 %798
      %802 = vset.pattern.permute.xlu0 0
      %803 = vperm.xlu0 %802, %v685
      %v804 = vpop.permute.xlu0 %803
      %807 = vset.pattern.permute.xlu0 0
      %808 = vperm.xlu0 %807, %v686
      %v809 = vpop.permute.xlu0 %808
      %812 = vset.pattern.permute.xlu0 0
      %813 = vperm.xlu0 %812, %v687
      %v814 = vpop.permute.xlu0 %813
      %817 = vset.pattern.permute.xlu0 0
      %818 = vperm.xlu0 %817, %v688
      %v819 = vpop.permute.xlu0 %818
      %822 = vset.pattern.permute.xlu0 0
      %823 = vperm.xlu0 %822, %v689
      %v824 = vpop.permute.xlu0 %823
      %827 = vset.pattern.permute.xlu0 0
      %828 = vperm.xlu0 %827, %v690
      %v829 = vpop.permute.xlu0 %828
      %832 = vset.pattern.permute.xlu0 0
      %833 = vperm.xlu0 %832, %v691
      %v834 = vpop.permute.xlu0 %833
      %837 = vset.pattern.permute.xlu0 0
      %838 = vperm.xlu0 %837, %v692
      %v839 = vpop.permute.xlu0 %838
      %842 = vset.pattern.permute.xlu0 0
      %843 = vperm.xlu0 %842, %v693
      %v844 = vpop.permute.xlu0 %843
      %847 = vset.pattern.permute.xlu0 0
      %848 = vperm.xlu0 %847, %v694
      %v849 = vpop.permute.xlu0 %848
      %852 = vset.pattern.permute.xlu0 0
      %853 = vperm.xlu0 %852, %v695
      %v854 = vpop.permute.xlu0 %853
      %v856 = vmul.f32 %v569, %v699
      %v857 = vmul.f32 %v572, %v704
      %v858 = vmul.f32 %v575, %v709
      %v859 = vmul.f32 %v578, %v714
      %v860 = vmul.f32 %v581, %v719
      %v861 = vmul.f32 %v584, %v724
      %v862 = vmul.f32 %v587, %v729
      %v863 = vmul.f32 %v590, %v734
      %v864 = vmul.f32 %v593, %v739
      %v865 = vmul.f32 %v596, %v744
      %v866 = vmul.f32 %v599, %v749
      %v867 = vmul.f32 %v602, %v754
      %v868 = vmul.f32 %v605, %v759
      %v869 = vmul.f32 %v608, %v764
      %v870 = vmul.f32 %v611, %v769
      %v871 = vmul.f32 %v614, %v774
      %v872 = vmul.f32 %v617, %v779
      %v873 = vmul.f32 %v620, %v784
      %v874 = vmul.f32 %v623, %v789
      %v875 = vmul.f32 %v626, %v794
      %v876 = vmul.f32 %v629, %v799
      %v877 = vmul.f32 %v632, %v804
      %v878 = vmul.f32 %v635, %v809
      %v879 = vmul.f32 %v638, %v814
      %v880 = vmul.f32 %v641, %v819
      %v881 = vmul.f32 %v644, %v824
      %v882 = vmul.f32 %v647, %v829
      %v883 = vmul.f32 %v650, %v834
      %v884 = vmul.f32 %v653, %v839
      %v885 = vmul.f32 %v656, %v844
      %v886 = vmul.f32 %v659, %v849
      %v887 = vmul.f32 %v662, %v854
      %v888 = vpack.c.bf16 %v856, %v856
      %v889 = vpack.c.bf16 %v857, %v857
      %v890 = vpack.c.bf16 %v858, %v858
      %v891 = vpack.c.bf16 %v859, %v859
      %v892 = vpack.c.bf16 %v860, %v860
      %v893 = vpack.c.bf16 %v861, %v861
      %v894 = vpack.c.bf16 %v862, %v862
      %v895 = vpack.c.bf16 %v863, %v863
      %v896 = vpack.c.bf16 %v864, %v864
      %v897 = vpack.c.bf16 %v865, %v865
      %v898 = vpack.c.bf16 %v866, %v866
      %v899 = vpack.c.bf16 %v867, %v867
      %v900 = vpack.c.bf16 %v868, %v868
      %v901 = vpack.c.bf16 %v869, %v869
      %v902 = vpack.c.bf16 %v870, %v870
      %v903 = vpack.c.bf16 %v871, %v871
      %v904 = vpack.c.bf16 %v872, %v872
      %v905 = vpack.c.bf16 %v873, %v873
      %v906 = vpack.c.bf16 %v874, %v874
      %v907 = vpack.c.bf16 %v875, %v875
      %v908 = vpack.c.bf16 %v876, %v876
      %v909 = vpack.c.bf16 %v877, %v877
      %v910 = vpack.c.bf16 %v878, %v878
      %v911 = vpack.c.bf16 %v879, %v879
      %v912 = vpack.c.bf16 %v880, %v880
      %v913 = vpack.c.bf16 %v881, %v881
      %v914 = vpack.c.bf16 %v882, %v882
      %v915 = vpack.c.bf16 %v883, %v883
      %v916 = vpack.c.bf16 %v884, %v884
      %v917 = vpack.c.bf16 %v885, %v885
      %v918 = vpack.c.bf16 %v886, %v886
      %v919 = vpack.c.bf16 %v887, %v887
      %920 = vst [vmem:[%s408] sm:$0xf] %v888
      %921 = vst [vmem:[%s408 + $0x4] sm:$0xf] %v889
      %922 = vst [vmem:[%s408 + $0x8] sm:$0xf] %v890
      %923 = vst [vmem:[%s408 + $0xc] sm:$0xf] %v891
      %924 = vst [vmem:[%s408 + $0x10] sm:$0xf] %v892
      %925 = vst [vmem:[%s408 + $0x14] sm:$0xf] %v893
      %926 = vst [vmem:[%s408 + $0x18] sm:$0xf] %v894
      %927 = vst [vmem:[%s408 + $0x1c] sm:$0xf] %v895
      %928 = vst [vmem:[%s408 + $0x20] sm:$0xf] %v896
      %929 = vst [vmem:[%s408 + $0x24] sm:$0xf] %v897
      %930 = vst [vmem:[%s408 + $0x28] sm:$0xf] %v898
      %931 = vst [vmem:[%s408 + $0x2c] sm:$0xf] %v899
      %932 = vst [vmem:[%s408 + $0x30] sm:$0xf] %v900
      %933 = vst [vmem:[%s408 + $0x34] sm:$0xf] %v901
      %934 = vst [vmem:[%s408 + $0x38] sm:$0xf] %v902
      %935 = vst [vmem:[%s408 + $0x3c] sm:$0xf] %v903
      %936 = vst [vmem:[%s408 + $0x40] sm:$0xf] %v904
      %937 = vst [vmem:[%s408 + $0x44] sm:$0xf] %v905
      %938 = vst [vmem:[%s408 + $0x48] sm:$0xf] %v906
      %939 = vst [vmem:[%s408 + $0x4c] sm:$0xf] %v907
      %940 = vst [vmem:[%s408 + $0x50] sm:$0xf] %v908
      %941 = vst [vmem:[%s408 + $0x54] sm:$0xf] %v909
      %942 = vst [vmem:[%s408 + $0x58] sm:$0xf] %v910
      %943 = vst [vmem:[%s408 + $0x5c] sm:$0xf] %v911
      %944 = vst [vmem:[%s408 + $0x60] sm:$0xf] %v912
      %945 = vst [vmem:[%s408 + $0x64] sm:$0xf] %v913
      %946 = vst [vmem:[%s408 + $0x68] sm:$0xf] %v914
      %947 = vst [vmem:[%s408 + $0x6c] sm:$0xf] %v915
      %948 = vst [vmem:[%s408 + $0x70] sm:$0xf] %v916
      %949 = vst [vmem:[%s408 + $0x74] sm:$0xf] %v917
      %950 = vst [vmem:[%s408 + $0x78] sm:$0xf] %v918
      %951 = vst [vmem:[%s408 + $0x7c] sm:$0xf] %v919
      %v952 = vld [vmem:[%s390] sm:$0xff]
      %v953 = vld [vmem:[%s390 + $0x8] sm:$0xff]
      %v954 = vld [vmem:[%s390 + $0x10] sm:$0xff]
      %v955 = vld [vmem:[%s390 + $0x18] sm:$0xff]
      %v956 = vld [vmem:[%s390 + $0x20] sm:$0xff]
      %v957 = vld [vmem:[%s390 + $0x28] sm:$0xff]
      %v958 = vld [vmem:[%s390 + $0x30] sm:$0xff]
      %v959 = vld [vmem:[%s390 + $0x38] sm:$0xff]
      %v960 = vld [vmem:[%s390 + $0x40] sm:$0xff]
      %v961 = vld [vmem:[%s390 + $0x48] sm:$0xff]
      %v962 = vld [vmem:[%s390 + $0x50] sm:$0xff]
      %v963 = vld [vmem:[%s390 + $0x58] sm:$0xff]
      %v964 = vld [vmem:[%s390 + $0x60] sm:$0xff]
      %v965 = vld [vmem:[%s390 + $0x68] sm:$0xff]
      %v966 = vld [vmem:[%s390 + $0x70] sm:$0xff]
      %v967 = vld [vmem:[%s390 + $0x78] sm:$0xff]
      %v968 = vld [vmem:[%s390 + $0x80] sm:$0xff]
      %v969 = vld [vmem:[%s390 + $0x88] sm:$0xff]
      %v970 = vld [vmem:[%s390 + $0x90] sm:$0xff]
      %v971 = vld [vmem:[%s390 + $0x98] sm:$0xff]
      %v972 = vld [vmem:[%s390 + $0xa0] sm:$0xff]
      %v973 = vld [vmem:[%s390 + $0xa8] sm:$0xff]
      %v974 = vld [vmem:[%s390 + $0xb0] sm:$0xff]
      %v975 = vld [vmem:[%s390 + $0xb8] sm:$0xff]
      %v976 = vld [vmem:[%s390 + $0xc0] sm:$0xff]
      %v977 = vld [vmem:[%s390 + $0xc8] sm:$0xff]
      %v978 = vld [vmem:[%s390 + $0xd0] sm:$0xff]
      %v979 = vld [vmem:[%s390 + $0xd8] sm:$0xff]
      %v980 = vld [vmem:[%s390 + $0xe0] sm:$0xff]
      %v981 = vld [vmem:[%s390 + $0xe8] sm:$0xff]
      %v982 = vld [vmem:[%s390 + $0xf0] sm:$0xff]
      %v983 = vld [vmem:[%s390 + $0xf8] sm:$0xff]
      %v984 = vld [vmem:[%s4] sm:$0xff]
      %v985 = vld [vmem:[%s4 + $0x8] sm:$0xff]
      %v986 = vld [vmem:[%s5] sm:$0x1]
      %v988 = vperm.slane %v986, 0
      %v991 = vsel %vm454, %v952, 0
      %v994 = vsel %vm454, %v953, 0
      %v997 = vsel %vm454, %v954, 0
      %v1000 = vsel %vm454, %v955, 0
      %v1003 = vsel %vm454, %v956, 0
      %v1006 = vsel %vm454, %v957, 0
      %v1009 = vsel %vm454, %v958, 0
      %v1012 = vsel %vm454, %v959, 0
      %v1015 = vsel %vm454, %v960, 0
      %v1018 = vsel %vm454, %v961, 0
      %v1021 = vsel %vm454, %v962, 0
      %v1024 = vsel %vm454, %v963, 0
      %v1027 = vsel %vm454, %v964, 0
      %v1030 = vsel %vm454, %v965, 0
      %v1033 = vsel %vm454, %v966, 0
      %v1036 = vsel %vm454, %v967, 0
      %v1039 = vsel %vm454, %v968, 0
      %v1042 = vsel %vm454, %v969, 0
      %v1045 = vsel %vm454, %v970, 0
      %v1048 = vsel %vm454, %v971, 0
      %v1051 = vsel %vm454, %v972, 0
      %v1054 = vsel %vm454, %v973, 0
      %v1057 = vsel %vm454, %v974, 0
      %v1060 = vsel %vm454, %v975, 0
      %v1063 = vsel %vm454, %v976, 0
      %v1066 = vsel %vm454, %v977, 0
      %v1069 = vsel %vm454, %v978, 0
      %v1072 = vsel %vm454, %v979, 0
      %v1075 = vsel %vm454, %v980, 0
      %v1078 = vsel %vm454, %v981, 0
      %v1081 = vsel %vm454, %v982, 0
      %v1084 = vsel %vm454, %v983, 0
      %1086 = vmatpush.msra.mxu0 0.0
      %1087 = vmatpush.msra.mxu0 0.0
      %1088 = vmatpush.msra.mxu0 0.0
      %1089 = vmatpush.msra.mxu0 0.0
      %1090 = vmatpush.msra.mxu0 0.0
      %1091 = vmatpush.msra.mxu0 0.0
      %1092 = vmatpush.msra.mxu0 0.0
      %1093 = vmatpush.msra.mxu0 0.0
      %1094 = vmatpush.msra.mxu0 0.0
      %1095 = vmatpush.msra.mxu0 0.0
      %1096 = vmatpush.msra.mxu0 0.0
      %1097 = vmatpush.msra.mxu0 0.0
      %1098 = vmatpush.msra.mxu0 0.0
      %1099 = vmatpush.msra.mxu0 0.0
      %1100 = vmatpush.msra.mxu0 %v985
      %1101 = vmatpush.msra.mxu0 %v984
      %1102 = vmatmul.f32.gmra.mxu0 %v991
      %v1103 = vpop.f32.mrf.mxu0
      %v1104 = vadd.f32 %v988, %v1103
      %1105 = vmatmul.f32.gmra.mxu0 %v994
      %v1106 = vpop.f32.mrf.mxu0
      %v1107 = vadd.f32 %v988, %v1106
      %1108 = vmatmul.f32.gmra.mxu0 %v997
      %v1109 = vpop.f32.mrf.mxu0
      %v1110 = vadd.f32 %v988, %v1109
      %1111 = vmatmul.f32.gmra.mxu0 %v1000
      %v1112 = vpop.f32.mrf.mxu0
      %v1113 = vadd.f32 %v988, %v1112
      %1114 = vmatmul.f32.gmra.mxu0 %v1003
      %v1115 = vpop.f32.mrf.mxu0
      %v1116 = vadd.f32 %v988, %v1115
      %1117 = vmatmul.f32.gmra.mxu0 %v1006
      %v1118 = vpop.f32.mrf.mxu0
      %v1119 = vadd.f32 %v988, %v1118
      %1120 = vmatmul.f32.gmra.mxu0 %v1009
      %v1121 = vpop.f32.mrf.mxu0
      %v1122 = vadd.f32 %v988, %v1121
      %1123 = vmatmul.f32.gmra.mxu0 %v1012
      %v1124 = vpop.f32.mrf.mxu0
      %v1125 = vadd.f32 %v988, %v1124
      %1126 = vmatmul.f32.gmra.mxu0 %v1015
      %v1127 = vpop.f32.mrf.mxu0
      %v1128 = vadd.f32 %v988, %v1127
      %1129 = vmatmul.f32.gmra.mxu0 %v1018
      %v1130 = vpop.f32.mrf.mxu0
      %v1131 = vadd.f32 %v988, %v1130
      %1132 = vmatmul.f32.gmra.mxu0 %v1021
      %v1133 = vpop.f32.mrf.mxu0
      %v1134 = vadd.f32 %v988, %v1133
      %1135 = vmatmul.f32.gmra.mxu0 %v1024
      %v1136 = vpop.f32.mrf.mxu0
      %v1137 = vadd.f32 %v988, %v1136
      %1138 = vmatmul.f32.gmra.mxu0 %v1027
      %v1139 = vpop.f32.mrf.mxu0
      %v1140 = vadd.f32 %v988, %v1139
      %1141 = vmatmul.f32.gmra.mxu0 %v1030
      %v1142 = vpop.f32.mrf.mxu0
      %v1143 = vadd.f32 %v988, %v1142
      %1144 = vmatmul.f32.gmra.mxu0 %v1033
      %v1145 = vpop.f32.mrf.mxu0
      %v1146 = vadd.f32 %v988, %v1145
      %1147 = vmatmul.f32.gmra.mxu0 %v1036
      %v1148 = vpop.f32.mrf.mxu0
      %v1149 = vadd.f32 %v988, %v1148
      %1150 = vmatmul.f32.gmra.mxu0 %v1039
      %v1151 = vpop.f32.mrf.mxu0
      %v1152 = vadd.f32 %v988, %v1151
      %1153 = vmatmul.f32.gmra.mxu0 %v1042
      %v1154 = vpop.f32.mrf.mxu0
      %v1155 = vadd.f32 %v988, %v1154
      %1156 = vmatmul.f32.gmra.mxu0 %v1045
      %v1157 = vpop.f32.mrf.mxu0
      %v1158 = vadd.f32 %v988, %v1157
      %1159 = vmatmul.f32.gmra.mxu0 %v1048
      %v1160 = vpop.f32.mrf.mxu0
      %v1161 = vadd.f32 %v988, %v1160
      %1162 = vmatmul.f32.gmra.mxu0 %v1051
      %v1163 = vpop.f32.mrf.mxu0
      %v1164 = vadd.f32 %v988, %v1163
      %1165 = vmatmul.f32.gmra.mxu0 %v1054
      %v1166 = vpop.f32.mrf.mxu0
      %v1167 = vadd.f32 %v988, %v1166
      %1168 = vmatmul.f32.gmra.mxu0 %v1057
      %v1169 = vpop.f32.mrf.mxu0
      %v1170 = vadd.f32 %v988, %v1169
      %1171 = vmatmul.f32.gmra.mxu0 %v1060
      %v1172 = vpop.f32.mrf.mxu0
      %v1173 = vadd.f32 %v988, %v1172
      %1174 = vmatmul.f32.gmra.mxu0 %v1063
      %v1175 = vpop.f32.mrf.mxu0
      %v1176 = vadd.f32 %v988, %v1175
      %1177 = vmatmul.f32.gmra.mxu0 %v1066
      %v1178 = vpop.f32.mrf.mxu0
      %v1179 = vadd.f32 %v988, %v1178
      %1180 = vmatmul.f32.gmra.mxu0 %v1069
      %v1181 = vpop.f32.mrf.mxu0
      %v1182 = vadd.f32 %v988, %v1181
      %1183 = vmatmul.f32.gmra.mxu0 %v1072
      %v1184 = vpop.f32.mrf.mxu0
      %v1185 = vadd.f32 %v988, %v1184
      %1186 = vmatmul.f32.gmra.mxu0 %v1075
      %v1187 = vpop.f32.mrf.mxu0
      %v1188 = vadd.f32 %v988, %v1187
      %1189 = vmatmul.f32.gmra.mxu0 %v1078
      %v1190 = vpop.f32.mrf.mxu0
      %v1191 = vadd.f32 %v988, %v1190
      %1192 = vmatmul.f32.gmra.mxu0 %v1081
      %v1193 = vpop.f32.mrf.mxu0
      %v1194 = vadd.f32 %v988, %v1193
      %1195 = vmatmul.f32.gmra.mxu0 %v1084
      %v1196 = vpop.f32.mrf.mxu0
      %v1197 = vadd.f32 %v988, %v1196
      %1198 = vdwg.mxu0
      %v1199 = vld [vmem:[%s402] sm:$0xff]
      %v1200 = vld [vmem:[%s402 + $0x8] sm:$0xff]
      %v1201 = vld [vmem:[%s402 + $0x10] sm:$0xff]
      %v1202 = vld [vmem:[%s402 + $0x18] sm:$0xff]
      %v1203 = vld [vmem:[%s402 + $0x20] sm:$0xff]
      %v1204 = vld [vmem:[%s402 + $0x28] sm:$0xff]
      %v1205 = vld [vmem:[%s402 + $0x30] sm:$0xff]
      %v1206 = vld [vmem:[%s402 + $0x38] sm:$0xff]
      %v1207 = vld [vmem:[%s402 + $0x40] sm:$0xff]
      %v1208 = vld [vmem:[%s402 + $0x48] sm:$0xff]
      %v1209 = vld [vmem:[%s402 + $0x50] sm:$0xff]
      %v1210 = vld [vmem:[%s402 + $0x58] sm:$0xff]
      %v1211 = vld [vmem:[%s402 + $0x60] sm:$0xff]
      %v1212 = vld [vmem:[%s402 + $0x68] sm:$0xff]
      %v1213 = vld [vmem:[%s402 + $0x70] sm:$0xff]
      %v1214 = vld [vmem:[%s402 + $0x78] sm:$0xff]
      %v1215 = vld [vmem:[%s402 + $0x80] sm:$0xff]
      %v1216 = vld [vmem:[%s402 + $0x88] sm:$0xff]
      %v1217 = vld [vmem:[%s402 + $0x90] sm:$0xff]
      %v1218 = vld [vmem:[%s402 + $0x98] sm:$0xff]
      %v1219 = vld [vmem:[%s402 + $0xa0] sm:$0xff]
      %v1220 = vld [vmem:[%s402 + $0xa8] sm:$0xff]
      %v1221 = vld [vmem:[%s402 + $0xb0] sm:$0xff]
      %v1222 = vld [vmem:[%s402 + $0xb8] sm:$0xff]
      %v1223 = vld [vmem:[%s402 + $0xc0] sm:$0xff]
      %v1224 = vld [vmem:[%s402 + $0xc8] sm:$0xff]
      %v1225 = vld [vmem:[%s402 + $0xd0] sm:$0xff]
      %v1226 = vld [vmem:[%s402 + $0xd8] sm:$0xff]
      %v1227 = vld [vmem:[%s402 + $0xe0] sm:$0xff]
      %v1228 = vld [vmem:[%s402 + $0xe8] sm:$0xff]
      %v1229 = vld [vmem:[%s402 + $0xf0] sm:$0xff]
      %v1230 = vld [vmem:[%s402 + $0xf8] sm:$0xff]
      %1232 = vset.pattern.permute.xlu0 0
      %1233 = vperm.xlu0 %1232, %v1199
      %v1234 = vpop.permute.xlu0 %1233
      %1237 = vset.pattern.permute.xlu0 0
      %1238 = vperm.xlu0 %1237, %v1200
      %v1239 = vpop.permute.xlu0 %1238
      %1242 = vset.pattern.permute.xlu0 0
      %1243 = vperm.xlu0 %1242, %v1201
      %v1244 = vpop.permute.xlu0 %1243
      %1247 = vset.pattern.permute.xlu0 0
      %1248 = vperm.xlu0 %1247, %v1202
      %v1249 = vpop.permute.xlu0 %1248
      %1252 = vset.pattern.permute.xlu0 0
      %1253 = vperm.xlu0 %1252, %v1203
      %v1254 = vpop.permute.xlu0 %1253
      %1257 = vset.pattern.permute.xlu0 0
      %1258 = vperm.xlu0 %1257, %v1204
      %v1259 = vpop.permute.xlu0 %1258
      %1262 = vset.pattern.permute.xlu0 0
      %1263 = vperm.xlu0 %1262, %v1205
      %v1264 = vpop.permute.xlu0 %1263
      %1267 = vset.pattern.permute.xlu0 0
      %1268 = vperm.xlu0 %1267, %v1206
      %v1269 = vpop.permute.xlu0 %1268
      %1272 = vset.pattern.permute.xlu0 0
      %1273 = vperm.xlu0 %1272, %v1207
      %v1274 = vpop.permute.xlu0 %1273
      %1277 = vset.pattern.permute.xlu0 0
      %1278 = vperm.xlu0 %1277, %v1208
      %v1279 = vpop.permute.xlu0 %1278
      %1282 = vset.pattern.permute.xlu0 0
      %1283 = vperm.xlu0 %1282, %v1209
      %v1284 = vpop.permute.xlu0 %1283
      %1287 = vset.pattern.permute.xlu0 0
      %1288 = vperm.xlu0 %1287, %v1210
      %v1289 = vpop.permute.xlu0 %1288
      %1292 = vset.pattern.permute.xlu0 0
      %1293 = vperm.xlu0 %1292, %v1211
      %v1294 = vpop.permute.xlu0 %1293
      %1297 = vset.pattern.permute.xlu0 0
      %1298 = vperm.xlu0 %1297, %v1212
      %v1299 = vpop.permute.xlu0 %1298
      %1302 = vset.pattern.permute.xlu0 0
      %1303 = vperm.xlu0 %1302, %v1213
      %v1304 = vpop.permute.xlu0 %1303
      %1307 = vset.pattern.permute.xlu0 0
      %1308 = vperm.xlu0 %1307, %v1214
      %v1309 = vpop.permute.xlu0 %1308
      %1312 = vset.pattern.permute.xlu0 0
      %1313 = vperm.xlu0 %1312, %v1215
      %v1314 = vpop.permute.xlu0 %1313
      %1317 = vset.pattern.permute.xlu0 0
      %1318 = vperm.xlu0 %1317, %v1216
      %v1319 = vpop.permute.xlu0 %1318
      %1322 = vset.pattern.permute.xlu0 0
      %1323 = vperm.xlu0 %1322, %v1217
      %v1324 = vpop.permute.xlu0 %1323
      %1327 = vset.pattern.permute.xlu0 0
      %1328 = vperm.xlu0 %1327, %v1218
      %v1329 = vpop.permute.xlu0 %1328
      %1332 = vset.pattern.permute.xlu0 0
      %1333 = vperm.xlu0 %1332, %v1219
      %v1334 = vpop.permute.xlu0 %1333
      %1337 = vset.pattern.permute.xlu0 0
      %1338 = vperm.xlu0 %1337, %v1220
      %v1339 = vpop.permute.xlu0 %1338
      %1342 = vset.pattern.permute.xlu0 0
      %1343 = vperm.xlu0 %1342, %v1221
      %v1344 = vpop.permute.xlu0 %1343
      %1347 = vset.pattern.permute.xlu0 0
      %1348 = vperm.xlu0 %1347, %v1222
      %v1349 = vpop.permute.xlu0 %1348
      %1352 = vset.pattern.permute.xlu0 0
      %1353 = vperm.xlu0 %1352, %v1223
      %v1354 = vpop.permute.xlu0 %1353
      %1357 = vset.pattern.permute.xlu0 0
      %1358 = vperm.xlu0 %1357, %v1224
      %v1359 = vpop.permute.xlu0 %1358
      %1362 = vset.pattern.permute.xlu0 0
      %1363 = vperm.xlu0 %1362, %v1225
      %v1364 = vpop.permute.xlu0 %1363
      %1367 = vset.pattern.permute.xlu0 0
      %1368 = vperm.xlu0 %1367, %v1226
      %v1369 = vpop.permute.xlu0 %1368
      %1372 = vset.pattern.permute.xlu0 0
      %1373 = vperm.xlu0 %1372, %v1227
      %v1374 = vpop.permute.xlu0 %1373
      %1377 = vset.pattern.permute.xlu0 0
      %1378 = vperm.xlu0 %1377, %v1228
      %v1379 = vpop.permute.xlu0 %1378
      %1382 = vset.pattern.permute.xlu0 0
      %1383 = vperm.xlu0 %1382, %v1229
      %v1384 = vpop.permute.xlu0 %1383
      %1387 = vset.pattern.permute.xlu0 0
      %1388 = vperm.xlu0 %1387, %v1230
      %v1389 = vpop.permute.xlu0 %1388
      %v1391 = vmul.f32 %v1104, %v1234
      %v1392 = vmul.f32 %v1107, %v1239
      %v1393 = vmul.f32 %v1110, %v1244
      %v1394 = vmul.f32 %v1113, %v1249
      %v1395 = vmul.f32 %v1116, %v1254
      %v1396 = vmul.f32 %v1119, %v1259
      %v1397 = vmul.f32 %v1122, %v1264
      %v1398 = vmul.f32 %v1125, %v1269
      %v1399 = vmul.f32 %v1128, %v1274
      %v1400 = vmul.f32 %v1131, %v1279
      %v1401 = vmul.f32 %v1134, %v1284
      %v1402 = vmul.f32 %v1137, %v1289
      %v1403 = vmul.f32 %v1140, %v1294
      %v1404 = vmul.f32 %v1143, %v1299
      %v1405 = vmul.f32 %v1146, %v1304
      %v1406 = vmul.f32 %v1149, %v1309
      %v1407 = vmul.f32 %v1152, %v1314
      %v1408 = vmul.f32 %v1155, %v1319
      %v1409 = vmul.f32 %v1158, %v1324
      %v1410 = vmul.f32 %v1161, %v1329
      %v1411 = vmul.f32 %v1164, %v1334
      %v1412 = vmul.f32 %v1167, %v1339
      %v1413 = vmul.f32 %v1170, %v1344
      %v1414 = vmul.f32 %v1173, %v1349
      %v1415 = vmul.f32 %v1176, %v1354
      %v1416 = vmul.f32 %v1179, %v1359
      %v1417 = vmul.f32 %v1182, %v1364
      %v1418 = vmul.f32 %v1185, %v1369
      %v1419 = vmul.f32 %v1188, %v1374
      %v1420 = vmul.f32 %v1191, %v1379
      %v1421 = vmul.f32 %v1194, %v1384
      %v1422 = vmul.f32 %v1197, %v1389
      %v1423 = vpack.c.bf16 %v1391, %v1391
      %v1424 = vpack.c.bf16 %v1392, %v1392
      %v1425 = vpack.c.bf16 %v1393, %v1393
      %v1426 = vpack.c.bf16 %v1394, %v1394
      %v1427 = vpack.c.bf16 %v1395, %v1395
      %v1428 = vpack.c.bf16 %v1396, %v1396
      %v1429 = vpack.c.bf16 %v1397, %v1397
      %v1430 = vpack.c.bf16 %v1398, %v1398
      %v1431 = vpack.c.bf16 %v1399, %v1399
      %v1432 = vpack.c.bf16 %v1400, %v1400
      %v1433 = vpack.c.bf16 %v1401, %v1401
      %v1434 = vpack.c.bf16 %v1402, %v1402
      %v1435 = vpack.c.bf16 %v1403, %v1403
      %v1436 = vpack.c.bf16 %v1404, %v1404
      %v1437 = vpack.c.bf16 %v1405, %v1405
      %v1438 = vpack.c.bf16 %v1406, %v1406
      %v1439 = vpack.c.bf16 %v1407, %v1407
      %v1440 = vpack.c.bf16 %v1408, %v1408
      %v1441 = vpack.c.bf16 %v1409, %v1409
      %v1442 = vpack.c.bf16 %v1410, %v1410
      %v1443 = vpack.c.bf16 %v1411, %v1411
      %v1444 = vpack.c.bf16 %v1412, %v1412
      %v1445 = vpack.c.bf16 %v1413, %v1413
      %v1446 = vpack.c.bf16 %v1414, %v1414
      %v1447 = vpack.c.bf16 %v1415, %v1415
      %v1448 = vpack.c.bf16 %v1416, %v1416
      %v1449 = vpack.c.bf16 %v1417, %v1417
      %v1450 = vpack.c.bf16 %v1418, %v1418
      %v1451 = vpack.c.bf16 %v1419, %v1419
      %v1452 = vpack.c.bf16 %v1420, %v1420
      %v1453 = vpack.c.bf16 %v1421, %v1421
      %v1454 = vpack.c.bf16 %v1422, %v1422
      %1455 = vst [vmem:[%s414] sm:$0xf] %v1423
      %1456 = vst [vmem:[%s414 + $0x4] sm:$0xf] %v1424
      %1457 = vst [vmem:[%s414 + $0x8] sm:$0xf] %v1425
      %1458 = vst [vmem:[%s414 + $0xc] sm:$0xf] %v1426
      %1459 = vst [vmem:[%s414 + $0x10] sm:$0xf] %v1427
      %1460 = vst [vmem:[%s414 + $0x14] sm:$0xf] %v1428
      %1461 = vst [vmem:[%s414 + $0x18] sm:$0xf] %v1429
      %1462 = vst [vmem:[%s414 + $0x1c] sm:$0xf] %v1430
      %1463 = vst [vmem:[%s414 + $0x20] sm:$0xf] %v1431
      %1464 = vst [vmem:[%s414 + $0x24] sm:$0xf] %v1432
      %1465 = vst [vmem:[%s414 + $0x28] sm:$0xf] %v1433
      %1466 = vst [vmem:[%s414 + $0x2c] sm:$0xf] %v1434
      %1467 = vst [vmem:[%s414 + $0x30] sm:$0xf] %v1435
      %1468 = vst [vmem:[%s414 + $0x34] sm:$0xf] %v1436
      %1469 = vst [vmem:[%s414 + $0x38] sm:$0xf] %v1437
      %1470 = vst [vmem:[%s414 + $0x3c] sm:$0xf] %v1438
      %1471 = vst [vmem:[%s414 + $0x40] sm:$0xf] %v1439
      %1472 = vst [vmem:[%s414 + $0x44] sm:$0xf] %v1440
      %1473 = vst [vmem:[%s414 + $0x48] sm:$0xf] %v1441
      %1474 = vst [vmem:[%s414 + $0x4c] sm:$0xf] %v1442
      %1475 = vst [vmem:[%s414 + $0x50] sm:$0xf] %v1443
      %1476 = vst [vmem:[%s414 + $0x54] sm:$0xf] %v1444
      %1477 = vst [vmem:[%s414 + $0x58] sm:$0xf] %v1445
      %1478 = vst [vmem:[%s414 + $0x5c] sm:$0xf] %v1446
      %1479 = vst [vmem:[%s414 + $0x60] sm:$0xf] %v1447
      %1480 = vst [vmem:[%s414 + $0x64] sm:$0xf] %v1448
      %1481 = vst [vmem:[%s414 + $0x68] sm:$0xf] %v1449
      %1482 = vst [vmem:[%s414 + $0x6c] sm:$0xf] %v1450
      %1483 = vst [vmem:[%s414 + $0x70] sm:$0xf] %v1451
      %1484 = vst [vmem:[%s414 + $0x74] sm:$0xf] %v1452
      %1485 = vst [vmem:[%s414 + $0x78] sm:$0xf] %v1453
      %1486 = vst [vmem:[%s414 + $0x7c] sm:$0xf] %v1454
      %s1487 = smul.u32 32, %s21
      %p1488 = scmp.lt.s32.totalorder %s1487, 63
      %s1489 = scalar_select %p1488, %s1487, 63
      %s1490 = smul.addr %s1489, 4
      %s1491 = scalar_lea.vmem %s8, %s1490
      %s1492 = smul.u32 32, %s21
      %p1493 = scmp.lt.s32.totalorder %s1492, 63
      %s1494 = scalar_select %p1493, %s1492, 63
      %s1495 = smul.addr %s1494, 4
      %s1496 = scalar_lea.vmem %s9, %s1495
      // Predicated region
      $region53: #{single_layer_directed_gcn_encoder.2} parent=51 // pred_check
        %p1497 = pneg %p227
      $region54: #{single_layer_directed_gcn_encoder.2} parent=51 // pred_check_branch
        %1499 = sbr.rel (%p1497) target = $region56
      $region55: #{single_layer_directed_gcn_encoder.2} parent=51 // pred_region
        %s1500 = smul.u32 32, %s21
      $region56: #{single_layer_directed_gcn_encoder.2} parent=51 // pred_fallthru
        _
      // Predicated region
      $region57: #{single_layer_directed_gcn_encoder.2} parent=51 // pred_check
        %p1501 = pneg %p253
      $region58: #{single_layer_directed_gcn_encoder.2} parent=51 // pred_check_branch
        %1503 = sbr.rel (%p1501) target = $region60
      $region59: #{single_layer_directed_gcn_encoder.2} parent=51 // pred_region
        %s1504 = smul.u32 32, %s21
      $region60: #{single_layer_directed_gcn_encoder.2} parent=51 // pred_fallthru
        _
    $region52: #{single_layer_directed_gcn_encoder.2} parent=5 // pred_fallthru
      _
    %p1505 = scmp.le.s32.totalorder 2, %s16
    // Predicated region
    $region61: #{single_layer_directed_gcn_encoder.2} parent=5 // pred_check
      %p1506 = pneg %p1505
    $region62: #{single_layer_directed_gcn_encoder.2} parent=5 // pred_check_branch
      %1508 = sbr.rel (%p1506) target = $region64
    $region63: #{single_layer_directed_gcn_encoder.2} parent=5 // pred_region
      %s1509 = ssub.s32 %s16, 2
      // Predicated region
      $region65: #{single_layer_directed_gcn_encoder.2} parent=63 // pred_check
        %p1510 = pneg %p233
      $region66: #{single_layer_directed_gcn_encoder.2} parent=63 // pred_check_branch
        %1512 = sbr.rel (%p1510) target = $region68
      $region67: #{single_layer_directed_gcn_encoder.2} parent=63 // pred_region
        %s1513 = smul.u32 32, %s22
        %p1514 = scmp.lt.s32.totalorder %s1513, 63
        %s1515 = scalar_select %p1514, %s1513, 63
        %s1516 = smul.addr %s1515, 4
        %s1517 = scalar_lea.vmem %s8, %s1516
      $region68: #{single_layer_directed_gcn_encoder.2} parent=63 // pred_fallthru
        _
      // Predicated region
      $region69: #{single_layer_directed_gcn_encoder.2} parent=63 // pred_check
        %p1518 = pneg %p259
      $region70: #{single_layer_directed_gcn_encoder.2} parent=63 // pred_check_branch
        %1520 = sbr.rel (%p1518) target = $region72
      $region71: #{single_layer_directed_gcn_encoder.2} parent=63 // pred_region
        %s1521 = smul.u32 32, %s22
        %p1522 = scmp.lt.s32.totalorder %s1521, 63
        %s1523 = scalar_select %p1522, %s1521, 63
        %s1524 = smul.addr %s1523, 4
        %s1525 = scalar_lea.vmem %s9, %s1524
      $region72: #{single_layer_directed_gcn_encoder.2} parent=63 // pred_fallthru
        _
    $region64: #{single_layer_directed_gcn_encoder.2} parent=5 // pred_fallthru
      _
  $region6: #{single_layer_directed_gcn_encoder.2} parent=0 // loop_footer
    %s20 = sadd.s32 1, %s16
  $region7: #{single_layer_directed_gcn_encoder.2} parent=0 // loop_footer_branch
    %15 = sbr.rel target = $region3
  $region8: #{single_layer_directed_gcn_encoder.2} parent=0 // loop_exit
    _

// kernel: single_layer_directed_gcn_encoder.3
$region0: #{single_layer_directed_gcn_encoder.3}
  #allocation0 [shape = 'u32[]', space=smem, size = 0x4, offset = 0x4, fixed_abs, tag = 'smem constant byte address 0x4 - core index']
  #allocation1 [shape = 'u32[72,128]{1,0:T(1,128)}', space=vmem, size = 0x9000, scoped, tag = 'internal scratch']
  %s0 = inlined_call_operand.vmem [shape: bf16[512,512], index: 0, kind: input, shape index: {}]
  %s1 = inlined_call_operand.vmem [shape: bf16[512,128], index: 1, kind: input, shape index: {}]
  %s2 = inlined_call_operand.vmem [shape: bf16[512,128], index: 2, kind: input, shape index: {}]
  %s3 = inlined_call_operand.vmem [shape: f32[512,1], index: 3, kind: input, shape index: {}]
  %s4 = inlined_call_operand.vmem [shape: f32[512,1], index: 4, kind: input, shape index: {}]
  %s5 = inlined_call_operand.vmem [shape: f32[512,128], index: 5, kind: output, shape index: {0}]
  %s6 = inlined_call_operand.vmem [shape: f32[2,256,128], index: 6, kind: output, shape index: {1}]
  %7 = xla_tuple %s5, %s6
  %s8 = sld [smem:[#allocation0]]
  $region123: #{single_layer_directed_gcn_encoder.3} parent=0
    _
  %s10 = ssub.s32 1, %s8
  %s11 = scalar_select 0, %s10, %s8
  $region1: #{single_layer_directed_gcn_encoder.3} parent=0
    #allocation2 [shape = 'u8[262144]{0}', space=vmem, size = 0x40000, scoped, tag = 'input window, operand 0']
    loop: start=0, step=1, limit=6
    $region2: #{single_layer_directed_gcn_encoder.3} parent=1 // loop_pre_header
      _
    $region3: #{single_layer_directed_gcn_encoder.3} parent=1 // loop_header
      %s13 = sphi 0, %s17
      %p14 = scmp.ge.s32.totalorder %s13, 6
      %s20 = sphi 0, %s32
      %s21 = sphi 0, %s28
      %s22 = sphi 0, %s20
      %s23 = sphi 0, %s21
      %s24 = sphi 0, %s22
      %s25 = sphi 0, %s23
      %s37 = sphi 0, %s39
      %s40 = sphi 0, %s37
      %s41 = sphi 0, %s40
      %s57 = sphi 0, %s41
      %s63 = sphi 0, %s65
      %s66 = sphi 0, %s63
      %s67 = sphi 0, %s66
      %s83 = sphi 0, %s67
      %s89 = sphi 0, %s91
      %s92 = sphi 0, %s89
      %s93 = sphi 0, %s92
      %s109 = sphi 0, %s93
      %s115 = sphi 0, %s117
      %s118 = sphi 0, %s115
      %s119 = sphi 0, %s118
      %s135 = sphi 0, %s119
      %s141 = sphi 0, %s143
      %s144 = sphi 0, %s141
      %s145 = sphi 0, %s144
      %s161 = sphi 0, %s145
      %s167 = sphi 0, %s169
      %s170 = sphi 0, %s167
      %s171 = sphi 0, %s170
      %s187 = sphi 0, %s171
      %s191 = sphi 0, %s191
      %s193 = sphi 0, %s191
      %s194 = sphi 0, %s193
      %s208 = sphi 0, %s194
    $region4: #{single_layer_directed_gcn_encoder.3} parent=1 // loop_header_branch
      %16 = sbr.rel (%p14) target = $region8
    $region5: #{single_layer_directed_gcn_encoder.3} parent=1 // loop_body
      %s18 = ssub.s32 %s13, 1
      %s19 = ssub.s32 %s13, 2
      %s26 = sadd.s32 1, %s21
      %p27 = scmp.ge.s32.totalorder %s26, 2
      %s28 = scalar_select %p27, 0, %s26
      %s29 = sadd.s32 1, %s20
      %s30 = scalar_select %p27, %s29, %s20
      %p31 = scmp.ge.s32.totalorder %s30, 2
      %s32 = scalar_select %p31, 0, %s30
      %s33 = ssub.s32 %s20, %s32
      %s34 = ssub.s32 %s21, %s28
      %s35 = sor.u32 %s33, %s34
      %p36 = scmp.eq.s32.totalorder %s35, 0
      %s38 = sadd.s32 %s37, 1
      %s39 = scalar_select %p36, %s37, %s38
      %p42 = pneg %p36
      %p43 = scmp.eq.s32.totalorder %s13, 3
      %p44 = por %p42, %p43
      %p45 = scmp.ne.s32.totalorder %s37, %s40
      %p46 = scmp.eq.s32.totalorder %s13, 0
      %p47 = por %p45, %p46
      %p48 = scmp.ne.s32.totalorder %s37, %s40
      %p49 = scmp.eq.s32.totalorder %s18, 3
      %p50 = por %p48, %p49
      %p51 = scmp.ne.s32.totalorder %s40, %s41
      %p52 = scmp.eq.s32.totalorder %s18, 0
      %p53 = por %p51, %p52
      %p54 = scmp.ne.s32.totalorder %s40, %s41
      %p55 = scmp.eq.s32.totalorder %s19, 3
      %p56 = por %p54, %p55
      %p58 = scmp.ne.s32.totalorder %s41, %s57
      %p59 = scmp.eq.s32.totalorder %s19, 0
      %p60 = por %p58, %p59
      %s61 = ssub.s32 %s21, %s28
      %p62 = scmp.eq.s32.totalorder %s61, 0
      %s64 = sadd.s32 %s63, 1
      %s65 = scalar_select %p62, %s63, %s64
      %p68 = pneg %p62
      %p69 = scmp.eq.s32.totalorder %s13, 3
      %p70 = por %p68, %p69
      %p71 = scmp.ne.s32.totalorder %s63, %s66
      %p72 = scmp.eq.s32.totalorder %s13, 0
      %p73 = por %p71, %p72
      %p74 = scmp.ne.s32.totalorder %s63, %s66
      %p75 = scmp.eq.s32.totalorder %s18, 3
      %p76 = por %p74, %p75
      %p77 = scmp.ne.s32.totalorder %s66, %s67
      %p78 = scmp.eq.s32.totalorder %s18, 0
      %p79 = por %p77, %p78
      %p80 = scmp.ne.s32.totalorder %s66, %s67
      %p81 = scmp.eq.s32.totalorder %s19, 3
      %p82 = por %p80, %p81
      %p84 = scmp.ne.s32.totalorder %s67, %s83
      %p85 = scmp.eq.s32.totalorder %s19, 0
      %p86 = por %p84, %p85
      %s87 = ssub.s32 %s20, %s32
      %p88 = scmp.eq.s32.totalorder %s87, 0
      %s90 = sadd.s32 %s89, 1
      %s91 = scalar_select %p88, %s89, %s90
      %p94 = pneg %p88
      %p95 = scmp.eq.s32.totalorder %s13, 3
      %p96 = por %p94, %p95
      %p97 = scmp.ne.s32.totalorder %s89, %s92
      %p98 = scmp.eq.s32.totalorder %s13, 0
      %p99 = por %p97, %p98
      %p100 = scmp.ne.s32.totalorder %s89, %s92
      %p101 = scmp.eq.s32.totalorder %s18, 3
      %p102 = por %p100, %p101
      %p103 = scmp.ne.s32.totalorder %s92, %s93
      %p104 = scmp.eq.s32.totalorder %s18, 0
      %p105 = por %p103, %p104
      %p106 = scmp.ne.s32.totalorder %s92, %s93
      %p107 = scmp.eq.s32.totalorder %s19, 3
      %p108 = por %p106, %p107
      %p110 = scmp.ne.s32.totalorder %s93, %s109
      %p111 = scmp.eq.s32.totalorder %s19, 0
      %p112 = por %p110, %p111
      %s113 = ssub.s32 %s20, %s32
      %p114 = scmp.eq.s32.totalorder %s113, 0
      %s116 = sadd.s32 %s115, 1
      %s117 = scalar_select %p114, %s115, %s116
      %p120 = pneg %p114
      %p121 = scmp.eq.s32.totalorder %s13, 3
      %p122 = por %p120, %p121
      %p123 = scmp.ne.s32.totalorder %s115, %s118
      %p124 = scmp.eq.s32.totalorder %s13, 0
      %p125 = por %p123, %p124
      %p126 = scmp.ne.s32.totalorder %s115, %s118
      %p127 = scmp.eq.s32.totalorder %s18, 3
      %p128 = por %p126, %p127
      %p129 = scmp.ne.s32.totalorder %s118, %s119
      %p130 = scmp.eq.s32.totalorder %s18, 0
      %p131 = por %p129, %p130
      %p132 = scmp.ne.s32.totalorder %s118, %s119
      %p133 = scmp.eq.s32.totalorder %s19, 3
      %p134 = por %p132, %p133
      %p136 = scmp.ne.s32.totalorder %s119, %s135
      %p137 = scmp.eq.s32.totalorder %s19, 0
      %p138 = por %p136, %p137
      %s139 = ssub.s32 %s21, %s28
      %p140 = scmp.eq.s32.totalorder %s139, 0
      %s142 = sadd.s32 %s141, 1
      %s143 = scalar_select %p140, %s141, %s142
      %p146 = pneg %p140
      %p147 = scmp.eq.s32.totalorder %s13, 3
      %p148 = por %p146, %p147
      %p149 = scmp.ne.s32.totalorder %s141, %s144
      %p150 = scmp.eq.s32.totalorder %s13, 0
      %p151 = por %p149, %p150
      %p152 = scmp.ne.s32.totalorder %s141, %s144
      %p153 = scmp.eq.s32.totalorder %s18, 3
      %p154 = por %p152, %p153
      %p155 = scmp.ne.s32.totalorder %s144, %s145
      %p156 = scmp.eq.s32.totalorder %s18, 0
      %p157 = por %p155, %p156
      %p158 = scmp.ne.s32.totalorder %s144, %s145
      %p159 = scmp.eq.s32.totalorder %s19, 3
      %p160 = por %p158, %p159
      %p162 = scmp.ne.s32.totalorder %s145, %s161
      %p163 = scmp.eq.s32.totalorder %s19, 0
      %p164 = por %p162, %p163
      %s165 = ssub.s32 %s20, %s32
      %p166 = scmp.eq.s32.totalorder %s165, 0
      %s168 = sadd.s32 %s167, 1
      %s169 = scalar_select %p166, %s167, %s168
      %p172 = pneg %p166
      %p173 = scmp.eq.s32.totalorder %s13, 3
      %p174 = por %p172, %p173
      %p175 = scmp.ne.s32.totalorder %s167, %s170
      %p176 = scmp.eq.s32.totalorder %s13, 0
      %p177 = por %p175, %p176
      %p178 = scmp.ne.s32.totalorder %s167, %s170
      %p179 = scmp.eq.s32.totalorder %s18, 3
      %p180 = por %p178, %p179
      %p181 = scmp.ne.s32.totalorder %s170, %s171
      %p182 = scmp.eq.s32.totalorder %s18, 0
      %p183 = por %p181, %p182
      %p184 = scmp.ne.s32.totalorder %s170, %s171
      %p185 = scmp.eq.s32.totalorder %s19, 3
      %p186 = por %p184, %p185
      %p188 = scmp.ne.s32.totalorder %s171, %s187
      %p189 = scmp.eq.s32.totalorder %s19, 0
      %p190 = por %p188, %p189
      %s192 = sadd.s32 %s191, 1
      %p195 = scmp.eq.s32.totalorder %s13, 3
      %p196 = scmp.ne.s32.totalorder %s191, %s193
      %p197 = scmp.eq.s32.totalorder %s13, 0
      %p198 = por %p196, %p197
      %p199 = scmp.ne.s32.totalorder %s191, %s193
      %p200 = scmp.eq.s32.totalorder %s18, 3
      %p201 = por %p199, %p200
      %p202 = scmp.ne.s32.totalorder %s193, %s194
      %p203 = scmp.eq.s32.totalorder %s18, 0
      %p204 = por %p202, %p203
      %p205 = scmp.ne.s32.totalorder %s193, %s194
      %p206 = scmp.eq.s32.totalorder %s19, 3
      %p207 = por %p205, %p206
      %p209 = scmp.ne.s32.totalorder %s194, %s208
      %p210 = scmp.eq.s32.totalorder %s19, 0
      %p211 = por %p209, %p210
      %p212 = scmp.le.s32.totalorder 1, %s13
      %p213 = scmp.lt.s32.totalorder %s13, 5
      %p214 = pnand %p212, %p213
      %p215 = pneg %p214
      // Predicated region
      $region9: #{single_layer_directed_gcn_encoder.3} parent=5 // pred_check
        _
      $region10: #{single_layer_directed_gcn_encoder.3} parent=5 // pred_check_branch
        %217 = sbr.rel (%p214) target = $region12
      $region11: #{single_layer_directed_gcn_encoder.3} parent=5 // pred_region
        %s218 = ssub.s32 %s13, 1
      $region12: #{single_layer_directed_gcn_encoder.3} parent=5 // pred_fallthru
        _
      %p219 = scmp.lt.s32.totalorder %s13, 4
      // Predicated region
      $region13: #{single_layer_directed_gcn_encoder.3} parent=5 // pred_check
        %p220 = pneg %p219
      $region14: #{single_layer_directed_gcn_encoder.3} parent=5 // pred_check_branch
        %222 = sbr.rel (%p220) target = $region16
      $region15: #{single_layer_directed_gcn_encoder.3} parent=5 // pred_region
        // Predicated region
        $region17: #{single_layer_directed_gcn_encoder.3} parent=15 // pred_check
          %p223 = pneg %p47
        $region18: #{single_layer_directed_gcn_encoder.3} parent=15 // pred_check_branch
          %225 = sbr.rel (%p223) target = $region20
        $region19: #{single_layer_directed_gcn_encoder.3} parent=15 // pred_region
          %s226 = sand.u32 %s37, 1
          %s227 = sand.u32 %s37, 1
          %s228 = smul.addr %s227, 256
          %s229 = scalar_lea.vmem [#allocation2], %s228
          %s230 = smul.u32 32, %s20
          %s231 = smul.u32 2, %s21
          %s232 = smul.addr %s230, 4
          %s233 = sadd.s32 %s231, %s232
          %s234 = smul.addr %s233, 4
          %s235 = scalar_lea.vmem %s0, %s234
          // Predicated region
          $region21: #{single_layer_directed_gcn_encoder.3} parent=19 // pred_check
            _
          $region22: #{single_layer_directed_gcn_encoder.3} parent=19 // pred_check_branch
            %237 = sbr.rel (0) target = $region24
          $region23: #{single_layer_directed_gcn_encoder.3} parent=19 // pred_region
            // Predicated region
            $region25: #{single_layer_directed_gcn_encoder.3} parent=23 // pred_check
              _
            $region26: #{single_layer_directed_gcn_encoder.3} parent=23 // pred_check_branch
              %239 = sbr.rel (0) target = $region28
            $region27: #{single_layer_directed_gcn_encoder.3} parent=23 // pred_region
              // Predicated region
              $region40: #{single_layer_directed_gcn_encoder.3} parent=27 // pred_check
                _
              $region41: #{single_layer_directed_gcn_encoder.3} parent=27 // pred_check_branch
                %317 = sbr.rel (0) target = $region43
              $region42: #{single_layer_directed_gcn_encoder.3} parent=27 // pred_region
                loop: start=0, step=1, limit=1
                $region44: #{single_layer_directed_gcn_encoder.3} parent=42 // loop_pre_header
                  _
                $region45: #{single_layer_directed_gcn_encoder.3} parent=42 // loop_header
                  %s319 = sphi 0, %s323
                  %p320 = scmp.ge.s32.totalorder %s319, 1
                  %s324 = sphi %s235, %s235
                  %s325 = sphi %s229, %s229
                $region46: #{single_layer_directed_gcn_encoder.3} parent=42 // loop_header_branch
                  %322 = sbr.rel (%p320) target = $region50
                $region47: #{single_layer_directed_gcn_encoder.3} parent=42 // loop_body
                  %v326 = vld [vmem:[%s324] sm:$0xff]
                  %327 = vst [vmem:[%s325] sm:$0xff] %v326
                  %v328 = vld [vmem:[%s324 + $0x10] sm:$0xff]
                  %329 = vst [vmem:[%s325 + $0x8] sm:$0xff] %v328
                  %v330 = vld [vmem:[%s324 + $0x20] sm:$0xff]
                  %331 = vst [vmem:[%s325 + $0x10] sm:$0xff] %v330
                  %v332 = vld [vmem:[%s324 + $0x30] sm:$0xff]
                  %333 = vst [vmem:[%s325 + $0x18] sm:$0xff] %v332
                  %v334 = vld [vmem:[%s324 + $0x40] sm:$0xff]
                  %335 = vst [vmem:[%s325 + $0x20] sm:$0xff] %v334
                  %v336 = vld [vmem:[%s324 + $0x50] sm:$0xff]
                  %337 = vst [vmem:[%s325 + $0x28] sm:$0xff] %v336
                  %v338 = vld [vmem:[%s324 + $0x60] sm:$0xff]
                  %339 = vst [vmem:[%s325 + $0x30] sm:$0xff] %v338
                  %v340 = vld [vmem:[%s324 + $0x70] sm:$0xff]
                  %341 = vst [vmem:[%s325 + $0x38] sm:$0xff] %v340
                  %v342 = vld [vmem:[%s324 + $0x80] sm:$0xff]
                  %343 = vst [vmem:[%s325 + $0x40] sm:$0xff] %v342
                  %v344 = vld [vmem:[%s324 + $0x90] sm:$0xff]
                  %345 = vst [vmem:[%s325 + $0x48] sm:$0xff] %v344
                  %v346 = vld [vmem:[%s324 + $0xa0] sm:$0xff]
                  %347 = vst [vmem:[%s325 + $0x50] sm:$0xff] %v346
                  %v348 = vld [vmem:[%s324 + $0xb0] sm:$0xff]
                  %349 = vst [vmem:[%s325 + $0x58] sm:$0xff] %v348
                  %v350 = vld [vmem:[%s324 + $0xc0] sm:$0xff]
                  %351 = vst [vmem:[%s325 + $0x60] sm:$0xff] %v350
                  %v352 = vld [vmem:[%s324 + $0xd0] sm:$0xff]
                  %353 = vst [vmem:[%s325 + $0x68] sm:$0xff] %v352
                  %v354 = vld [vmem:[%s324 + $0xe0] sm:$0xff]
                  %355 = vst [vmem:[%s325 + $0x70] sm:$0xff] %v354
                  %v356 = vld [vmem:[%s324 + $0xf0] sm:$0xff]
                  %357 = vst [vmem:[%s325 + $0x78] sm:$0xff] %v356
                  %v358 = vld [vmem:[%s324 + $0x100] sm:$0xff]
                  %359 = vst [vmem:[%s325 + $0x80] sm:$0xff] %v358
                  %v360 = vld [vmem:[%s324 + $0x110] sm:$0xff]
                  %361 = vst [vmem:[%s325 + $0x88] sm:$0xff] %v360
                  %v362 = vld [vmem:[%s324 + $0x120] sm:$0xff]
                  %363 = vst [vmem:[%s325 + $0x90] sm:$0xff] %v362
                  %v364 = vld [vmem:[%s324 + $0x130] sm:$0xff]
                  %365 = vst [vmem:[%s325 + $0x98] sm:$0xff] %v364
                  %v366 = vld [vmem:[%s324 + $0x140] sm:$0xff]
                  %367 = vst [vmem:[%s325 + $0xa0] sm:$0xff] %v366
                  %v368 = vld [vmem:[%s324 + $0x150] sm:$0xff]
                  %369 = vst [vmem:[%s325 + $0xa8] sm:$0xff] %v368
                  %v370 = vld [vmem:[%s324 + $0x160] sm:$0xff]
                  %371 = vst [vmem:[%s325 + $0xb0] sm:$0xff] %v370
                  %v372 = vld [vmem:[%s324 + $0x170] sm:$0xff]
                  %373 = vst [vmem:[%s325 + $0xb8] sm:$0xff] %v372
                  %v374 = vld [vmem:[%s324 + $0x180] sm:$0xff]
                  %375 = vst [vmem:[%s325 + $0xc0] sm:$0xff] %v374
                  %v376 = vld [vmem:[%s324 + $0x190] sm:$0xff]
                  %377 = vst [vmem:[%s325 + $0xc8] sm:$0xff] %v376
                  %v378 = vld [vmem:[%s324 + $0x1a0] sm:$0xff]
                  %379 = vst [vmem:[%s325 + $0xd0] sm:$0xff] %v378
                  %v380 = vld [vmem:[%s324 + $0x1b0] sm:$0xff]
                  %381 = vst [vmem:[%s325 + $0xd8] sm:$0xff] %v380
                  %v382 = vld [vmem:[%s324 + $0x1c0] sm:$0xff]
                  %383 = vst [vmem:[%s325 + $0xe0] sm:$0xff] %v382
                  %v384 = vld [vmem:[%s324 + $0x1d0] sm:$0xff]
                  %385 = vst [vmem:[%s325 + $0xe8] sm:$0xff] %v384
                  %v386 = vld [vmem:[%s324 + $0x1e0] sm:$0xff]
                  %387 = vst [vmem:[%s325 + $0xf0] sm:$0xff] %v386
                  %v388 = vld [vmem:[%s324 + $0x1f0] sm:$0xff]
                  %389 = vst [vmem:[%s325 + $0xf8] sm:$0xff] %v388
                $region48: #{single_layer_directed_gcn_encoder.3} parent=42 // loop_footer
                  %s323 = sadd.s32 1, %s319
                $region49: #{single_layer_directed_gcn_encoder.3} parent=42 // loop_footer_branch
                  %318 = sbr.rel target = $region45
                $region50: #{single_layer_directed_gcn_encoder.3} parent=42 // loop_exit
                  _
              $region43: #{single_layer_directed_gcn_encoder.3} parent=27 // pred_fallthru
                _
              // Predicated region
              $region51: #{single_layer_directed_gcn_encoder.3} parent=27 // pred_check
                _
              $region52: #{single_layer_directed_gcn_encoder.3} parent=27 // pred_check_branch
                %391 = sbr.rel target = $region54
              $region53: #{single_layer_directed_gcn_encoder.3} parent=27 // pred_region
                _
              $region54: #{single_layer_directed_gcn_encoder.3} parent=27 // pred_fallthru
                _
            $region28: #{single_layer_directed_gcn_encoder.3} parent=23 // pred_fallthru
              _
            // Predicated region
            $region29: #{single_layer_directed_gcn_encoder.3} parent=23 // pred_check
              _
            $region30: #{single_layer_directed_gcn_encoder.3} parent=23 // pred_check_branch
              %241 = sbr.rel target = $region32
            $region31: #{single_layer_directed_gcn_encoder.3} parent=23 // pred_region
              %s243 = ssub.s32 256, 1
              loop: start=0, step=1, limit=1
              $region33: #{single_layer_directed_gcn_encoder.3} parent=31 // loop_pre_header
                _
              $region34: #{single_layer_directed_gcn_encoder.3} parent=31 // loop_header
                %s245 = sphi 0, %s249
                %p246 = scmp.ge.s32.totalorder %s245, 1
                %s250 = sphi %s235, %s235
                %s251 = sphi %s229, %s229
              $region35: #{single_layer_directed_gcn_encoder.3} parent=31 // loop_header_branch
                %248 = sbr.rel (%p246) target = $region39
              $region36: #{single_layer_directed_gcn_encoder.3} parent=31 // loop_body
                %v252 = vld [vmem:[%s250] sm:%s243]
                %253 = vst [vmem:[%s251] sm:%s243] %v252
                %v254 = vld [vmem:[%s250 + $0x10] sm:%s243]
                %255 = vst [vmem:[%s251 + $0x8] sm:%s243] %v254
                %v256 = vld [vmem:[%s250 + $0x20] sm:%s243]
                %257 = vst [vmem:[%s251 + $0x10] sm:%s243] %v256
                %v258 = vld [vmem:[%s250 + $0x30] sm:%s243]
                %259 = vst [vmem:[%s251 + $0x18] sm:%s243] %v258
                %v260 = vld [vmem:[%s250 + $0x40] sm:%s243]
                %261 = vst [vmem:[%s251 + $0x20] sm:%s243] %v260
                %v262 = vld [vmem:[%s250 + $0x50] sm:%s243]
                %263 = vst [vmem:[%s251 + $0x28] sm:%s243] %v262
                %v264 = vld [vmem:[%s250 + $0x60] sm:%s243]
                %265 = vst [vmem:[%s251 + $0x30] sm:%s243] %v264
                %v266 = vld [vmem:[%s250 + $0x70] sm:%s243]
                %267 = vst [vmem:[%s251 + $0x38] sm:%s243] %v266
                %v268 = vld [vmem:[%s250 + $0x80] sm:%s243]
                %269 = vst [vmem:[%s251 + $0x40] sm:%s243] %v268
                %v270 = vld [vmem:[%s250 + $0x90] sm:%s243]
                %271 = vst [vmem:[%s251 + $0x48] sm:%s243] %v270
                %v272 = vld [vmem:[%s250 + $0xa0] sm:%s243]
                %273 = vst [vmem:[%s251 + $0x50] sm:%s243] %v272
                %v274 = vld [vmem:[%s250 + $0xb0] sm:%s243]
                %275 = vst [vmem:[%s251 + $0x58] sm:%s243] %v274
                %v276 = vld [vmem:[%s250 + $0xc0] sm:%s243]
                %277 = vst [vmem:[%s251 + $0x60] sm:%s243] %v276
                %v278 = vld [vmem:[%s250 + $0xd0] sm:%s243]
                %279 = vst [vmem:[%s251 + $0x68] sm:%s243] %v278
                %v280 = vld [vmem:[%s250 + $0xe0] sm:%s243]
                %281 = vst [vmem:[%s251 + $0x70] sm:%s243] %v280
                %v282 = vld [vmem:[%s250 + $0xf0] sm:%s243]
                %283 = vst [vmem:[%s251 + $0x78] sm:%s243] %v282
                %v284 = vld [vmem:[%s250 + $0x100] sm:%s243]
                %285 = vst [vmem:[%s251 + $0x80] sm:%s243] %v284
                %v286 = vld [vmem:[%s250 + $0x110] sm:%s243]
                %287 = vst [vmem:[%s251 + $0x88] sm:%s243] %v286
                %v288 = vld [vmem:[%s250 + $0x120] sm:%s243]
                %289 = vst [vmem:[%s251 + $0x90] sm:%s243] %v288
                %v290 = vld [vmem:[%s250 + $0x130] sm:%s243]
                %291 = vst [vmem:[%s251 + $0x98] sm:%s243] %v290
                %v292 = vld [vmem:[%s250 + $0x140] sm:%s243]
                %293 = vst [vmem:[%s251 + $0xa0] sm:%s243] %v292
                %v294 = vld [vmem:[%s250 + $0x150] sm:%s243]
                %295 = vst [vmem:[%s251 + $0xa8] sm:%s243] %v294
                %v296 = vld [vmem:[%s250 + $0x160] sm:%s243]
                %297 = vst [vmem:[%s251 + $0xb0] sm:%s243] %v296
                %v298 = vld [vmem:[%s250 + $0x170] sm:%s243]
                %299 = vst [vmem:[%s251 + $0xb8] sm:%s243] %v298
                %v300 = vld [vmem:[%s250 + $0x180] sm:%s243]
                %301 = vst [vmem:[%s251 + $0xc0] sm:%s243] %v300
                %v302 = vld [vmem:[%s250 + $0x190] sm:%s243]
                %303 = vst [vmem:[%s251 + $0xc8] sm:%s243] %v302
                %v304 = vld [vmem:[%s250 + $0x1a0] sm:%s243]
                %305 = vst [vmem:[%s251 + $0xd0] sm:%s243] %v304
                %v306 = vld [vmem:[%s250 + $0x1b0] sm:%s243]
                %307 = vst [vmem:[%s251 + $0xd8] sm:%s243] %v306
                %v308 = vld [vmem:[%s250 + $0x1c0] sm:%s243]
                %309 = vst [vmem:[%s251 + $0xe0] sm:%s243] %v308
                %v310 = vld [vmem:[%s250 + $0x1d0] sm:%s243]
                %311 = vst [vmem:[%s251 + $0xe8] sm:%s243] %v310
                %v312 = vld [vmem:[%s250 + $0x1e0] sm:%s243]
                %313 = vst [vmem:[%s251 + $0xf0] sm:%s243] %v312
                %v314 = vld [vmem:[%s250 + $0x1f0] sm:%s243]
                %315 = vst [vmem:[%s251 + $0xf8] sm:%s243] %v314
              $region37: #{single_layer_directed_gcn_encoder.3} parent=31 // loop_footer
                %s249 = sadd.s32 1, %s245
              $region38: #{single_layer_directed_gcn_encoder.3} parent=31 // loop_footer_branch
                %244 = sbr.rel target = $region34
              $region39: #{single_layer_directed_gcn_encoder.3} parent=31 // loop_exit
                _
            $region32: #{single_layer_directed_gcn_encoder.3} parent=23 // pred_fallthru
              _
          $region24: #{single_layer_directed_gcn_encoder.3} parent=19 // pred_fallthru
            _
          %392 = vnop
        $region20: #{single_layer_directed_gcn_encoder.3} parent=15 // pred_fallthru
          _
        // Predicated region
        $region55: #{single_layer_directed_gcn_encoder.3} parent=15 // pred_check
          %p393 = pneg %p73
        $region56: #{single_layer_directed_gcn_encoder.3} parent=15 // pred_check_branch
          %395 = sbr.rel (%p393) target = $region58
        $region57: #{single_layer_directed_gcn_encoder.3} parent=15 // pred_region
          %s396 = smul.u32 32, %s21
          %p397 = scmp.lt.s32.totalorder %s396, 63
          %s398 = scalar_select %p397, %s396, 63
          %s399 = smul.addr %s398, 4
          %s400 = scalar_lea.vmem %s1, %s399
          %s401 = smul.u32 32, %s21
        $region58: #{single_layer_directed_gcn_encoder.3} parent=15 // pred_fallthru
          _
        // Predicated region
        $region59: #{single_layer_directed_gcn_encoder.3} parent=15 // pred_check
          %p402 = pneg %p99
        $region60: #{single_layer_directed_gcn_encoder.3} parent=15 // pred_check_branch
          %404 = sbr.rel (%p402) target = $region62
        $region61: #{single_layer_directed_gcn_encoder.3} parent=15 // pred_region
          %s405 = smul.u32 32, %s20
          %p406 = scmp.lt.s32.totalorder %s405, 63
          %s407 = scalar_select %p406, %s405, 63
          %s408 = smul.addr %s407, 4
          %s409 = scalar_lea.vmem %s2, %s408
          %s410 = smul.u32 32, %s20
        $region62: #{single_layer_directed_gcn_encoder.3} parent=15 // pred_fallthru
          _
        // Predicated region
        $region63: #{single_layer_directed_gcn_encoder.3} parent=15 // pred_check
          %p411 = pneg %p125
        $region64: #{single_layer_directed_gcn_encoder.3} parent=15 // pred_check_branch
          %413 = sbr.rel (%p411) target = $region66
        $region65: #{single_layer_directed_gcn_encoder.3} parent=15 // pred_region
          %s414 = smul.u32 32, %s20
          %p415 = scmp.lt.s32.totalorder %s414, 63
          %s416 = scalar_select %p415, %s414, 63
          %s417 = smul.addr %s416, 8
          %s418 = scalar_lea.vmem %s3, %s417
          %s419 = smul.u32 32, %s20
        $region66: #{single_layer_directed_gcn_encoder.3} parent=15 // pred_fallthru
          _
        // Predicated region
        $region67: #{single_layer_directed_gcn_encoder.3} parent=15 // pred_check
          %p420 = pneg %p151
        $region68: #{single_layer_directed_gcn_encoder.3} parent=15 // pred_check_branch
          %422 = sbr.rel (%p420) target = $region70
        $region69: #{single_layer_directed_gcn_encoder.3} parent=15 // pred_region
          %s423 = smul.u32 32, %s21
          %p424 = scmp.lt.s32.totalorder %s423, 63
          %s425 = scalar_select %p424, %s423, 63
          %s426 = smul.addr %s425, 8
          %s427 = scalar_lea.vmem %s4, %s426
          %s428 = smul.u32 32, %s21
        $region70: #{single_layer_directed_gcn_encoder.3} parent=15 // pred_fallthru
          _
      $region16: #{single_layer_directed_gcn_encoder.3} parent=5 // pred_fallthru
        _
      %p429 = scmp.le.s32.totalorder 1, %s13
      %p430 = scmp.lt.s32.totalorder %s13, 5
      %p431 = pnand %p429, %p430
      %p432 = pneg %p431
      // Predicated region
      $region71: #{single_layer_directed_gcn_encoder.3} parent=5 // pred_check
        _
      $region72: #{single_layer_directed_gcn_encoder.3} parent=5 // pred_check_branch
        %434 = sbr.rel (%p431) target = $region74
      $region73: #{single_layer_directed_gcn_encoder.3} parent=5 // pred_region
        %s435 = ssub.s32 %s13, 1
        %s436 = sand.u32 %s40, 1
        %s437 = sand.u32 %s40, 1
        %s438 = smul.addr %s437, 256
        %s439 = scalar_lea.vmem [#allocation2], %s438
        // Predicated region
        $region75: #{single_layer_directed_gcn_encoder.3} parent=73 // pred_check
          %p440 = pneg %p53
        $region76: #{single_layer_directed_gcn_encoder.3} parent=73 // pred_check_branch
          %442 = sbr.rel (%p440) target = $region78
        $region77: #{single_layer_directed_gcn_encoder.3} parent=73 // pred_region
          _
        $region78: #{single_layer_directed_gcn_encoder.3} parent=73 // pred_fallthru
          _
        %s443 = sand.u32 %s40, 1
        %s444 = sand.u32 %s40, 1
        %s445 = smul.addr %s444, 256
        %s446 = scalar_lea.vmem [#allocation2], %s445
        %p447 = pneg %p53
        %p448 = pneg %p50
        %s449 = smul.u32 32, %s23
        %p450 = scmp.lt.s32.totalorder %s449, 63
        %s451 = scalar_select %p450, %s449, 63
        %s452 = smul.addr %s451, 4
        %s453 = scalar_lea.vmem %s1, %s452
        %p454 = pneg %p79
        %p455 = pneg %p76
        %s456 = smul.u32 32, %s22
        %p457 = scmp.lt.s32.totalorder %s456, 63
        %s458 = scalar_select %p457, %s456, 63
        %s459 = smul.addr %s458, 4
        %s460 = scalar_lea.vmem %s2, %s459
        %p461 = pneg %p105
        %p462 = pneg %p102
        %s463 = smul.u32 32, %s22
        %p464 = scmp.lt.s32.totalorder %s463, 63
        %s465 = scalar_select %p464, %s463, 63
        %s466 = smul.addr %s465, 8
        %s467 = scalar_lea.vmem %s3, %s466
        %p468 = pneg %p131
        %p469 = pneg %p128
        %s470 = smul.u32 32, %s23
        %p471 = scmp.lt.s32.totalorder %s470, 63
        %s472 = scalar_select %p471, %s470, 63
        %s473 = smul.addr %s472, 8
        %s474 = scalar_lea.vmem %s4, %s473
        %p475 = pneg %p157
        %p476 = pneg %p154
        %p477 = pneg %p183
        %p478 = pneg %p180
        %s479 = smul.u32 32, %s22
        %p480 = scmp.lt.s32.totalorder %s479, 63
        %s481 = scalar_select %p480, %s479, 63
        %s482 = smul.addr %s481, 8
        %s483 = scalar_lea.vmem %s5, %s482
        %p484 = pneg %p204
        %p485 = pneg %p201
        %s486 = smul.u32 32, %s22
        %s487 = smul.u32 2, %s23
        %s488 = smul.u32 32, %s23
        %p489 = scmp.lt.s32.totalorder %s488, 63
        %s490 = scalar_select %p489, %s488, 63
        %s491 = smul.addr %s490, 4
        %s492 = scalar_lea.vmem %s1, %s491
        %s493 = smul.u32 32, %s23
        %s494 = smul.u32 32, %s22
        %p495 = scmp.lt.s32.totalorder %s494, 63
        %s496 = scalar_select %p495, %s494, 63
        %s497 = smul.addr %s496, 4
        %s498 = scalar_lea.vmem %s2, %s497
        %s499 = smul.u32 32, %s22
        %s500 = smul.u32 32, %s22
        %p501 = scmp.lt.s32.totalorder %s500, 63
        %s502 = scalar_select %p501, %s500, 63
        %s503 = smul.addr %s502, 8
        %s504 = scalar_lea.vmem %s3, %s503
        %s505 = smul.u32 32, %s22
        %s506 = smul.u32 32, %s23
        %p507 = scmp.lt.s32.totalorder %s506, 63
        %s508 = scalar_select %p507, %s506, 63
        %s509 = smul.addr %s508, 8
        %s510 = scalar_lea.vmem %s4, %s509
        %s511 = smul.u32 32, %s23
        %s512 = smul.u32 32, %s22
        %p513 = scmp.lt.s32.totalorder %s512, 63
        %s514 = scalar_select %p513, %s512, 63
        %s515 = smul.addr %s514, 8
        %s516 = scalar_lea.vmem %s5, %s515
        %s517 = smul.u32 32, %s22
        %v518 = vld [vmem:[%s439] sm:$0xff]
        %v519 = vld [vmem:[%s439 + $0x8] sm:$0xff]
        %v520 = vld [vmem:[%s439 + $0x10] sm:$0xff]
        %v521 = vld [vmem:[%s439 + $0x18] sm:$0xff]
        %v522 = vld [vmem:[%s439 + $0x20] sm:$0xff]
        %v523 = vld [vmem:[%s439 + $0x28] sm:$0xff]
        %v524 = vld [vmem:[%s439 + $0x30] sm:$0xff]
        %v525 = vld [vmem:[%s439 + $0x38] sm:$0xff]
        %v526 = vld [vmem:[%s439 + $0x40] sm:$0xff]
        %v527 = vld [vmem:[%s439 + $0x48] sm:$0xff]
        %v528 = vld [vmem:[%s439 + $0x50] sm:$0xff]
        %v529 = vld [vmem:[%s439 + $0x58] sm:$0xff]
        %v530 = vld [vmem:[%s439 + $0x60] sm:$0xff]
        %v531 = vld [vmem:[%s439 + $0x68] sm:$0xff]
        %v532 = vld [vmem:[%s439 + $0x70] sm:$0xff]
        %v533 = vld [vmem:[%s439 + $0x78] sm:$0xff]
        %v534 = vld [vmem:[%s439 + $0x80] sm:$0xff]
        %v535 = vld [vmem:[%s439 + $0x88] sm:$0xff]
        %v536 = vld [vmem:[%s439 + $0x90] sm:$0xff]
        %v537 = vld [vmem:[%s439 + $0x98] sm:$0xff]
        %v538 = vld [vmem:[%s439 + $0xa0] sm:$0xff]
        %v539 = vld [vmem:[%s439 + $0xa8] sm:$0xff]
        %v540 = vld [vmem:[%s439 + $0xb0] sm:$0xff]
        %v541 = vld [vmem:[%s439 + $0xb8] sm:$0xff]
        %v542 = vld [vmem:[%s439 + $0xc0] sm:$0xff]
        %v543 = vld [vmem:[%s439 + $0xc8] sm:$0xff]
        %v544 = vld [vmem:[%s439 + $0xd0] sm:$0xff]
        %v545 = vld [vmem:[%s439 + $0xd8] sm:$0xff]
        %v546 = vld [vmem:[%s439 + $0xe0] sm:$0xff]
        %v547 = vld [vmem:[%s439 + $0xe8] sm:$0xff]
        %v548 = vld [vmem:[%s439 + $0xf0] sm:$0xff]
        %v549 = vld [vmem:[%s439 + $0xf8] sm:$0xff]
        %v550 = vld [vmem:[%s492] sm:$0xf]
        %v551 = vld [vmem:[%s492 + $0x4] sm:$0xf]
        %v552 = vld [vmem:[%s492 + $0x8] sm:$0xf]
        %v553 = vld [vmem:[%s492 + $0xc] sm:$0xf]
        %v554 = vld [vmem:[%s492 + $0x10] sm:$0xf]
        %v555 = vld [vmem:[%s492 + $0x14] sm:$0xf]
        %v556 = vld [vmem:[%s492 + $0x18] sm:$0xf]
        %v557 = vld [vmem:[%s492 + $0x1c] sm:$0xf]
        %v558 = vld [vmem:[%s492 + $0x20] sm:$0xf]
        %v559 = vld [vmem:[%s492 + $0x24] sm:$0xf]
        %v560 = vld [vmem:[%s492 + $0x28] sm:$0xf]
        %v561 = vld [vmem:[%s492 + $0x2c] sm:$0xf]
        %v562 = vld [vmem:[%s492 + $0x30] sm:$0xf]
        %v563 = vld [vmem:[%s492 + $0x34] sm:$0xf]
        %v564 = vld [vmem:[%s492 + $0x38] sm:$0xf]
        %v565 = vld [vmem:[%s492 + $0x3c] sm:$0xf]
        %v566 = vld [vmem:[%s492 + $0x40] sm:$0xf]
        %v567 = vld [vmem:[%s492 + $0x44] sm:$0xf]
        %v568 = vld [vmem:[%s492 + $0x48] sm:$0xf]
        %v569 = vld [vmem:[%s492 + $0x4c] sm:$0xf]
        %v570 = vld [vmem:[%s492 + $0x50] sm:$0xf]
        %v571 = vld [vmem:[%s492 + $0x54] sm:$0xf]
        %v572 = vld [vmem:[%s492 + $0x58] sm:$0xf]
        %v573 = vld [vmem:[%s492 + $0x5c] sm:$0xf]
        %v574 = vld [vmem:[%s492 + $0x60] sm:$0xf]
        %v575 = vld [vmem:[%s492 + $0x64] sm:$0xf]
        %v576 = vld [vmem:[%s492 + $0x68] sm:$0xf]
        %v577 = vld [vmem:[%s492 + $0x6c] sm:$0xf]
        %v578 = vld [vmem:[%s492 + $0x70] sm:$0xf]
        %v579 = vld [vmem:[%s492 + $0x74] sm:$0xf]
        %v580 = vld [vmem:[%s492 + $0x78] sm:$0xf]
        %v581 = vld [vmem:[%s492 + $0x7c] sm:$0xf]
        %v614 = vunpack.c.l.b16 %v518
        %v615 = vunpack.c.h.b16 %v518
        %v616 = vunpack.c.l.b16 %v519
        %v617 = vunpack.c.h.b16 %v519
        %v618 = vunpack.c.l.b16 %v520
        %v619 = vunpack.c.h.b16 %v520
        %v620 = vunpack.c.l.b16 %v521
        %v621 = vunpack.c.h.b16 %v521
        %v622 = vunpack.c.l.b16 %v522
        %v623 = vunpack.c.h.b16 %v522
        %v624 = vunpack.c.l.b16 %v523
        %v625 = vunpack.c.h.b16 %v523
        %v626 = vunpack.c.l.b16 %v524
        %v627 = vunpack.c.h.b16 %v524
        %v628 = vunpack.c.l.b16 %v525
        %v629 = vunpack.c.h.b16 %v525
        %v630 = vunpack.c.l.b16 %v526
        %v631 = vunpack.c.h.b16 %v526
        %v632 = vunpack.c.l.b16 %v527
        %v633 = vunpack.c.h.b16 %v527
        %v634 = vunpack.c.l.b16 %v528
        %v635 = vunpack.c.h.b16 %v528
        %v636 = vunpack.c.l.b16 %v529
        %v637 = vunpack.c.h.b16 %v529
        %v638 = vunpack.c.l.b16 %v530
        %v639 = vunpack.c.h.b16 %v530
        %v640 = vunpack.c.l.b16 %v531
        %v641 = vunpack.c.h.b16 %v531
        %v642 = vunpack.c.l.b16 %v532
        %v643 = vunpack.c.h.b16 %v532
        %v644 = vunpack.c.l.b16 %v533
        %v645 = vunpack.c.h.b16 %v533
        %v646 = vunpack.c.l.b16 %v534
        %v647 = vunpack.c.h.b16 %v534
        %v648 = vunpack.c.l.b16 %v535
        %v649 = vunpack.c.h.b16 %v535
        %v650 = vunpack.c.l.b16 %v536
        %v651 = vunpack.c.h.b16 %v536
        %v652 = vunpack.c.l.b16 %v537
        %v653 = vunpack.c.h.b16 %v537
        %v654 = vunpack.c.l.b16 %v538
        %v655 = vunpack.c.h.b16 %v538
        %v656 = vunpack.c.l.b16 %v539
        %v657 = vunpack.c.h.b16 %v539
        %v658 = vunpack.c.l.b16 %v540
        %v659 = vunpack.c.h.b16 %v540
        %v660 = vunpack.c.l.b16 %v541
        %v661 = vunpack.c.h.b16 %v541
        %v662 = vunpack.c.l.b16 %v542
        %v663 = vunpack.c.h.b16 %v542
        %v664 = vunpack.c.l.b16 %v543
        %v665 = vunpack.c.h.b16 %v543
        %v666 = vunpack.c.l.b16 %v544
        %v667 = vunpack.c.h.b16 %v544
        %v668 = vunpack.c.l.b16 %v545
        %v669 = vunpack.c.h.b16 %v545
        %v670 = vunpack.c.l.b16 %v546
        %v671 = vunpack.c.h.b16 %v546
        %v672 = vunpack.c.l.b16 %v547
        %v673 = vunpack.c.h.b16 %v547
        %v674 = vunpack.c.l.b16 %v548
        %v675 = vunpack.c.h.b16 %v548
        %v676 = vunpack.c.l.b16 %v549
        %v677 = vunpack.c.h.b16 %v549
        %v678 = vpack.c.b16 %v616, %v614
        %v679 = vpack.c.b16 %v617, %v615
        %v680 = vpack.c.b16 %v620, %v618
        %v681 = vpack.c.b16 %v621, %v619
        %v682 = vpack.c.b16 %v624, %v622
        %v683 = vpack.c.b16 %v625, %v623
        %v684 = vpack.c.b16 %v628, %v626
        %v685 = vpack.c.b16 %v629, %v627
        %v686 = vpack.c.b16 %v632, %v630
        %v687 = vpack.c.b16 %v633, %v631
        %v688 = vpack.c.b16 %v636, %v634
        %v689 = vpack.c.b16 %v637, %v635
        %v690 = vpack.c.b16 %v640, %v638
        %v691 = vpack.c.b16 %v641, %v639
        %v692 = vpack.c.b16 %v644, %v642
        %v693 = vpack.c.b16 %v645, %v643
        %v694 = vpack.c.b16 %v648, %v646
        %v695 = vpack.c.b16 %v649, %v647
        %v696 = vpack.c.b16 %v652, %v650
        %v697 = vpack.c.b16 %v653, %v651
        %v698 = vpack.c.b16 %v656, %v654
        %v699 = vpack.c.b16 %v657, %v655
        %v700 = vpack.c.b16 %v660, %v658
        %v701 = vpack.c.b16 %v661, %v659
        %v702 = vpack.c.b16 %v664, %v662
        %v703 = vpack.c.b16 %v665, %v663
        %v704 = vpack.c.b16 %v668, %v666
        %v705 = vpack.c.b16 %v669, %v667
        %v706 = vpack.c.b16 %v672, %v670
        %v707 = vpack.c.b16 %v673, %v671
        %v708 = vpack.c.b16 %v676, %v674
        %v709 = vpack.c.b16 %v677, %v675
        %v774 = vunpack.c.l.b16 %v550
        %v775 = vunpack.c.l.b16 %v551
        %v776 = vunpack.c.l.b16 %v552
        %v777 = vunpack.c.l.b16 %v553
        %v778 = vunpack.c.l.b16 %v554
        %v779 = vunpack.c.l.b16 %v555
        %v780 = vunpack.c.l.b16 %v556
        %v781 = vunpack.c.l.b16 %v557
        %v782 = vunpack.c.l.b16 %v558
        %v783 = vunpack.c.l.b16 %v559
        %v784 = vunpack.c.l.b16 %v560
        %v785 = vunpack.c.l.b16 %v561
        %v786 = vunpack.c.l.b16 %v562
        %v787 = vunpack.c.l.b16 %v563
        %v788 = vunpack.c.l.b16 %v564
        %v789 = vunpack.c.l.b16 %v565
        %v790 = vunpack.c.l.b16 %v566
        %v791 = vunpack.c.l.b16 %v567
        %v792 = vunpack.c.l.b16 %v568
        %v793 = vunpack.c.l.b16 %v569
        %v794 = vunpack.c.l.b16 %v570
        %v795 = vunpack.c.l.b16 %v571
        %v796 = vunpack.c.l.b16 %v572
        %v797 = vunpack.c.l.b16 %v573
        %v798 = vunpack.c.l.b16 %v574
        %v799 = vunpack.c.l.b16 %v575
        %v800 = vunpack.c.l.b16 %v576
        %v801 = vunpack.c.l.b16 %v577
        %v802 = vunpack.c.l.b16 %v578
        %v803 = vunpack.c.l.b16 %v579
        %v804 = vunpack.c.l.b16 %v580
        %v805 = vunpack.c.l.b16 %v581
        %v806 = vpack.c.b16 %v775, %v774
        %v807 = vpack.c.b16 %v777, %v776
        %v808 = vpack.c.b16 %v779, %v778
        %v809 = vpack.c.b16 %v781, %v780
        %v810 = vpack.c.b16 %v783, %v782
        %v811 = vpack.c.b16 %v785, %v784
        %v812 = vpack.c.b16 %v787, %v786
        %v813 = vpack.c.b16 %v789, %v788
        %v814 = vpack.c.b16 %v791, %v790
        %v815 = vpack.c.b16 %v793, %v792
        %v816 = vpack.c.b16 %v795, %v794
        %v817 = vpack.c.b16 %v797, %v796
        %v818 = vpack.c.b16 %v799, %v798
        %v819 = vpack.c.b16 %v801, %v800
        %v820 = vpack.c.b16 %v803, %v802
        %v821 = vpack.c.b16 %v805, %v804
        %838 = vmatpush.bf16.msra.mxu0 %v813
        %839 = vmatpush.bf16.msra.mxu0 %v812
        %840 = vmatpush.bf16.msra.mxu0 %v811
        %841 = vmatpush.bf16.msra.mxu0 %v810
        %842 = vmatpush.bf16.msra.mxu0 %v809
        %843 = vmatpush.bf16.msra.mxu0 %v808
        %844 = vmatpush.bf16.msra.mxu0 %v807
        %845 = vmatpush.bf16.msra.mxu0 %v806
        %846 = vmatmul.bf16.gmra.mxu0 %v678
        %v847 = vpop.f32.mrf.mxu0
        %v848 = vadd.f32 0.0, %v847
        %v849 = vpop.f32.mrf.mxu0
        %v850 = vadd.f32 0.0, %v849
        %851 = vmatmul.bf16.gmra.mxu0 %v680
        %v852 = vpop.f32.mrf.mxu0
        %v853 = vadd.f32 0.0, %v852
        %v854 = vpop.f32.mrf.mxu0
        %v855 = vadd.f32 0.0, %v854
        %856 = vmatmul.bf16.gmra.mxu0 %v682
        %v857 = vpop.f32.mrf.mxu0
        %v858 = vadd.f32 0.0, %v857
        %v859 = vpop.f32.mrf.mxu0
        %v860 = vadd.f32 0.0, %v859
        %861 = vmatmul.bf16.gmra.mxu0 %v684
        %v862 = vpop.f32.mrf.mxu0
        %v863 = vadd.f32 0.0, %v862
        %v864 = vpop.f32.mrf.mxu0
        %v865 = vadd.f32 0.0, %v864
        %866 = vmatmul.bf16.gmra.mxu0 %v686
        %v867 = vpop.f32.mrf.mxu0
        %v868 = vadd.f32 0.0, %v867
        %v869 = vpop.f32.mrf.mxu0
        %v870 = vadd.f32 0.0, %v869
        %871 = vmatmul.bf16.gmra.mxu0 %v688
        %v872 = vpop.f32.mrf.mxu0
        %v873 = vadd.f32 0.0, %v872
        %v874 = vpop.f32.mrf.mxu0
        %v875 = vadd.f32 0.0, %v874
        %876 = vmatmul.bf16.gmra.mxu0 %v690
        %v877 = vpop.f32.mrf.mxu0
        %v878 = vadd.f32 0.0, %v877
        %v879 = vpop.f32.mrf.mxu0
        %v880 = vadd.f32 0.0, %v879
        %881 = vmatmul.bf16.gmra.mxu0 %v692
        %v882 = vpop.f32.mrf.mxu0
        %v883 = vadd.f32 0.0, %v882
        %v884 = vpop.f32.mrf.mxu0
        %v885 = vadd.f32 0.0, %v884
        %886 = vmatmul.bf16.gmra.mxu0 %v694
        %v887 = vpop.f32.mrf.mxu0
        %v888 = vadd.f32 0.0, %v887
        %v889 = vpop.f32.mrf.mxu0
        %v890 = vadd.f32 0.0, %v889
        %891 = vmatmul.bf16.gmra.mxu0 %v696
        %v892 = vpop.f32.mrf.mxu0
        %v893 = vadd.f32 0.0, %v892
        %v894 = vpop.f32.mrf.mxu0
        %v895 = vadd.f32 0.0, %v894
        %896 = vmatmul.bf16.gmra.mxu0 %v698
        %v897 = vpop.f32.mrf.mxu0
        %v898 = vadd.f32 0.0, %v897
        %v899 = vpop.f32.mrf.mxu0
        %v900 = vadd.f32 0.0, %v899
        %901 = vmatmul.bf16.gmra.mxu0 %v700
        %v902 = vpop.f32.mrf.mxu0
        %v903 = vadd.f32 0.0, %v902
        %v904 = vpop.f32.mrf.mxu0
        %v905 = vadd.f32 0.0, %v904
        %906 = vmatmul.bf16.gmra.mxu0 %v702
        %v907 = vpop.f32.mrf.mxu0
        %v908 = vadd.f32 0.0, %v907
        %v909 = vpop.f32.mrf.mxu0
        %v910 = vadd.f32 0.0, %v909
        %911 = vmatmul.bf16.gmra.mxu0 %v704
        %v912 = vpop.f32.mrf.mxu0
        %v913 = vadd.f32 0.0, %v912
        %v914 = vpop.f32.mrf.mxu0
        %v915 = vadd.f32 0.0, %v914
        %916 = vmatmul.bf16.gmra.mxu0 %v706
        %v917 = vpop.f32.mrf.mxu0
        %v918 = vadd.f32 0.0, %v917
        %v919 = vpop.f32.mrf.mxu0
        %v920 = vadd.f32 0.0, %v919
        %921 = vmatmul.bf16.gmra.mxu0 %v708
        %v922 = vpop.f32.mrf.mxu0
        %v923 = vadd.f32 0.0, %v922
        %v924 = vpop.f32.mrf.mxu0
        %v925 = vadd.f32 0.0, %v924
        %926 = vdwg.mxu0
        %927 = vmatpush.bf16.msra.mxu0 %v821
        %928 = vmatpush.bf16.msra.mxu0 %v820
        %929 = vmatpush.bf16.msra.mxu0 %v819
        %930 = vmatpush.bf16.msra.mxu0 %v818
        %931 = vmatpush.bf16.msra.mxu0 %v817
        %932 = vmatpush.bf16.msra.mxu0 %v816
        %933 = vmatpush.bf16.msra.mxu0 %v815
        %934 = vmatpush.bf16.msra.mxu0 %v814
        %935 = vmatmul.bf16.gmra.mxu0 %v679
        %v936 = vpop.f32.mrf.mxu0
        %v937 = vadd.f32 %v848, %v936
        %v938 = vpop.f32.mrf.mxu0
        %v939 = vadd.f32 %v850, %v938
        %940 = vmatmul.bf16.gmra.mxu0 %v681
        %v941 = vpop.f32.mrf.mxu0
        %v942 = vadd.f32 %v853, %v941
        %v943 = vpop.f32.mrf.mxu0
        %v944 = vadd.f32 %v855, %v943
        %945 = vmatmul.bf16.gmra.mxu0 %v683
        %v946 = vpop.f32.mrf.mxu0
        %v947 = vadd.f32 %v858, %v946
        %v948 = vpop.f32.mrf.mxu0
        %v949 = vadd.f32 %v860, %v948
        %950 = vmatmul.bf16.gmra.mxu0 %v685
        %v951 = vpop.f32.mrf.mxu0
        %v952 = vadd.f32 %v863, %v951
        %v953 = vpop.f32.mrf.mxu0
        %v954 = vadd.f32 %v865, %v953
        %955 = vmatmul.bf16.gmra.mxu0 %v687
        %v956 = vpop.f32.mrf.mxu0
        %v957 = vadd.f32 %v868, %v956
        %v958 = vpop.f32.mrf.mxu0
        %v959 = vadd.f32 %v870, %v958
        %960 = vmatmul.bf16.gmra.mxu0 %v689
        %v961 = vpop.f32.mrf.mxu0
        %v962 = vadd.f32 %v873, %v961
        %v963 = vpop.f32.mrf.mxu0
        %v964 = vadd.f32 %v875, %v963
        %965 = vmatmul.bf16.gmra.mxu0 %v691
        %v966 = vpop.f32.mrf.mxu0
        %v967 = vadd.f32 %v878, %v966
        %v968 = vpop.f32.mrf.mxu0
        %v969 = vadd.f32 %v880, %v968
        %970 = vmatmul.bf16.gmra.mxu0 %v693
        %v971 = vpop.f32.mrf.mxu0
        %v972 = vadd.f32 %v883, %v971
        %v973 = vpop.f32.mrf.mxu0
        %v974 = vadd.f32 %v885, %v973
        %975 = vmatmul.bf16.gmra.mxu0 %v695
        %v976 = vpop.f32.mrf.mxu0
        %v977 = vadd.f32 %v888, %v976
        %v978 = vpop.f32.mrf.mxu0
        %v979 = vadd.f32 %v890, %v978
        %980 = vmatmul.bf16.gmra.mxu0 %v697
        %v981 = vpop.f32.mrf.mxu0
        %v982 = vadd.f32 %v893, %v981
        %v983 = vpop.f32.mrf.mxu0
        %v984 = vadd.f32 %v895, %v983
        %985 = vmatmul.bf16.gmra.mxu0 %v699
        %v986 = vpop.f32.mrf.mxu0
        %v987 = vadd.f32 %v898, %v986
        %v988 = vpop.f32.mrf.mxu0
        %v989 = vadd.f32 %v900, %v988
        %990 = vmatmul.bf16.gmra.mxu0 %v701
        %v991 = vpop.f32.mrf.mxu0
        %v992 = vadd.f32 %v903, %v991
        %v993 = vpop.f32.mrf.mxu0
        %v994 = vadd.f32 %v905, %v993
        %995 = vmatmul.bf16.gmra.mxu0 %v703
        %v996 = vpop.f32.mrf.mxu0
        %v997 = vadd.f32 %v908, %v996
        %v998 = vpop.f32.mrf.mxu0
        %v999 = vadd.f32 %v910, %v998
        %1000 = vmatmul.bf16.gmra.mxu0 %v705
        %v1001 = vpop.f32.mrf.mxu0
        %v1002 = vadd.f32 %v913, %v1001
        %v1003 = vpop.f32.mrf.mxu0
        %v1004 = vadd.f32 %v915, %v1003
        %1005 = vmatmul.bf16.gmra.mxu0 %v707
        %v1006 = vpop.f32.mrf.mxu0
        %v1007 = vadd.f32 %v918, %v1006
        %v1008 = vpop.f32.mrf.mxu0
        %v1009 = vadd.f32 %v920, %v1008
        %1010 = vmatmul.bf16.gmra.mxu0 %v709
        %v1011 = vpop.f32.mrf.mxu0
        %v1012 = vadd.f32 %v923, %v1011
        %v1013 = vpop.f32.mrf.mxu0
        %v1014 = vadd.f32 %v925, %v1013
        %1015 = vdwg.mxu0
        %p1016 = scmp.eq.s32.totalorder %s23, 0
        // Predicated region
        $region79: #{single_layer_directed_gcn_encoder.3} parent=73 // pred_check
          %p1017 = pneg %p1016
        $region80: #{single_layer_directed_gcn_encoder.3} parent=73 // pred_check_branch
          %1019 = sbr.rel (%p1017) target = $region82
        $region81: #{single_layer_directed_gcn_encoder.3} parent=73 // pred_region
          %1020 = vst [vmem:[%s516] sm:$0xff] %v937
          %1021 = vst [vmem:[%s516 + $0x8] sm:$0xff] %v939
          %1022 = vst [vmem:[%s516 + $0x10] sm:$0xff] %v942
          %1023 = vst [vmem:[%s516 + $0x18] sm:$0xff] %v944
          %1024 = vst [vmem:[%s516 + $0x20] sm:$0xff] %v947
          %1025 = vst [vmem:[%s516 + $0x28] sm:$0xff] %v949
          %1026 = vst [vmem:[%s516 + $0x30] sm:$0xff] %v952
          %1027 = vst [vmem:[%s516 + $0x38] sm:$0xff] %v954
          %1028 = vst [vmem:[%s516 + $0x40] sm:$0xff] %v957
          %1029 = vst [vmem:[%s516 + $0x48] sm:$0xff] %v959
          %1030 = vst [vmem:[%s516 + $0x50] sm:$0xff] %v962
          %1031 = vst [vmem:[%s516 + $0x58] sm:$0xff] %v964
          %1032 = vst [vmem:[%s516 + $0x60] sm:$0xff] %v967
          %1033 = vst [vmem:[%s516 + $0x68] sm:$0xff] %v969
          %1034 = vst [vmem:[%s516 + $0x70] sm:$0xff] %v972
          %1035 = vst [vmem:[%s516 + $0x78] sm:$0xff] %v974
          %1036 = vst [vmem:[%s516 + $0x80] sm:$0xff] %v977
          %1037 = vst [vmem:[%s516 + $0x88] sm:$0xff] %v979
          %1038 = vst [vmem:[%s516 + $0x90] sm:$0xff] %v982
          %1039 = vst [vmem:[%s516 + $0x98] sm:$0xff] %v984
          %1040 = vst [vmem:[%s516 + $0xa0] sm:$0xff] %v987
          %1041 = vst [vmem:[%s516 + $0xa8] sm:$0xff] %v989
          %1042 = vst [vmem:[%s516 + $0xb0] sm:$0xff] %v992
          %1043 = vst [vmem:[%s516 + $0xb8] sm:$0xff] %v994
          %1044 = vst [vmem:[%s516 + $0xc0] sm:$0xff] %v997
          %1045 = vst [vmem:[%s516 + $0xc8] sm:$0xff] %v999
          %1046 = vst [vmem:[%s516 + $0xd0] sm:$0xff] %v1002
          %1047 = vst [vmem:[%s516 + $0xd8] sm:$0xff] %v1004
          %1048 = vst [vmem:[%s516 + $0xe0] sm:$0xff] %v1007
          %1049 = vst [vmem:[%s516 + $0xe8] sm:$0xff] %v1009
          %1050 = vst [vmem:[%s516 + $0xf0] sm:$0xff] %v1012
          %1051 = vst [vmem:[%s516 + $0xf8] sm:$0xff] %v1014
        $region82: #{single_layer_directed_gcn_encoder.3} parent=73 // pred_fallthru
          _
        %p1052 = scmp.gt.s32.totalorder %s23, 0
        // Predicated region
        $region83: #{single_layer_directed_gcn_encoder.3} parent=73 // pred_check
          %p1053 = pneg %p1052
        $region84: #{single_layer_directed_gcn_encoder.3} parent=73 // pred_check_branch
          %1055 = sbr.rel (%p1053) target = $region86
        $region85: #{single_layer_directed_gcn_encoder.3} parent=73 // pred_region
          %v1056 = vld [vmem:[%s516] sm:$0xff]
          %v1057 = vld [vmem:[%s516 + $0x8] sm:$0xff]
          %v1058 = vld [vmem:[%s516 + $0x10] sm:$0xff]
          %v1059 = vld [vmem:[%s516 + $0x18] sm:$0xff]
          %v1060 = vld [vmem:[%s516 + $0x20] sm:$0xff]
          %v1061 = vld [vmem:[%s516 + $0x28] sm:$0xff]
          %v1062 = vld [vmem:[%s516 + $0x30] sm:$0xff]
          %v1063 = vld [vmem:[%s516 + $0x38] sm:$0xff]
          %v1064 = vld [vmem:[%s516 + $0x40] sm:$0xff]
          %v1065 = vld [vmem:[%s516 + $0x48] sm:$0xff]
          %v1066 = vld [vmem:[%s516 + $0x50] sm:$0xff]
          %v1067 = vld [vmem:[%s516 + $0x58] sm:$0xff]
          %v1068 = vld [vmem:[%s516 + $0x60] sm:$0xff]
          %v1069 = vld [vmem:[%s516 + $0x68] sm:$0xff]
          %v1070 = vld [vmem:[%s516 + $0x70] sm:$0xff]
          %v1071 = vld [vmem:[%s516 + $0x78] sm:$0xff]
          %v1072 = vld [vmem:[%s516 + $0x80] sm:$0xff]
          %v1073 = vld [vmem:[%s516 + $0x88] sm:$0xff]
          %v1074 = vld [vmem:[%s516 + $0x90] sm:$0xff]
          %v1075 = vld [vmem:[%s516 + $0x98] sm:$0xff]
          %v1076 = vld [vmem:[%s516 + $0xa0] sm:$0xff]
          %v1077 = vld [vmem:[%s516 + $0xa8] sm:$0xff]
          %v1078 = vld [vmem:[%s516 + $0xb0] sm:$0xff]
          %v1079 = vld [vmem:[%s516 + $0xb8] sm:$0xff]
          %v1080 = vld [vmem:[%s516 + $0xc0] sm:$0xff]
          %v1081 = vld [vmem:[%s516 + $0xc8] sm:$0xff]
          %v1082 = vld [vmem:[%s516 + $0xd0] sm:$0xff]
          %v1083 = vld [vmem:[%s516 + $0xd8] sm:$0xff]
          %v1084 = vld [vmem:[%s516 + $0xe0] sm:$0xff]
          %v1085 = vld [vmem:[%s516 + $0xe8] sm:$0xff]
          %v1086 = vld [vmem:[%s516 + $0xf0] sm:$0xff]
          %v1087 = vld [vmem:[%s516 + $0xf8] sm:$0xff]
          %v1088 = vadd.f32 %v1056, %v937
          %v1089 = vadd.f32 %v1057, %v939
          %v1090 = vadd.f32 %v1058, %v942
          %v1091 = vadd.f32 %v1059, %v944
          %v1092 = vadd.f32 %v1060, %v947
          %v1093 = vadd.f32 %v1061, %v949
          %v1094 = vadd.f32 %v1062, %v952
          %v1095 = vadd.f32 %v1063, %v954
          %v1096 = vadd.f32 %v1064, %v957
          %v1097 = vadd.f32 %v1065, %v959
          %v1098 = vadd.f32 %v1066, %v962
          %v1099 = vadd.f32 %v1067, %v964
          %v1100 = vadd.f32 %v1068, %v967
          %v1101 = vadd.f32 %v1069, %v969
          %v1102 = vadd.f32 %v1070, %v972
          %v1103 = vadd.f32 %v1071, %v974
          %v1104 = vadd.f32 %v1072, %v977
          %v1105 = vadd.f32 %v1073, %v979
          %v1106 = vadd.f32 %v1074, %v982
          %v1107 = vadd.f32 %v1075, %v984
          %v1108 = vadd.f32 %v1076, %v987
          %v1109 = vadd.f32 %v1077, %v989
          %v1110 = vadd.f32 %v1078, %v992
          %v1111 = vadd.f32 %v1079, %v994
          %v1112 = vadd.f32 %v1080, %v997
          %v1113 = vadd.f32 %v1081, %v999
          %v1114 = vadd.f32 %v1082, %v1002
          %v1115 = vadd.f32 %v1083, %v1004
          %v1116 = vadd.f32 %v1084, %v1007
          %v1117 = vadd.f32 %v1085, %v1009
          %v1118 = vadd.f32 %v1086, %v1012
          %v1119 = vadd.f32 %v1087, %v1014
          %1120 = vst [vmem:[%s516] sm:$0xff] %v1088
          %1121 = vst [vmem:[%s516 + $0x8] sm:$0xff] %v1089
          %1122 = vst [vmem:[%s516 + $0x10] sm:$0xff] %v1090
          %1123 = vst [vmem:[%s516 + $0x18] sm:$0xff] %v1091
          %1124 = vst [vmem:[%s516 + $0x20] sm:$0xff] %v1092
          %1125 = vst [vmem:[%s516 + $0x28] sm:$0xff] %v1093
          %1126 = vst [vmem:[%s516 + $0x30] sm:$0xff] %v1094
          %1127 = vst [vmem:[%s516 + $0x38] sm:$0xff] %v1095
          %1128 = vst [vmem:[%s516 + $0x40] sm:$0xff] %v1096
          %1129 = vst [vmem:[%s516 + $0x48] sm:$0xff] %v1097
          %1130 = vst [vmem:[%s516 + $0x50] sm:$0xff] %v1098
          %1131 = vst [vmem:[%s516 + $0x58] sm:$0xff] %v1099
          %1132 = vst [vmem:[%s516 + $0x60] sm:$0xff] %v1100
          %1133 = vst [vmem:[%s516 + $0x68] sm:$0xff] %v1101
          %1134 = vst [vmem:[%s516 + $0x70] sm:$0xff] %v1102
          %1135 = vst [vmem:[%s516 + $0x78] sm:$0xff] %v1103
          %1136 = vst [vmem:[%s516 + $0x80] sm:$0xff] %v1104
          %1137 = vst [vmem:[%s516 + $0x88] sm:$0xff] %v1105
          %1138 = vst [vmem:[%s516 + $0x90] sm:$0xff] %v1106
          %1139 = vst [vmem:[%s516 + $0x98] sm:$0xff] %v1107
          %1140 = vst [vmem:[%s516 + $0xa0] sm:$0xff] %v1108
          %1141 = vst [vmem:[%s516 + $0xa8] sm:$0xff] %v1109
          %1142 = vst [vmem:[%s516 + $0xb0] sm:$0xff] %v1110
          %1143 = vst [vmem:[%s516 + $0xb8] sm:$0xff] %v1111
          %1144 = vst [vmem:[%s516 + $0xc0] sm:$0xff] %v1112
          %1145 = vst [vmem:[%s516 + $0xc8] sm:$0xff] %v1113
          %1146 = vst [vmem:[%s516 + $0xd0] sm:$0xff] %v1114
          %1147 = vst [vmem:[%s516 + $0xd8] sm:$0xff] %v1115
          %1148 = vst [vmem:[%s516 + $0xe0] sm:$0xff] %v1116
          %1149 = vst [vmem:[%s516 + $0xe8] sm:$0xff] %v1117
          %1150 = vst [vmem:[%s516 + $0xf0] sm:$0xff] %v1118
          %1151 = vst [vmem:[%s516 + $0xf8] sm:$0xff] %v1119
        $region86: #{single_layer_directed_gcn_encoder.3} parent=73 // pred_fallthru
          _
        %p1152 = scmp.eq.s32.totalorder %s23, 1
        // Predicated region
        $region87: #{single_layer_directed_gcn_encoder.3} parent=73 // pred_check
          %p1153 = pneg %p1152
        $region88: #{single_layer_directed_gcn_encoder.3} parent=73 // pred_check_branch
          %1155 = sbr.rel (%p1153) target = $region90
        $region89: #{single_layer_directed_gcn_encoder.3} parent=73 // pred_region
          %v1156 = vld [vmem:[%s516] sm:$0xff]
          %v1157 = vld [vmem:[%s516 + $0x8] sm:$0xff]
          %v1158 = vld [vmem:[%s516 + $0x10] sm:$0xff]
          %v1159 = vld [vmem:[%s516 + $0x18] sm:$0xff]
          %v1160 = vld [vmem:[%s516 + $0x20] sm:$0xff]
          %v1161 = vld [vmem:[%s516 + $0x28] sm:$0xff]
          %v1162 = vld [vmem:[%s516 + $0x30] sm:$0xff]
          %v1163 = vld [vmem:[%s516 + $0x38] sm:$0xff]
          %v1164 = vld [vmem:[%s516 + $0x40] sm:$0xff]
          %v1165 = vld [vmem:[%s516 + $0x48] sm:$0xff]
          %v1166 = vld [vmem:[%s516 + $0x50] sm:$0xff]
          %v1167 = vld [vmem:[%s516 + $0x58] sm:$0xff]
          %v1168 = vld [vmem:[%s516 + $0x60] sm:$0xff]
          %v1169 = vld [vmem:[%s516 + $0x68] sm:$0xff]
          %v1170 = vld [vmem:[%s516 + $0x70] sm:$0xff]
          %v1171 = vld [vmem:[%s516 + $0x78] sm:$0xff]
          %v1172 = vld [vmem:[%s516 + $0x80] sm:$0xff]
          %v1173 = vld [vmem:[%s516 + $0x88] sm:$0xff]
          %v1174 = vld [vmem:[%s516 + $0x90] sm:$0xff]
          %v1175 = vld [vmem:[%s516 + $0x98] sm:$0xff]
          %v1176 = vld [vmem:[%s516 + $0xa0] sm:$0xff]
          %v1177 = vld [vmem:[%s516 + $0xa8] sm:$0xff]
          %v1178 = vld [vmem:[%s516 + $0xb0] sm:$0xff]
          %v1179 = vld [vmem:[%s516 + $0xb8] sm:$0xff]
          %v1180 = vld [vmem:[%s516 + $0xc0] sm:$0xff]
          %v1181 = vld [vmem:[%s516 + $0xc8] sm:$0xff]
          %v1182 = vld [vmem:[%s516 + $0xd0] sm:$0xff]
          %v1183 = vld [vmem:[%s516 + $0xd8] sm:$0xff]
          %v1184 = vld [vmem:[%s516 + $0xe0] sm:$0xff]
          %v1185 = vld [vmem:[%s516 + $0xe8] sm:$0xff]
          %v1186 = vld [vmem:[%s516 + $0xf0] sm:$0xff]
          %v1187 = vld [vmem:[%s516 + $0xf8] sm:$0xff]
          %v1188 = vld [vmem:[%s504] sm:$0xff]
          %v1189 = vld [vmem:[%s504 + $0x8] sm:$0xff]
          %v1190 = vld [vmem:[%s504 + $0x10] sm:$0xff]
          %v1191 = vld [vmem:[%s504 + $0x18] sm:$0xff]
          %v1192 = vld [vmem:[%s504 + $0x20] sm:$0xff]
          %v1193 = vld [vmem:[%s504 + $0x28] sm:$0xff]
          %v1194 = vld [vmem:[%s504 + $0x30] sm:$0xff]
          %v1195 = vld [vmem:[%s504 + $0x38] sm:$0xff]
          %v1196 = vld [vmem:[%s504 + $0x40] sm:$0xff]
          %v1197 = vld [vmem:[%s504 + $0x48] sm:$0xff]
          %v1198 = vld [vmem:[%s504 + $0x50] sm:$0xff]
          %v1199 = vld [vmem:[%s504 + $0x58] sm:$0xff]
          %v1200 = vld [vmem:[%s504 + $0x60] sm:$0xff]
          %v1201 = vld [vmem:[%s504 + $0x68] sm:$0xff]
          %v1202 = vld [vmem:[%s504 + $0x70] sm:$0xff]
          %v1203 = vld [vmem:[%s504 + $0x78] sm:$0xff]
          %v1204 = vld [vmem:[%s504 + $0x80] sm:$0xff]
          %v1205 = vld [vmem:[%s504 + $0x88] sm:$0xff]
          %v1206 = vld [vmem:[%s504 + $0x90] sm:$0xff]
          %v1207 = vld [vmem:[%s504 + $0x98] sm:$0xff]
          %v1208 = vld [vmem:[%s504 + $0xa0] sm:$0xff]
          %v1209 = vld [vmem:[%s504 + $0xa8] sm:$0xff]
          %v1210 = vld [vmem:[%s504 + $0xb0] sm:$0xff]
          %v1211 = vld [vmem:[%s504 + $0xb8] sm:$0xff]
          %v1212 = vld [vmem:[%s504 + $0xc0] sm:$0xff]
          %v1213 = vld [vmem:[%s504 + $0xc8] sm:$0xff]
          %v1214 = vld [vmem:[%s504 + $0xd0] sm:$0xff]
          %v1215 = vld [vmem:[%s504 + $0xd8] sm:$0xff]
          %v1216 = vld [vmem:[%s504 + $0xe0] sm:$0xff]
          %v1217 = vld [vmem:[%s504 + $0xe8] sm:$0xff]
          %v1218 = vld [vmem:[%s504 + $0xf0] sm:$0xff]
          %v1219 = vld [vmem:[%s504 + $0xf8] sm:$0xff]
          %1221 = vset.pattern.permute.xlu0 0
          %1222 = vperm.xlu0 %1221, %v1188
          %v1223 = vpop.permute.xlu0 %1222
          %1226 = vset.pattern.permute.xlu0 0
          %1227 = vperm.xlu0 %1226, %v1189
          %v1228 = vpop.permute.xlu0 %1227
          %1231 = vset.pattern.permute.xlu0 0
          %1232 = vperm.xlu0 %1231, %v1190
          %v1233 = vpop.permute.xlu0 %1232
          %1236 = vset.pattern.permute.xlu0 0
          %1237 = vperm.xlu0 %1236, %v1191
          %v1238 = vpop.permute.xlu0 %1237
          %1241 = vset.pattern.permute.xlu0 0
          %1242 = vperm.xlu0 %1241, %v1192
          %v1243 = vpop.permute.xlu0 %1242
          %1246 = vset.pattern.permute.xlu0 0
          %1247 = vperm.xlu0 %1246, %v1193
          %v1248 = vpop.permute.xlu0 %1247
          %1251 = vset.pattern.permute.xlu0 0
          %1252 = vperm.xlu0 %1251, %v1194
          %v1253 = vpop.permute.xlu0 %1252
          %1256 = vset.pattern.permute.xlu0 0
          %1257 = vperm.xlu0 %1256, %v1195
          %v1258 = vpop.permute.xlu0 %1257
          %1261 = vset.pattern.permute.xlu0 0
          %1262 = vperm.xlu0 %1261, %v1196
          %v1263 = vpop.permute.xlu0 %1262
          %1266 = vset.pattern.permute.xlu0 0
          %1267 = vperm.xlu0 %1266, %v1197
          %v1268 = vpop.permute.xlu0 %1267
          %1271 = vset.pattern.permute.xlu0 0
          %1272 = vperm.xlu0 %1271, %v1198
          %v1273 = vpop.permute.xlu0 %1272
          %1276 = vset.pattern.permute.xlu0 0
          %1277 = vperm.xlu0 %1276, %v1199
          %v1278 = vpop.permute.xlu0 %1277
          %1281 = vset.pattern.permute.xlu0 0
          %1282 = vperm.xlu0 %1281, %v1200
          %v1283 = vpop.permute.xlu0 %1282
          %1286 = vset.pattern.permute.xlu0 0
          %1287 = vperm.xlu0 %1286, %v1201
          %v1288 = vpop.permute.xlu0 %1287
          %1291 = vset.pattern.permute.xlu0 0
          %1292 = vperm.xlu0 %1291, %v1202
          %v1293 = vpop.permute.xlu0 %1292
          %1296 = vset.pattern.permute.xlu0 0
          %1297 = vperm.xlu0 %1296, %v1203
          %v1298 = vpop.permute.xlu0 %1297
          %1301 = vset.pattern.permute.xlu0 0
          %1302 = vperm.xlu0 %1301, %v1204
          %v1303 = vpop.permute.xlu0 %1302
          %1306 = vset.pattern.permute.xlu0 0
          %1307 = vperm.xlu0 %1306, %v1205
          %v1308 = vpop.permute.xlu0 %1307
          %1311 = vset.pattern.permute.xlu0 0
          %1312 = vperm.xlu0 %1311, %v1206
          %v1313 = vpop.permute.xlu0 %1312
          %1316 = vset.pattern.permute.xlu0 0
          %1317 = vperm.xlu0 %1316, %v1207
          %v1318 = vpop.permute.xlu0 %1317
          %1321 = vset.pattern.permute.xlu0 0
          %1322 = vperm.xlu0 %1321, %v1208
          %v1323 = vpop.permute.xlu0 %1322
          %1326 = vset.pattern.permute.xlu0 0
          %1327 = vperm.xlu0 %1326, %v1209
          %v1328 = vpop.permute.xlu0 %1327
          %1331 = vset.pattern.permute.xlu0 0
          %1332 = vperm.xlu0 %1331, %v1210
          %v1333 = vpop.permute.xlu0 %1332
          %1336 = vset.pattern.permute.xlu0 0
          %1337 = vperm.xlu0 %1336, %v1211
          %v1338 = vpop.permute.xlu0 %1337
          %1341 = vset.pattern.permute.xlu0 0
          %1342 = vperm.xlu0 %1341, %v1212
          %v1343 = vpop.permute.xlu0 %1342
          %1346 = vset.pattern.permute.xlu0 0
          %1347 = vperm.xlu0 %1346, %v1213
          %v1348 = vpop.permute.xlu0 %1347
          %1351 = vset.pattern.permute.xlu0 0
          %1352 = vperm.xlu0 %1351, %v1214
          %v1353 = vpop.permute.xlu0 %1352
          %1356 = vset.pattern.permute.xlu0 0
          %1357 = vperm.xlu0 %1356, %v1215
          %v1358 = vpop.permute.xlu0 %1357
          %1361 = vset.pattern.permute.xlu0 0
          %1362 = vperm.xlu0 %1361, %v1216
          %v1363 = vpop.permute.xlu0 %1362
          %1366 = vset.pattern.permute.xlu0 0
          %1367 = vperm.xlu0 %1366, %v1217
          %v1368 = vpop.permute.xlu0 %1367
          %1371 = vset.pattern.permute.xlu0 0
          %1372 = vperm.xlu0 %1371, %v1218
          %v1373 = vpop.permute.xlu0 %1372
          %1376 = vset.pattern.permute.xlu0 0
          %1377 = vperm.xlu0 %1376, %v1219
          %v1378 = vpop.permute.xlu0 %1377
          %v1380 = vmul.f32 %v1156, %v1223
          %v1381 = vmul.f32 %v1157, %v1228
          %v1382 = vmul.f32 %v1158, %v1233
          %v1383 = vmul.f32 %v1159, %v1238
          %v1384 = vmul.f32 %v1160, %v1243
          %v1385 = vmul.f32 %v1161, %v1248
          %v1386 = vmul.f32 %v1162, %v1253
          %v1387 = vmul.f32 %v1163, %v1258
          %v1388 = vmul.f32 %v1164, %v1263
          %v1389 = vmul.f32 %v1165, %v1268
          %v1390 = vmul.f32 %v1166, %v1273
          %v1391 = vmul.f32 %v1167, %v1278
          %v1392 = vmul.f32 %v1168, %v1283
          %v1393 = vmul.f32 %v1169, %v1288
          %v1394 = vmul.f32 %v1170, %v1293
          %v1395 = vmul.f32 %v1171, %v1298
          %v1396 = vmul.f32 %v1172, %v1303
          %v1397 = vmul.f32 %v1173, %v1308
          %v1398 = vmul.f32 %v1174, %v1313
          %v1399 = vmul.f32 %v1175, %v1318
          %v1400 = vmul.f32 %v1176, %v1323
          %v1401 = vmul.f32 %v1177, %v1328
          %v1402 = vmul.f32 %v1178, %v1333
          %v1403 = vmul.f32 %v1179, %v1338
          %v1404 = vmul.f32 %v1180, %v1343
          %v1405 = vmul.f32 %v1181, %v1348
          %v1406 = vmul.f32 %v1182, %v1353
          %v1407 = vmul.f32 %v1183, %v1358
          %v1408 = vmul.f32 %v1184, %v1363
          %v1409 = vmul.f32 %v1185, %v1368
          %v1410 = vmul.f32 %v1186, %v1373
          %v1411 = vmul.f32 %v1187, %v1378
          %1412 = vst [vmem:[%s516] sm:$0xff] %v1380
          %1413 = vst [vmem:[%s516 + $0x8] sm:$0xff] %v1381
          %1414 = vst [vmem:[%s516 + $0x10] sm:$0xff] %v1382
          %1415 = vst [vmem:[%s516 + $0x18] sm:$0xff] %v1383
          %1416 = vst [vmem:[%s516 + $0x20] sm:$0xff] %v1384
          %1417 = vst [vmem:[%s516 + $0x28] sm:$0xff] %v1385
          %1418 = vst [vmem:[%s516 + $0x30] sm:$0xff] %v1386
          %1419 = vst [vmem:[%s516 + $0x38] sm:$0xff] %v1387
          %1420 = vst [vmem:[%s516 + $0x40] sm:$0xff] %v1388
          %1421 = vst [vmem:[%s516 + $0x48] sm:$0xff] %v1389
          %1422 = vst [vmem:[%s516 + $0x50] sm:$0xff] %v1390
          %1423 = vst [vmem:[%s516 + $0x58] sm:$0xff] %v1391
          %1424 = vst [vmem:[%s516 + $0x60] sm:$0xff] %v1392
          %1425 = vst [vmem:[%s516 + $0x68] sm:$0xff] %v1393
          %1426 = vst [vmem:[%s516 + $0x70] sm:$0xff] %v1394
          %1427 = vst [vmem:[%s516 + $0x78] sm:$0xff] %v1395
          %1428 = vst [vmem:[%s516 + $0x80] sm:$0xff] %v1396
          %1429 = vst [vmem:[%s516 + $0x88] sm:$0xff] %v1397
          %1430 = vst [vmem:[%s516 + $0x90] sm:$0xff] %v1398
          %1431 = vst [vmem:[%s516 + $0x98] sm:$0xff] %v1399
          %1432 = vst [vmem:[%s516 + $0xa0] sm:$0xff] %v1400
          %1433 = vst [vmem:[%s516 + $0xa8] sm:$0xff] %v1401
          %1434 = vst [vmem:[%s516 + $0xb0] sm:$0xff] %v1402
          %1435 = vst [vmem:[%s516 + $0xb8] sm:$0xff] %v1403
          %1436 = vst [vmem:[%s516 + $0xc0] sm:$0xff] %v1404
          %1437 = vst [vmem:[%s516 + $0xc8] sm:$0xff] %v1405
          %1438 = vst [vmem:[%s516 + $0xd0] sm:$0xff] %v1406
          %1439 = vst [vmem:[%s516 + $0xd8] sm:$0xff] %v1407
          %1440 = vst [vmem:[%s516 + $0xe0] sm:$0xff] %v1408
          %1441 = vst [vmem:[%s516 + $0xe8] sm:$0xff] %v1409
          %1442 = vst [vmem:[%s516 + $0xf0] sm:$0xff] %v1410
          %1443 = vst [vmem:[%s516 + $0xf8] sm:$0xff] %v1411
        $region90: #{single_layer_directed_gcn_encoder.3} parent=73 // pred_fallthru
          _
        %v1444 = vld [vmem:[%s498] sm:$0xf]
        %v1445 = vld [vmem:[%s498 + $0x4] sm:$0xf]
        %v1446 = vld [vmem:[%s498 + $0x8] sm:$0xf]
        %v1447 = vld [vmem:[%s498 + $0xc] sm:$0xf]
        %v1448 = vld [vmem:[%s498 + $0x10] sm:$0xf]
        %v1449 = vld [vmem:[%s498 + $0x14] sm:$0xf]
        %v1450 = vld [vmem:[%s498 + $0x18] sm:$0xf]
        %v1451 = vld [vmem:[%s498 + $0x1c] sm:$0xf]
        %v1452 = vld [vmem:[%s498 + $0x20] sm:$0xf]
        %v1453 = vld [vmem:[%s498 + $0x24] sm:$0xf]
        %v1454 = vld [vmem:[%s498 + $0x28] sm:$0xf]
        %v1455 = vld [vmem:[%s498 + $0x2c] sm:$0xf]
        %v1456 = vld [vmem:[%s498 + $0x30] sm:$0xf]
        %v1457 = vld [vmem:[%s498 + $0x34] sm:$0xf]
        %v1458 = vld [vmem:[%s498 + $0x38] sm:$0xf]
        %v1459 = vld [vmem:[%s498 + $0x3c] sm:$0xf]
        %v1460 = vld [vmem:[%s498 + $0x40] sm:$0xf]
        %v1461 = vld [vmem:[%s498 + $0x44] sm:$0xf]
        %v1462 = vld [vmem:[%s498 + $0x48] sm:$0xf]
        %v1463 = vld [vmem:[%s498 + $0x4c] sm:$0xf]
        %v1464 = vld [vmem:[%s498 + $0x50] sm:$0xf]
        %v1465 = vld [vmem:[%s498 + $0x54] sm:$0xf]
        %v1466 = vld [vmem:[%s498 + $0x58] sm:$0xf]
        %v1467 = vld [vmem:[%s498 + $0x5c] sm:$0xf]
        %v1468 = vld [vmem:[%s498 + $0x60] sm:$0xf]
        %v1469 = vld [vmem:[%s498 + $0x64] sm:$0xf]
        %v1470 = vld [vmem:[%s498 + $0x68] sm:$0xf]
        %v1471 = vld [vmem:[%s498 + $0x6c] sm:$0xf]
        %v1472 = vld [vmem:[%s498 + $0x70] sm:$0xf]
        %v1473 = vld [vmem:[%s498 + $0x74] sm:$0xf]
        %v1474 = vld [vmem:[%s498 + $0x78] sm:$0xf]
        %v1475 = vld [vmem:[%s498 + $0x7c] sm:$0xf]
        %1476 = vxpose.binary.xlu0.c.b16.start [1/16] %v679, %v678, 128
        %1477 = vxpose.binary.xlu0.c.b16.cont [2/16] %v681, %v680, 128
        %1478 = vxpose.binary.xlu0.c.b16.cont [3/16] %v683, %v682, 128
        %1479 = vxpose.binary.xlu0.c.b16.cont [4/16] %v685, %v684, 128
        %1480 = vxpose.binary.xlu0.c.b16.cont [5/16] %v687, %v686, 128
        %1481 = vxpose.binary.xlu0.c.b16.cont [6/16] %v689, %v688, 128
        %1482 = vxpose.binary.xlu0.c.b16.cont [7/16] %v691, %v690, 128
        %1483 = vxpose.binary.xlu0.c.b16.end [8/16] %v693, %v692, 128
        %v1484 = vpop.trf.xlu0
        %v1485 = vpop.trf.xlu0
        %v1486 = vpop.trf.xlu0
        %v1487 = vpop.trf.xlu0
        %v1488 = vpop.trf.xlu0
        %v1489 = vpop.trf.xlu0
        %v1490 = vpop.trf.xlu0
        %v1491 = vpop.trf.xlu0
        %v1492 = vpop.trf.xlu0
        %v1493 = vpop.trf.xlu0
        %v1494 = vpop.trf.xlu0
        %v1495 = vpop.trf.xlu0
        %v1496 = vpop.trf.xlu0
        %v1497 = vpop.trf.xlu0
        %v1498 = vpop.trf.xlu0
        %v1499 = vpop.trf.xlu0
        %1500 = vxpose.binary.xlu0.c.b16.start [1/16] %v695, %v694, 128
        %1501 = vxpose.binary.xlu0.c.b16.cont [2/16] %v697, %v696, 128
        %1502 = vxpose.binary.xlu0.c.b16.cont [3/16] %v699, %v698, 128
        %1503 = vxpose.binary.xlu0.c.b16.cont [4/16] %v701, %v700, 128
        %1504 = vxpose.binary.xlu0.c.b16.cont [5/16] %v703, %v702, 128
        %1505 = vxpose.binary.xlu0.c.b16.cont [6/16] %v705, %v704, 128
        %1506 = vxpose.binary.xlu0.c.b16.cont [7/16] %v707, %v706, 128
        %1507 = vxpose.binary.xlu0.c.b16.end [8/16] %v709, %v708, 128
        %v1508 = vpop.trf.xlu0
        %v1509 = vpop.trf.xlu0
        %v1510 = vpop.trf.xlu0
        %v1511 = vpop.trf.xlu0
        %v1512 = vpop.trf.xlu0
        %v1513 = vpop.trf.xlu0
        %v1514 = vpop.trf.xlu0
        %v1515 = vpop.trf.xlu0
        %v1516 = vpop.trf.xlu0
        %v1517 = vpop.trf.xlu0
        %v1518 = vpop.trf.xlu0
        %v1519 = vpop.trf.xlu0
        %v1520 = vpop.trf.xlu0
        %v1521 = vpop.trf.xlu0
        %v1522 = vpop.trf.xlu0
        %v1523 = vpop.trf.xlu0
        %v1556 = vunpack.c.l.b16 %v1444
        %v1557 = vunpack.c.l.b16 %v1445
        %v1558 = vunpack.c.l.b16 %v1446
        %v1559 = vunpack.c.l.b16 %v1447
        %v1560 = vunpack.c.l.b16 %v1448
        %v1561 = vunpack.c.l.b16 %v1449
        %v1562 = vunpack.c.l.b16 %v1450
        %v1563 = vunpack.c.l.b16 %v1451
        %v1564 = vunpack.c.l.b16 %v1452
        %v1565 = vunpack.c.l.b16 %v1453
        %v1566 = vunpack.c.l.b16 %v1454
        %v1567 = vunpack.c.l.b16 %v1455
        %v1568 = vunpack.c.l.b16 %v1456
        %v1569 = vunpack.c.l.b16 %v1457
        %v1570 = vunpack.c.l.b16 %v1458
        %v1571 = vunpack.c.l.b16 %v1459
        %v1572 = vunpack.c.l.b16 %v1460
        %v1573 = vunpack.c.l.b16 %v1461
        %v1574 = vunpack.c.l.b16 %v1462
        %v1575 = vunpack.c.l.b16 %v1463
        %v1576 = vunpack.c.l.b16 %v1464
        %v1577 = vunpack.c.l.b16 %v1465
        %v1578 = vunpack.c.l.b16 %v1466
        %v1579 = vunpack.c.l.b16 %v1467
        %v1580 = vunpack.c.l.b16 %v1468
        %v1581 = vunpack.c.l.b16 %v1469
        %v1582 = vunpack.c.l.b16 %v1470
        %v1583 = vunpack.c.l.b16 %v1471
        %v1584 = vunpack.c.l.b16 %v1472
        %v1585 = vunpack.c.l.b16 %v1473
        %v1586 = vunpack.c.l.b16 %v1474
        %v1587 = vunpack.c.l.b16 %v1475
        %v1588 = vpack.c.b16 %v1557, %v1556
        %v1589 = vpack.c.b16 %v1559, %v1558
        %v1590 = vpack.c.b16 %v1561, %v1560
        %v1591 = vpack.c.b16 %v1563, %v1562
        %v1592 = vpack.c.b16 %v1565, %v1564
        %v1593 = vpack.c.b16 %v1567, %v1566
        %v1594 = vpack.c.b16 %v1569, %v1568
        %v1595 = vpack.c.b16 %v1571, %v1570
        %v1596 = vpack.c.b16 %v1573, %v1572
        %v1597 = vpack.c.b16 %v1575, %v1574
        %v1598 = vpack.c.b16 %v1577, %v1576
        %v1599 = vpack.c.b16 %v1579, %v1578
        %v1600 = vpack.c.b16 %v1581, %v1580
        %v1601 = vpack.c.b16 %v1583, %v1582
        %v1602 = vpack.c.b16 %v1585, %v1584
        %v1603 = vpack.c.b16 %v1587, %v1586
        %1620 = vmatpush.bf16.msra.mxu0 %v1595
        %1621 = vmatpush.bf16.msra.mxu0 %v1594
        %1622 = vmatpush.bf16.msra.mxu0 %v1593
        %1623 = vmatpush.bf16.msra.mxu0 %v1592
        %1624 = vmatpush.bf16.msra.mxu0 %v1591
        %1625 = vmatpush.bf16.msra.mxu0 %v1590
        %1626 = vmatpush.bf16.msra.mxu0 %v1589
        %1627 = vmatpush.bf16.msra.mxu0 %v1588
        %1628 = vmatmul.bf16.gmra.mxu0 %v1484
        %v1629 = vpop.f32.mrf.mxu0
        %v1630 = vadd.f32 0.0, %v1629
        %v1631 = vpop.f32.mrf.mxu0
        %v1632 = vadd.f32 0.0, %v1631
        %1633 = vmatmul.bf16.gmra.mxu0 %v1486
        %v1634 = vpop.f32.mrf.mxu0
        %v1635 = vadd.f32 0.0, %v1634
        %v1636 = vpop.f32.mrf.mxu0
        %v1637 = vadd.f32 0.0, %v1636
        %1638 = vmatmul.bf16.gmra.mxu0 %v1488
        %v1639 = vpop.f32.mrf.mxu0
        %v1640 = vadd.f32 0.0, %v1639
        %v1641 = vpop.f32.mrf.mxu0
        %v1642 = vadd.f32 0.0, %v1641
        %1643 = vmatmul.bf16.gmra.mxu0 %v1490
        %v1644 = vpop.f32.mrf.mxu0
        %v1645 = vadd.f32 0.0, %v1644
        %v1646 = vpop.f32.mrf.mxu0
        %v1647 = vadd.f32 0.0, %v1646
        %1648 = vmatmul.bf16.gmra.mxu0 %v1492
        %v1649 = vpop.f32.mrf.mxu0
        %v1650 = vadd.f32 0.0, %v1649
        %v1651 = vpop.f32.mrf.mxu0
        %v1652 = vadd.f32 0.0, %v1651
        %1653 = vmatmul.bf16.gmra.mxu0 %v1494
        %v1654 = vpop.f32.mrf.mxu0
        %v1655 = vadd.f32 0.0, %v1654
        %v1656 = vpop.f32.mrf.mxu0
        %v1657 = vadd.f32 0.0, %v1656
        %1658 = vmatmul.bf16.gmra.mxu0 %v1496
        %v1659 = vpop.f32.mrf.mxu0
        %v1660 = vadd.f32 0.0, %v1659
        %v1661 = vpop.f32.mrf.mxu0
        %v1662 = vadd.f32 0.0, %v1661
        %1663 = vmatmul.bf16.gmra.mxu0 %v1498
        %v1664 = vpop.f32.mrf.mxu0
        %v1665 = vadd.f32 0.0, %v1664
        %v1666 = vpop.f32.mrf.mxu0
        %v1667 = vadd.f32 0.0, %v1666
        %1668 = vmatmul.bf16.gmra.mxu0 %v1485
        %v1669 = vpop.f32.mrf.mxu0
        %v1670 = vadd.f32 0.0, %v1669
        %v1671 = vpop.f32.mrf.mxu0
        %v1672 = vadd.f32 0.0, %v1671
        %1673 = vmatmul.bf16.gmra.mxu0 %v1487
        %v1674 = vpop.f32.mrf.mxu0
        %v1675 = vadd.f32 0.0, %v1674
        %v1676 = vpop.f32.mrf.mxu0
        %v1677 = vadd.f32 0.0, %v1676
        %1678 = vmatmul.bf16.gmra.mxu0 %v1489
        %v1679 = vpop.f32.mrf.mxu0
        %v1680 = vadd.f32 0.0, %v1679
        %v1681 = vpop.f32.mrf.mxu0
        %v1682 = vadd.f32 0.0, %v1681
        %1683 = vmatmul.bf16.gmra.mxu0 %v1491
        %v1684 = vpop.f32.mrf.mxu0
        %v1685 = vadd.f32 0.0, %v1684
        %v1686 = vpop.f32.mrf.mxu0
        %v1687 = vadd.f32 0.0, %v1686
        %1688 = vmatmul.bf16.gmra.mxu0 %v1493
        %v1689 = vpop.f32.mrf.mxu0
        %v1690 = vadd.f32 0.0, %v1689
        %v1691 = vpop.f32.mrf.mxu0
        %v1692 = vadd.f32 0.0, %v1691
        %1693 = vmatmul.bf16.gmra.mxu0 %v1495
        %v1694 = vpop.f32.mrf.mxu0
        %v1695 = vadd.f32 0.0, %v1694
        %v1696 = vpop.f32.mrf.mxu0
        %v1697 = vadd.f32 0.0, %v1696
        %1698 = vmatmul.bf16.gmra.mxu0 %v1497
        %v1699 = vpop.f32.mrf.mxu0
        %v1700 = vadd.f32 0.0, %v1699
        %v1701 = vpop.f32.mrf.mxu0
        %v1702 = vadd.f32 0.0, %v1701
        %1703 = vmatmul.bf16.gmra.mxu0 %v1499
        %v1704 = vpop.f32.mrf.mxu0
        %v1705 = vadd.f32 0.0, %v1704
        %v1706 = vpop.f32.mrf.mxu0
        %v1707 = vadd.f32 0.0, %v1706
        %1708 = vdwg.mxu0
        %1709 = vmatpush.bf16.msra.mxu0 %v1603
        %1710 = vmatpush.bf16.msra.mxu0 %v1602
        %1711 = vmatpush.bf16.msra.mxu0 %v1601
        %1712 = vmatpush.bf16.msra.mxu0 %v1600
        %1713 = vmatpush.bf16.msra.mxu0 %v1599
        %1714 = vmatpush.bf16.msra.mxu0 %v1598
        %1715 = vmatpush.bf16.msra.mxu0 %v1597
        %1716 = vmatpush.bf16.msra.mxu0 %v1596
        %1717 = vmatmul.bf16.gmra.mxu0 %v1508
        %v1718 = vpop.f32.mrf.mxu0
        %v1719 = vadd.f32 %v1630, %v1718
        %v1720 = vpop.f32.mrf.mxu0
        %v1721 = vadd.f32 %v1632, %v1720
        %1722 = vmatmul.bf16.gmra.mxu0 %v1510
        %v1723 = vpop.f32.mrf.mxu0
        %v1724 = vadd.f32 %v1635, %v1723
        %v1725 = vpop.f32.mrf.mxu0
        %v1726 = vadd.f32 %v1637, %v1725
        %1727 = vmatmul.bf16.gmra.mxu0 %v1512
        %v1728 = vpop.f32.mrf.mxu0
        %v1729 = vadd.f32 %v1640, %v1728
        %v1730 = vpop.f32.mrf.mxu0
        %v1731 = vadd.f32 %v1642, %v1730
        %1732 = vmatmul.bf16.gmra.mxu0 %v1514
        %v1733 = vpop.f32.mrf.mxu0
        %v1734 = vadd.f32 %v1645, %v1733
        %v1735 = vpop.f32.mrf.mxu0
        %v1736 = vadd.f32 %v1647, %v1735
        %1737 = vmatmul.bf16.gmra.mxu0 %v1516
        %v1738 = vpop.f32.mrf.mxu0
        %v1739 = vadd.f32 %v1650, %v1738
        %v1740 = vpop.f32.mrf.mxu0
        %v1741 = vadd.f32 %v1652, %v1740
        %1742 = vmatmul.bf16.gmra.mxu0 %v1518
        %v1743 = vpop.f32.mrf.mxu0
        %v1744 = vadd.f32 %v1655, %v1743
        %v1745 = vpop.f32.mrf.mxu0
        %v1746 = vadd.f32 %v1657, %v1745
        %1747 = vmatmul.bf16.gmra.mxu0 %v1520
        %v1748 = vpop.f32.mrf.mxu0
        %v1749 = vadd.f32 %v1660, %v1748
        %v1750 = vpop.f32.mrf.mxu0
        %v1751 = vadd.f32 %v1662, %v1750
        %1752 = vmatmul.bf16.gmra.mxu0 %v1522
        %v1753 = vpop.f32.mrf.mxu0
        %v1754 = vadd.f32 %v1665, %v1753
        %v1755 = vpop.f32.mrf.mxu0
        %v1756 = vadd.f32 %v1667, %v1755
        %1757 = vmatmul.bf16.gmra.mxu0 %v1509
        %v1758 = vpop.f32.mrf.mxu0
        %v1759 = vadd.f32 %v1670, %v1758
        %v1760 = vpop.f32.mrf.mxu0
        %v1761 = vadd.f32 %v1672, %v1760
        %1762 = vmatmul.bf16.gmra.mxu0 %v1511
        %v1763 = vpop.f32.mrf.mxu0
        %v1764 = vadd.f32 %v1675, %v1763
        %v1765 = vpop.f32.mrf.mxu0
        %v1766 = vadd.f32 %v1677, %v1765
        %1767 = vmatmul.bf16.gmra.mxu0 %v1513
        %v1768 = vpop.f32.mrf.mxu0
        %v1769 = vadd.f32 %v1680, %v1768
        %v1770 = vpop.f32.mrf.mxu0
        %v1771 = vadd.f32 %v1682, %v1770
        %1772 = vmatmul.bf16.gmra.mxu0 %v1515
        %v1773 = vpop.f32.mrf.mxu0
        %v1774 = vadd.f32 %v1685, %v1773
        %v1775 = vpop.f32.mrf.mxu0
        %v1776 = vadd.f32 %v1687, %v1775
        %1777 = vmatmul.bf16.gmra.mxu0 %v1517
        %v1778 = vpop.f32.mrf.mxu0
        %v1779 = vadd.f32 %v1690, %v1778
        %v1780 = vpop.f32.mrf.mxu0
        %v1781 = vadd.f32 %v1692, %v1780
        %1782 = vmatmul.bf16.gmra.mxu0 %v1519
        %v1783 = vpop.f32.mrf.mxu0
        %v1784 = vadd.f32 %v1695, %v1783
        %v1785 = vpop.f32.mrf.mxu0
        %v1786 = vadd.f32 %v1697, %v1785
        %1787 = vmatmul.bf16.gmra.mxu0 %v1521
        %v1788 = vpop.f32.mrf.mxu0
        %v1789 = vadd.f32 %v1700, %v1788
        %v1790 = vpop.f32.mrf.mxu0
        %v1791 = vadd.f32 %v1702, %v1790
        %1792 = vmatmul.bf16.gmra.mxu0 %v1523
        %v1793 = vpop.f32.mrf.mxu0
        %v1794 = vadd.f32 %v1705, %v1793
        %v1795 = vpop.f32.mrf.mxu0
        %v1796 = vadd.f32 %v1707, %v1795
        %1797 = vdwg.mxu0
        %p1798 = scmp.eq.s32.totalorder %s22, 0
        // Predicated region
        $region91: #{single_layer_directed_gcn_encoder.3} parent=73 // pred_check
          %p1799 = pneg %p1798
        $region92: #{single_layer_directed_gcn_encoder.3} parent=73 // pred_check_branch
          %1801 = sbr.rel (%p1799) target = $region94
        $region93: #{single_layer_directed_gcn_encoder.3} parent=73 // pred_region
          %s1802 = smul.u32 %s23, 256
          %s1803 = scalar_lea.vmem %s6, %s1802
          %1804 = vst [vmem:[%s1803] sm:$0xff] %v1719
          %1805 = vst [vmem:[%s1803 + $0x8] sm:$0xff] %v1721
          %1806 = vst [vmem:[%s1803 + $0x10] sm:$0xff] %v1724
          %1807 = vst [vmem:[%s1803 + $0x18] sm:$0xff] %v1726
          %1808 = vst [vmem:[%s1803 + $0x20] sm:$0xff] %v1729
          %1809 = vst [vmem:[%s1803 + $0x28] sm:$0xff] %v1731
          %1810 = vst [vmem:[%s1803 + $0x30] sm:$0xff] %v1734
          %1811 = vst [vmem:[%s1803 + $0x38] sm:$0xff] %v1736
          %1812 = vst [vmem:[%s1803 + $0x40] sm:$0xff] %v1739
          %1813 = vst [vmem:[%s1803 + $0x48] sm:$0xff] %v1741
          %1814 = vst [vmem:[%s1803 + $0x50] sm:$0xff] %v1744
          %1815 = vst [vmem:[%s1803 + $0x58] sm:$0xff] %v1746
          %1816 = vst [vmem:[%s1803 + $0x60] sm:$0xff] %v1749
          %1817 = vst [vmem:[%s1803 + $0x68] sm:$0xff] %v1751
          %1818 = vst [vmem:[%s1803 + $0x70] sm:$0xff] %v1754
          %1819 = vst [vmem:[%s1803 + $0x78] sm:$0xff] %v1756
          %1820 = vst [vmem:[%s1803 + $0x80] sm:$0xff] %v1759
          %1821 = vst [vmem:[%s1803 + $0x88] sm:$0xff] %v1761
          %1822 = vst [vmem:[%s1803 + $0x90] sm:$0xff] %v1764
          %1823 = vst [vmem:[%s1803 + $0x98] sm:$0xff] %v1766
          %1824 = vst [vmem:[%s1803 + $0xa0] sm:$0xff] %v1769
          %1825 = vst [vmem:[%s1803 + $0xa8] sm:$0xff] %v1771
          %1826 = vst [vmem:[%s1803 + $0xb0] sm:$0xff] %v1774
          %1827 = vst [vmem:[%s1803 + $0xb8] sm:$0xff] %v1776
          %1828 = vst [vmem:[%s1803 + $0xc0] sm:$0xff] %v1779
          %1829 = vst [vmem:[%s1803 + $0xc8] sm:$0xff] %v1781
          %1830 = vst [vmem:[%s1803 + $0xd0] sm:$0xff] %v1784
          %1831 = vst [vmem:[%s1803 + $0xd8] sm:$0xff] %v1786
          %1832 = vst [vmem:[%s1803 + $0xe0] sm:$0xff] %v1789
          %1833 = vst [vmem:[%s1803 + $0xe8] sm:$0xff] %v1791
          %1834 = vst [vmem:[%s1803 + $0xf0] sm:$0xff] %v1794
          %1835 = vst [vmem:[%s1803 + $0xf8] sm:$0xff] %v1796
        $region94: #{single_layer_directed_gcn_encoder.3} parent=73 // pred_fallthru
          _
        %p1836 = scmp.gt.s32.totalorder %s22, 0
        // Predicated region
        $region95: #{single_layer_directed_gcn_encoder.3} parent=73 // pred_check
          %p1837 = pneg %p1836
        $region96: #{single_layer_directed_gcn_encoder.3} parent=73 // pred_check_branch
          %1839 = sbr.rel (%p1837) target = $region98
        $region97: #{single_layer_directed_gcn_encoder.3} parent=73 // pred_region
          %s1840 = smul.u32 %s23, 256
          %s1841 = scalar_lea.vmem %s6, %s1840
          %v1842 = vld [vmem:[%s1841] sm:$0xff]
          %v1843 = vld [vmem:[%s1841 + $0x8] sm:$0xff]
          %v1844 = vld [vmem:[%s1841 + $0x10] sm:$0xff]
          %v1845 = vld [vmem:[%s1841 + $0x18] sm:$0xff]
          %v1846 = vld [vmem:[%s1841 + $0x20] sm:$0xff]
          %v1847 = vld [vmem:[%s1841 + $0x28] sm:$0xff]
          %v1848 = vld [vmem:[%s1841 + $0x30] sm:$0xff]
          %v1849 = vld [vmem:[%s1841 + $0x38] sm:$0xff]
          %v1850 = vld [vmem:[%s1841 + $0x40] sm:$0xff]
          %v1851 = vld [vmem:[%s1841 + $0x48] sm:$0xff]
          %v1852 = vld [vmem:[%s1841 + $0x50] sm:$0xff]
          %v1853 = vld [vmem:[%s1841 + $0x58] sm:$0xff]
          %v1854 = vld [vmem:[%s1841 + $0x60] sm:$0xff]
          %v1855 = vld [vmem:[%s1841 + $0x68] sm:$0xff]
          %v1856 = vld [vmem:[%s1841 + $0x70] sm:$0xff]
          %v1857 = vld [vmem:[%s1841 + $0x78] sm:$0xff]
          %v1858 = vld [vmem:[%s1841 + $0x80] sm:$0xff]
          %v1859 = vld [vmem:[%s1841 + $0x88] sm:$0xff]
          %v1860 = vld [vmem:[%s1841 + $0x90] sm:$0xff]
          %v1861 = vld [vmem:[%s1841 + $0x98] sm:$0xff]
          %v1862 = vld [vmem:[%s1841 + $0xa0] sm:$0xff]
          %v1863 = vld [vmem:[%s1841 + $0xa8] sm:$0xff]
          %v1864 = vld [vmem:[%s1841 + $0xb0] sm:$0xff]
          %v1865 = vld [vmem:[%s1841 + $0xb8] sm:$0xff]
          %v1866 = vld [vmem:[%s1841 + $0xc0] sm:$0xff]
          %v1867 = vld [vmem:[%s1841 + $0xc8] sm:$0xff]
          %v1868 = vld [vmem:[%s1841 + $0xd0] sm:$0xff]
          %v1869 = vld [vmem:[%s1841 + $0xd8] sm:$0xff]
          %v1870 = vld [vmem:[%s1841 + $0xe0] sm:$0xff]
          %v1871 = vld [vmem:[%s1841 + $0xe8] sm:$0xff]
          %v1872 = vld [vmem:[%s1841 + $0xf0] sm:$0xff]
          %v1873 = vld [vmem:[%s1841 + $0xf8] sm:$0xff]
          %v1874 = vadd.f32 %v1842, %v1719
          %v1875 = vadd.f32 %v1843, %v1721
          %v1876 = vadd.f32 %v1844, %v1724
          %v1877 = vadd.f32 %v1845, %v1726
          %v1878 = vadd.f32 %v1846, %v1729
          %v1879 = vadd.f32 %v1847, %v1731
          %v1880 = vadd.f32 %v1848, %v1734
          %v1881 = vadd.f32 %v1849, %v1736
          %v1882 = vadd.f32 %v1850, %v1739
          %v1883 = vadd.f32 %v1851, %v1741
          %v1884 = vadd.f32 %v1852, %v1744
          %v1885 = vadd.f32 %v1853, %v1746
          %v1886 = vadd.f32 %v1854, %v1749
          %v1887 = vadd.f32 %v1855, %v1751
          %v1888 = vadd.f32 %v1856, %v1754
          %v1889 = vadd.f32 %v1857, %v1756
          %v1890 = vadd.f32 %v1858, %v1759
          %v1891 = vadd.f32 %v1859, %v1761
          %v1892 = vadd.f32 %v1860, %v1764
          %v1893 = vadd.f32 %v1861, %v1766
          %v1894 = vadd.f32 %v1862, %v1769
          %v1895 = vadd.f32 %v1863, %v1771
          %v1896 = vadd.f32 %v1864, %v1774
          %v1897 = vadd.f32 %v1865, %v1776
          %v1898 = vadd.f32 %v1866, %v1779
          %v1899 = vadd.f32 %v1867, %v1781
          %v1900 = vadd.f32 %v1868, %v1784
          %v1901 = vadd.f32 %v1869, %v1786
          %v1902 = vadd.f32 %v1870, %v1789
          %v1903 = vadd.f32 %v1871, %v1791
          %v1904 = vadd.f32 %v1872, %v1794
          %v1905 = vadd.f32 %v1873, %v1796
          %1906 = vst [vmem:[%s1841] sm:$0xff] %v1874
          %1907 = vst [vmem:[%s1841 + $0x8] sm:$0xff] %v1875
          %1908 = vst [vmem:[%s1841 + $0x10] sm:$0xff] %v1876
          %1909 = vst [vmem:[%s1841 + $0x18] sm:$0xff] %v1877
          %1910 = vst [vmem:[%s1841 + $0x20] sm:$0xff] %v1878
          %1911 = vst [vmem:[%s1841 + $0x28] sm:$0xff] %v1879
          %1912 = vst [vmem:[%s1841 + $0x30] sm:$0xff] %v1880
          %1913 = vst [vmem:[%s1841 + $0x38] sm:$0xff] %v1881
          %1914 = vst [vmem:[%s1841 + $0x40] sm:$0xff] %v1882
          %1915 = vst [vmem:[%s1841 + $0x48] sm:$0xff] %v1883
          %1916 = vst [vmem:[%s1841 + $0x50] sm:$0xff] %v1884
          %1917 = vst [vmem:[%s1841 + $0x58] sm:$0xff] %v1885
          %1918 = vst [vmem:[%s1841 + $0x60] sm:$0xff] %v1886
          %1919 = vst [vmem:[%s1841 + $0x68] sm:$0xff] %v1887
          %1920 = vst [vmem:[%s1841 + $0x70] sm:$0xff] %v1888
          %1921 = vst [vmem:[%s1841 + $0x78] sm:$0xff] %v1889
          %1922 = vst [vmem:[%s1841 + $0x80] sm:$0xff] %v1890
          %1923 = vst [vmem:[%s1841 + $0x88] sm:$0xff] %v1891
          %1924 = vst [vmem:[%s1841 + $0x90] sm:$0xff] %v1892
          %1925 = vst [vmem:[%s1841 + $0x98] sm:$0xff] %v1893
          %1926 = vst [vmem:[%s1841 + $0xa0] sm:$0xff] %v1894
          %1927 = vst [vmem:[%s1841 + $0xa8] sm:$0xff] %v1895
          %1928 = vst [vmem:[%s1841 + $0xb0] sm:$0xff] %v1896
          %1929 = vst [vmem:[%s1841 + $0xb8] sm:$0xff] %v1897
          %1930 = vst [vmem:[%s1841 + $0xc0] sm:$0xff] %v1898
          %1931 = vst [vmem:[%s1841 + $0xc8] sm:$0xff] %v1899
          %1932 = vst [vmem:[%s1841 + $0xd0] sm:$0xff] %v1900
          %1933 = vst [vmem:[%s1841 + $0xd8] sm:$0xff] %v1901
          %1934 = vst [vmem:[%s1841 + $0xe0] sm:$0xff] %v1902
          %1935 = vst [vmem:[%s1841 + $0xe8] sm:$0xff] %v1903
          %1936 = vst [vmem:[%s1841 + $0xf0] sm:$0xff] %v1904
          %1937 = vst [vmem:[%s1841 + $0xf8] sm:$0xff] %v1905
        $region98: #{single_layer_directed_gcn_encoder.3} parent=73 // pred_fallthru
          _
        %p1938 = scmp.eq.s32.totalorder %s22, 1
        // Predicated region
        $region99: #{single_layer_directed_gcn_encoder.3} parent=73 // pred_check
          %p1939 = pneg %p1938
        $region100: #{single_layer_directed_gcn_encoder.3} parent=73 // pred_check_branch
          %1941 = sbr.rel (%p1939) target = $region102
        $region101: #{single_layer_directed_gcn_encoder.3} parent=73 // pred_region
          %s1942 = smul.u32 %s23, 256
          %s1943 = scalar_lea.vmem %s6, %s1942
          %v1944 = vld [vmem:[%s1943] sm:$0xff]
          %v1945 = vld [vmem:[%s1943 + $0x8] sm:$0xff]
          %v1946 = vld [vmem:[%s1943 + $0x10] sm:$0xff]
          %v1947 = vld [vmem:[%s1943 + $0x18] sm:$0xff]
          %v1948 = vld [vmem:[%s1943 + $0x20] sm:$0xff]
          %v1949 = vld [vmem:[%s1943 + $0x28] sm:$0xff]
          %v1950 = vld [vmem:[%s1943 + $0x30] sm:$0xff]
          %v1951 = vld [vmem:[%s1943 + $0x38] sm:$0xff]
          %v1952 = vld [vmem:[%s1943 + $0x40] sm:$0xff]
          %v1953 = vld [vmem:[%s1943 + $0x48] sm:$0xff]
          %v1954 = vld [vmem:[%s1943 + $0x50] sm:$0xff]
          %v1955 = vld [vmem:[%s1943 + $0x58] sm:$0xff]
          %v1956 = vld [vmem:[%s1943 + $0x60] sm:$0xff]
          %v1957 = vld [vmem:[%s1943 + $0x68] sm:$0xff]
          %v1958 = vld [vmem:[%s1943 + $0x70] sm:$0xff]
          %v1959 = vld [vmem:[%s1943 + $0x78] sm:$0xff]
          %v1960 = vld [vmem:[%s1943 + $0x80] sm:$0xff]
          %v1961 = vld [vmem:[%s1943 + $0x88] sm:$0xff]
          %v1962 = vld [vmem:[%s1943 + $0x90] sm:$0xff]
          %v1963 = vld [vmem:[%s1943 + $0x98] sm:$0xff]
          %v1964 = vld [vmem:[%s1943 + $0xa0] sm:$0xff]
          %v1965 = vld [vmem:[%s1943 + $0xa8] sm:$0xff]
          %v1966 = vld [vmem:[%s1943 + $0xb0] sm:$0xff]
          %v1967 = vld [vmem:[%s1943 + $0xb8] sm:$0xff]
          %v1968 = vld [vmem:[%s1943 + $0xc0] sm:$0xff]
          %v1969 = vld [vmem:[%s1943 + $0xc8] sm:$0xff]
          %v1970 = vld [vmem:[%s1943 + $0xd0] sm:$0xff]
          %v1971 = vld [vmem:[%s1943 + $0xd8] sm:$0xff]
          %v1972 = vld [vmem:[%s1943 + $0xe0] sm:$0xff]
          %v1973 = vld [vmem:[%s1943 + $0xe8] sm:$0xff]
          %v1974 = vld [vmem:[%s1943 + $0xf0] sm:$0xff]
          %v1975 = vld [vmem:[%s1943 + $0xf8] sm:$0xff]
          %v1976 = vld [vmem:[%s510] sm:$0xff]
          %v1977 = vld [vmem:[%s510 + $0x8] sm:$0xff]
          %v1978 = vld [vmem:[%s510 + $0x10] sm:$0xff]
          %v1979 = vld [vmem:[%s510 + $0x18] sm:$0xff]
          %v1980 = vld [vmem:[%s510 + $0x20] sm:$0xff]
          %v1981 = vld [vmem:[%s510 + $0x28] sm:$0xff]
          %v1982 = vld [vmem:[%s510 + $0x30] sm:$0xff]
          %v1983 = vld [vmem:[%s510 + $0x38] sm:$0xff]
          %v1984 = vld [vmem:[%s510 + $0x40] sm:$0xff]
          %v1985 = vld [vmem:[%s510 + $0x48] sm:$0xff]
          %v1986 = vld [vmem:[%s510 + $0x50] sm:$0xff]
          %v1987 = vld [vmem:[%s510 + $0x58] sm:$0xff]
          %v1988 = vld [vmem:[%s510 + $0x60] sm:$0xff]
          %v1989 = vld [vmem:[%s510 + $0x68] sm:$0xff]
          %v1990 = vld [vmem:[%s510 + $0x70] sm:$0xff]
          %v1991 = vld [vmem:[%s510 + $0x78] sm:$0xff]
          %v1992 = vld [vmem:[%s510 + $0x80] sm:$0xff]
          %v1993 = vld [vmem:[%s510 + $0x88] sm:$0xff]
          %v1994 = vld [vmem:[%s510 + $0x90] sm:$0xff]
          %v1995 = vld [vmem:[%s510 + $0x98] sm:$0xff]
          %v1996 = vld [vmem:[%s510 + $0xa0] sm:$0xff]
          %v1997 = vld [vmem:[%s510 + $0xa8] sm:$0xff]
          %v1998 = vld [vmem:[%s510 + $0xb0] sm:$0xff]
          %v1999 = vld [vmem:[%s510 + $0xb8] sm:$0xff]
          %v2000 = vld [vmem:[%s510 + $0xc0] sm:$0xff]
          %v2001 = vld [vmem:[%s510 + $0xc8] sm:$0xff]
          %v2002 = vld [vmem:[%s510 + $0xd0] sm:$0xff]
          %v2003 = vld [vmem:[%s510 + $0xd8] sm:$0xff]
          %v2004 = vld [vmem:[%s510 + $0xe0] sm:$0xff]
          %v2005 = vld [vmem:[%s510 + $0xe8] sm:$0xff]
          %v2006 = vld [vmem:[%s510 + $0xf0] sm:$0xff]
          %v2007 = vld [vmem:[%s510 + $0xf8] sm:$0xff]
          %2009 = vset.pattern.permute.xlu0 0
          %2010 = vperm.xlu0 %2009, %v1976
          %v2011 = vpop.permute.xlu0 %2010
          %2014 = vset.pattern.permute.xlu0 0
          %2015 = vperm.xlu0 %2014, %v1977
          %v2016 = vpop.permute.xlu0 %2015
          %2019 = vset.pattern.permute.xlu0 0
          %2020 = vperm.xlu0 %2019, %v1978
          %v2021 = vpop.permute.xlu0 %2020
          %2024 = vset.pattern.permute.xlu0 0
          %2025 = vperm.xlu0 %2024, %v1979
          %v2026 = vpop.permute.xlu0 %2025
          %2029 = vset.pattern.permute.xlu0 0
          %2030 = vperm.xlu0 %2029, %v1980
          %v2031 = vpop.permute.xlu0 %2030
          %2034 = vset.pattern.permute.xlu0 0
          %2035 = vperm.xlu0 %2034, %v1981
          %v2036 = vpop.permute.xlu0 %2035
          %2039 = vset.pattern.permute.xlu0 0
          %2040 = vperm.xlu0 %2039, %v1982
          %v2041 = vpop.permute.xlu0 %2040
          %2044 = vset.pattern.permute.xlu0 0
          %2045 = vperm.xlu0 %2044, %v1983
          %v2046 = vpop.permute.xlu0 %2045
          %2049 = vset.pattern.permute.xlu0 0
          %2050 = vperm.xlu0 %2049, %v1984
          %v2051 = vpop.permute.xlu0 %2050
          %2054 = vset.pattern.permute.xlu0 0
          %2055 = vperm.xlu0 %2054, %v1985
          %v2056 = vpop.permute.xlu0 %2055
          %2059 = vset.pattern.permute.xlu0 0
          %2060 = vperm.xlu0 %2059, %v1986
          %v2061 = vpop.permute.xlu0 %2060
          %2064 = vset.pattern.permute.xlu0 0
          %2065 = vperm.xlu0 %2064, %v1987
          %v2066 = vpop.permute.xlu0 %2065
          %2069 = vset.pattern.permute.xlu0 0
          %2070 = vperm.xlu0 %2069, %v1988
          %v2071 = vpop.permute.xlu0 %2070
          %2074 = vset.pattern.permute.xlu0 0
          %2075 = vperm.xlu0 %2074, %v1989
          %v2076 = vpop.permute.xlu0 %2075
          %2079 = vset.pattern.permute.xlu0 0
          %2080 = vperm.xlu0 %2079, %v1990
          %v2081 = vpop.permute.xlu0 %2080
          %2084 = vset.pattern.permute.xlu0 0
          %2085 = vperm.xlu0 %2084, %v1991
          %v2086 = vpop.permute.xlu0 %2085
          %2089 = vset.pattern.permute.xlu0 0
          %2090 = vperm.xlu0 %2089, %v1992
          %v2091 = vpop.permute.xlu0 %2090
          %2094 = vset.pattern.permute.xlu0 0
          %2095 = vperm.xlu0 %2094, %v1993
          %v2096 = vpop.permute.xlu0 %2095
          %2099 = vset.pattern.permute.xlu0 0
          %2100 = vperm.xlu0 %2099, %v1994
          %v2101 = vpop.permute.xlu0 %2100
          %2104 = vset.pattern.permute.xlu0 0
          %2105 = vperm.xlu0 %2104, %v1995
          %v2106 = vpop.permute.xlu0 %2105
          %2109 = vset.pattern.permute.xlu0 0
          %2110 = vperm.xlu0 %2109, %v1996
          %v2111 = vpop.permute.xlu0 %2110
          %2114 = vset.pattern.permute.xlu0 0
          %2115 = vperm.xlu0 %2114, %v1997
          %v2116 = vpop.permute.xlu0 %2115
          %2119 = vset.pattern.permute.xlu0 0
          %2120 = vperm.xlu0 %2119, %v1998
          %v2121 = vpop.permute.xlu0 %2120
          %2124 = vset.pattern.permute.xlu0 0
          %2125 = vperm.xlu0 %2124, %v1999
          %v2126 = vpop.permute.xlu0 %2125
          %2129 = vset.pattern.permute.xlu0 0
          %2130 = vperm.xlu0 %2129, %v2000
          %v2131 = vpop.permute.xlu0 %2130
          %2134 = vset.pattern.permute.xlu0 0
          %2135 = vperm.xlu0 %2134, %v2001
          %v2136 = vpop.permute.xlu0 %2135
          %2139 = vset.pattern.permute.xlu0 0
          %2140 = vperm.xlu0 %2139, %v2002
          %v2141 = vpop.permute.xlu0 %2140
          %2144 = vset.pattern.permute.xlu0 0
          %2145 = vperm.xlu0 %2144, %v2003
          %v2146 = vpop.permute.xlu0 %2145
          %2149 = vset.pattern.permute.xlu0 0
          %2150 = vperm.xlu0 %2149, %v2004
          %v2151 = vpop.permute.xlu0 %2150
          %2154 = vset.pattern.permute.xlu0 0
          %2155 = vperm.xlu0 %2154, %v2005
          %v2156 = vpop.permute.xlu0 %2155
          %2159 = vset.pattern.permute.xlu0 0
          %2160 = vperm.xlu0 %2159, %v2006
          %v2161 = vpop.permute.xlu0 %2160
          %2164 = vset.pattern.permute.xlu0 0
          %2165 = vperm.xlu0 %2164, %v2007
          %v2166 = vpop.permute.xlu0 %2165
          %v2168 = vmul.f32 %v1944, %v2011
          %v2169 = vmul.f32 %v1945, %v2016
          %v2170 = vmul.f32 %v1946, %v2021
          %v2171 = vmul.f32 %v1947, %v2026
          %v2172 = vmul.f32 %v1948, %v2031
          %v2173 = vmul.f32 %v1949, %v2036
          %v2174 = vmul.f32 %v1950, %v2041
          %v2175 = vmul.f32 %v1951, %v2046
          %v2176 = vmul.f32 %v1952, %v2051
          %v2177 = vmul.f32 %v1953, %v2056
          %v2178 = vmul.f32 %v1954, %v2061
          %v2179 = vmul.f32 %v1955, %v2066
          %v2180 = vmul.f32 %v1956, %v2071
          %v2181 = vmul.f32 %v1957, %v2076
          %v2182 = vmul.f32 %v1958, %v2081
          %v2183 = vmul.f32 %v1959, %v2086
          %v2184 = vmul.f32 %v1960, %v2091
          %v2185 = vmul.f32 %v1961, %v2096
          %v2186 = vmul.f32 %v1962, %v2101
          %v2187 = vmul.f32 %v1963, %v2106
          %v2188 = vmul.f32 %v1964, %v2111
          %v2189 = vmul.f32 %v1965, %v2116
          %v2190 = vmul.f32 %v1966, %v2121
          %v2191 = vmul.f32 %v1967, %v2126
          %v2192 = vmul.f32 %v1968, %v2131
          %v2193 = vmul.f32 %v1969, %v2136
          %v2194 = vmul.f32 %v1970, %v2141
          %v2195 = vmul.f32 %v1971, %v2146
          %v2196 = vmul.f32 %v1972, %v2151
          %v2197 = vmul.f32 %v1973, %v2156
          %v2198 = vmul.f32 %v1974, %v2161
          %v2199 = vmul.f32 %v1975, %v2166
          %2200 = vst [vmem:[%s1943] sm:$0xff] %v2168
          %2201 = vst [vmem:[%s1943 + $0x8] sm:$0xff] %v2169
          %2202 = vst [vmem:[%s1943 + $0x10] sm:$0xff] %v2170
          %2203 = vst [vmem:[%s1943 + $0x18] sm:$0xff] %v2171
          %2204 = vst [vmem:[%s1943 + $0x20] sm:$0xff] %v2172
          %2205 = vst [vmem:[%s1943 + $0x28] sm:$0xff] %v2173
          %2206 = vst [vmem:[%s1943 + $0x30] sm:$0xff] %v2174
          %2207 = vst [vmem:[%s1943 + $0x38] sm:$0xff] %v2175
          %2208 = vst [vmem:[%s1943 + $0x40] sm:$0xff] %v2176
          %2209 = vst [vmem:[%s1943 + $0x48] sm:$0xff] %v2177
          %2210 = vst [vmem:[%s1943 + $0x50] sm:$0xff] %v2178
          %2211 = vst [vmem:[%s1943 + $0x58] sm:$0xff] %v2179
          %2212 = vst [vmem:[%s1943 + $0x60] sm:$0xff] %v2180
          %2213 = vst [vmem:[%s1943 + $0x68] sm:$0xff] %v2181
          %2214 = vst [vmem:[%s1943 + $0x70] sm:$0xff] %v2182
          %2215 = vst [vmem:[%s1943 + $0x78] sm:$0xff] %v2183
          %2216 = vst [vmem:[%s1943 + $0x80] sm:$0xff] %v2184
          %2217 = vst [vmem:[%s1943 + $0x88] sm:$0xff] %v2185
          %2218 = vst [vmem:[%s1943 + $0x90] sm:$0xff] %v2186
          %2219 = vst [vmem:[%s1943 + $0x98] sm:$0xff] %v2187
          %2220 = vst [vmem:[%s1943 + $0xa0] sm:$0xff] %v2188
          %2221 = vst [vmem:[%s1943 + $0xa8] sm:$0xff] %v2189
          %2222 = vst [vmem:[%s1943 + $0xb0] sm:$0xff] %v2190
          %2223 = vst [vmem:[%s1943 + $0xb8] sm:$0xff] %v2191
          %2224 = vst [vmem:[%s1943 + $0xc0] sm:$0xff] %v2192
          %2225 = vst [vmem:[%s1943 + $0xc8] sm:$0xff] %v2193
          %2226 = vst [vmem:[%s1943 + $0xd0] sm:$0xff] %v2194
          %2227 = vst [vmem:[%s1943 + $0xd8] sm:$0xff] %v2195
          %2228 = vst [vmem:[%s1943 + $0xe0] sm:$0xff] %v2196
          %2229 = vst [vmem:[%s1943 + $0xe8] sm:$0xff] %v2197
          %2230 = vst [vmem:[%s1943 + $0xf0] sm:$0xff] %v2198
          %2231 = vst [vmem:[%s1943 + $0xf8] sm:$0xff] %v2199
        $region102: #{single_layer_directed_gcn_encoder.3} parent=73 // pred_fallthru
          _
        %s2232 = smul.u32 32, %s22
        %p2233 = scmp.lt.s32.totalorder %s2232, 63
        %s2234 = scalar_select %p2233, %s2232, 63
        %s2235 = smul.addr %s2234, 8
        %s2236 = scalar_lea.vmem %s5, %s2235
        // Predicated region
        $region103: #{single_layer_directed_gcn_encoder.3} parent=73 // pred_check
          %p2237 = pneg %p180
        $region104: #{single_layer_directed_gcn_encoder.3} parent=73 // pred_check_branch
          %2239 = sbr.rel (%p2237) target = $region106
        $region105: #{single_layer_directed_gcn_encoder.3} parent=73 // pred_region
          %s2240 = smul.u32 32, %s22
        $region106: #{single_layer_directed_gcn_encoder.3} parent=73 // pred_fallthru
          _
        // Predicated region
        $region107: #{single_layer_directed_gcn_encoder.3} parent=73 // pred_check
          %p2241 = pneg %p201
        $region108: #{single_layer_directed_gcn_encoder.3} parent=73 // pred_check_branch
          %2243 = sbr.rel (%p2241) target = $region110
        $region109: #{single_layer_directed_gcn_encoder.3} parent=73 // pred_region
          _
        $region110: #{single_layer_directed_gcn_encoder.3} parent=73 // pred_fallthru
          _
        // Predicated region
        $region111: #{single_layer_directed_gcn_encoder.3} parent=73 // pred_check
          %p2244 = pneg %p201
        $region112: #{single_layer_directed_gcn_encoder.3} parent=73 // pred_check_branch
          %2246 = sbr.rel (%p2244) target = $region114
        $region113: #{single_layer_directed_gcn_encoder.3} parent=73 // pred_region
          _
        $region114: #{single_layer_directed_gcn_encoder.3} parent=73 // pred_fallthru
          _
      $region74: #{single_layer_directed_gcn_encoder.3} parent=5 // pred_fallthru
        _
      %p2247 = scmp.le.s32.totalorder 2, %s13
      // Predicated region
      $region115: #{single_layer_directed_gcn_encoder.3} parent=5 // pred_check
        %p2248 = pneg %p2247
      $region116: #{single_layer_directed_gcn_encoder.3} parent=5 // pred_check_branch
        %2250 = sbr.rel (%p2248) target = $region118
      $region117: #{single_layer_directed_gcn_encoder.3} parent=5 // pred_region
        %s2251 = ssub.s32 %s13, 2
        // Predicated region
        $region119: #{single_layer_directed_gcn_encoder.3} parent=117 // pred_check
          %p2252 = pneg %p186
        $region120: #{single_layer_directed_gcn_encoder.3} parent=117 // pred_check_branch
          %2254 = sbr.rel (%p2252) target = $region122
        $region121: #{single_layer_directed_gcn_encoder.3} parent=117 // pred_region
          %s2255 = smul.u32 32, %s24
          %p2256 = scmp.lt.s32.totalorder %s2255, 63
          %s2257 = scalar_select %p2256, %s2255, 63
          %s2258 = smul.addr %s2257, 8
          %s2259 = scalar_lea.vmem %s5, %s2258
        $region122: #{single_layer_directed_gcn_encoder.3} parent=117 // pred_fallthru
          _
      $region118: #{single_layer_directed_gcn_encoder.3} parent=5 // pred_fallthru
        _
    $region6: #{single_layer_directed_gcn_encoder.3} parent=1 // loop_footer
      %s17 = sadd.s32 1, %s13
    $region7: #{single_layer_directed_gcn_encoder.3} parent=1 // loop_footer_branch
      %12 = sbr.rel target = $region3
    $region8: #{single_layer_directed_gcn_encoder.3} parent=1 // loop_exit
      _

</llo_original>
